<compile_context>
chip_gen: v5e
topology: v5e:2x2
jax: 0.10.0
libtpu: 0.0.40
codegen_flags: <defaults>
</compile_context>

<pallas_src>
import numpy as np
import jax
import jax.numpy as jnp
from jax.experimental import pallas as pl
from jax.experimental.pallas import tpu as pltpu

# ----- small example dims consistent with the module -----
VOCAB = 100   # num_embeddings
E     = 32    # embedding_size
H     = 32    # gru_units
D     = 32    # dense_units
B     = 2     # batch of documents
S     = 8     # max sentences per document
WMAX  = 6     # max words per sentence
BS    = B * S
G3    = 3 * H            # stacked gates (r,z,n) for one direction
G6    = 6 * H            # both directions


def _bf(x):
    return x.astype(jnp.bfloat16)


# ---------------- fused kernel: sent-avg + biGRU + topic + attention decoder -----
def fused_extsumm_kernel(
    emb_ref, mask_ref, len_ref, pf_ref, pb_ref,
    wih_ref, whh_ref, bih_ref, bhh_ref,
    wattn_ref, vt_ref, wa_ref, ba_ref, wo_ref, bo_ref,
    out_ref,
):
    f32 = jnp.float32

    # ---- 1) sentence encoder: masked mean over words ------------------------
    emb = emb_ref[...]                                        # (BS, WMAX, E)
    mask = mask_ref[...]                                      # (BS, WMAX)
    summed = jnp.sum(emb * mask[:, :, None], axis=1)          # (BS, E)
    counts = jnp.maximum(jnp.sum(mask, axis=1, keepdims=True), 1.0)
    sent = summed * pl.reciprocal(counts, approx=True)        # (BS, E)

    # ---- 2) bidirectional GRU (packed-sequence semantics), gates+dirs fused --
    wih = wih_ref[...]        # (E, 6H)  bf16: [fwd r|z|n | bwd r|z|n]
    whh = whh_ref[...]        # (2H, 6H) bf16: block-diag over direction
    bih = bih_ref[...]        # (1, 6H)  f32
    bhh = bhh_ref[...]        # (1, 6H)  f32
    lengths = len_ref[...]    # (B, 1)   int32

    # one MXU matmul for all time steps / directions / gates
    xg = jnp.dot(_bf(sent), wih, preferred_element_type=f32) + bih   # (BS, 6H)

    def rows_at(t, c0, c1):
        # gather the per-document row of xg for (static) time t, lane range [c0,c1)
        return jnp.concatenate(
            [xg[b * S + t: b * S + t + 1, c0:c1] for b in range(B)], axis=0)

    h_f = jnp.zeros((B, H), f32)
    h_b = jnp.zeros((B, H), f32)
    fwd_steps = [None] * S
    bwd_steps = [None] * S
    for i in range(S):                       # fully unrolled, S is static
        t_f = i
        t_b = S - 1 - i
        h_cat = jnp.concatenate([h_f, h_b], axis=1)                        # (B, 2H)
        hg = jnp.dot(_bf(h_cat), whh, preferred_element_type=f32) + bhh    # (B, 6H)

        # forward direction at time t_f
        xf = rows_at(t_f, 0, G3)                                           # (B, 3H)
        r_f = jax.nn.sigmoid(xf[:, 0:H] + hg[:, 0:H])
        z_f = jax.nn.sigmoid(xf[:, H:2 * H] + hg[:, H:2 * H])
        n_f = jnp.tanh(xf[:, 2 * H:3 * H] + r_f * hg[:, 2 * H:3 * H])
        h_f_new = (1.0 - z_f) * n_f + z_f * h_f
        valid_f = lengths > t_f                                            # (B, 1)
        h_f = jnp.where(valid_f, h_f_new, h_f)
        fwd_steps[t_f] = jnp.where(valid_f, h_f_new, jnp.zeros_like(h_f_new))

        # backward direction at time t_b
        xb = rows_at(t_b, G3, G6)                                          # (B, 3H)
        r_b = jax.nn.sigmoid(xb[:, 0:H] + hg[:, G3:G3 + H])
        z_b = jax.nn.sigmoid(xb[:, H:2 * H] + hg[:, G3 + H:G3 + 2 * H])
        n_b = jnp.tanh(xb[:, 2 * H:3 * H] + r_b * hg[:, G3 + 2 * H:G3 + 3 * H])
        h_b_new = (1.0 - z_b) * n_b + z_b * h_b
        valid_b = lengths > t_b
        h_b = jnp.where(valid_b, h_b_new, h_b)
        bwd_steps[t_b] = jnp.where(valid_b, h_b_new, jnp.zeros_like(h_b_new))

    # assemble (BS, H) per-direction outputs, row index = b*S + t (batch-major)
    fwd_out = jnp.concatenate(
        [jnp.concatenate([fwd_steps[t][b:b + 1, :] for t in range(S)], axis=0)
         for b in range(B)], axis=0)
    bwd_out = jnp.concatenate(
        [jnp.concatenate([bwd_steps[t][b:b + 1, :] for t in range(S)], axis=0)
         for b in range(B)], axis=0)

    # doc_rep quirk: torch `hidden.view(B, 2H)` on hidden of shape (2, B, H)
    def h_row(k):
        return h_f[k:k + 1, :] if k < B else h_b[k - B:k - B + 1, :]
    doc_flat = jnp.concatenate(
        [jnp.concatenate([h_row(2 * b), h_row(2 * b + 1)], axis=1) for b in range(B)],
        axis=0)                                                            # (B, 2H)

    # topic representation via precomputed block-diagonal 0/1 projections
    pf = pf_ref[...]                                                       # (BS, BS)
    pb = pb_ref[...]
    topic_f = jnp.dot(_bf(pf), _bf(fwd_out), preferred_element_type=f32)   # (BS, H)
    topic_b = jnp.dot(_bf(pb), _bf(bwd_out), preferred_element_type=f32)

    # ---- 3) attention decoder ------------------------------------------------
    W = wattn_ref[...]        # (4H, 4H) bf16
    vT = vt_ref[...]          # (1, 4H)  f32
    Wa = wa_ref[...]          # (4H, D)  bf16
    ba = ba_ref[...]          # (1, D)
    wo = wo_ref[...]          # (1, D)
    bo = bo_ref[...]          # (1, 1)

    # cat([x | sent]) @ W  ==  x @ W[:2H] + sent_fwd @ W[2H:3H] + sent_bwd @ W[3H:]
    sentW = (jnp.dot(_bf(fwd_out), W[2 * H:3 * H], preferred_element_type=f32)
             + jnp.dot(_bf(bwd_out), W[3 * H:4 * H], preferred_element_type=f32))
    docW_b = jnp.dot(_bf(doc_flat), W[0:2 * H], preferred_element_type=f32)      # (B, 4H)
    docW = jnp.concatenate(
        [jnp.broadcast_to(docW_b[b:b + 1, :], (S, 4 * H)) for b in range(B)], axis=0)
    topicW = (jnp.dot(_bf(topic_f), W[0:H], preferred_element_type=f32)
              + jnp.dot(_bf(topic_b), W[H:2 * H], preferred_element_type=f32))

    doc_scores = jnp.sum(jnp.tanh(docW + sentW) * vT, axis=-1, keepdims=True)    # (BS,1)
    topic_scores = jnp.sum(jnp.tanh(topicW + sentW) * vT, axis=-1, keepdims=True)

    def seg_softmax(col):     # torch F.softmax(dim=1): over the S sentences per doc
        outs = []
        for b in range(B):
            seg = col[b * S:(b + 1) * S, :]
            m = jnp.max(seg, axis=0, keepdims=True)
            e = jnp.exp(seg - m)
            outs.append(e * pl.reciprocal(jnp.sum(e, axis=0, keepdims=True), approx=True))
        return jnp.concatenate(outs, axis=0)

    doc_w = seg_softmax(doc_scores)
    topic_w = seg_softmax(topic_scores)

    doc_vals_f = jnp.concatenate(
        [jnp.broadcast_to(doc_flat[b:b + 1, 0:H], (S, H)) for b in range(B)], axis=0)
    doc_vals_b = jnp.concatenate(
        [jnp.broadcast_to(doc_flat[b:b + 1, H:2 * H], (S, H)) for b in range(B)], axis=0)

    ctx_f = doc_w * doc_vals_f + topic_w * topic_f                         # (BS, H)
    ctx_b = doc_w * doc_vals_b + topic_w * topic_b

    # dense_attn on cat([sent | context]) via weight-split matmuls, then relu
    h = (jnp.dot(_bf(fwd_out), Wa[0:H], preferred_element_type=f32)
         + jnp.dot(_bf(bwd_out), Wa[H:2 * H], preferred_element_type=f32)
         + jnp.dot(_bf(ctx_f), Wa[2 * H:3 * H], preferred_element_type=f32)
         + jnp.dot(_bf(ctx_b), Wa[3 * H:4 * H], preferred_element_type=f32)
         + ba)
    h = jnp.maximum(h, 0.0)
    # TODO(synk): nn.Dropout(0.3) is identity at inference; training-mode dropout not implemented.
    logits = jnp.sum(h * wo, axis=-1, keepdims=True) + bo                  # (BS, 1)
    out_ref[...] = logits


# ---------------- pallas_call wrapper ---------------------------------------------
def _full_spec(shape):
    zeros = (0,) * len(shape)
    return pl.BlockSpec(tuple(shape), lambda i: zeros)


def ext_summ_forward(params, word_idx, word_mask, doc_lengths, topic_projs):
    pf_blk, pb_blk = topic_projs
    word_emb = params["embedding"][word_idx]                 # (B, S, WMAX, E)  (glue gather)
    emb_flat = word_emb.reshape(BS, WMAX, E)
    mask_flat = word_mask.reshape(BS, WMAX)
    lens = doc_lengths.reshape(B, 1).astype(jnp.int32)

    in_arrays = [
        emb_flat, mask_flat, lens, pf_blk, pb_blk,
        params["wih_cat"], params["whh_blk"], params["bih_cat"], params["bhh_cat"],
        params["W_attention"], params["vT_attention"],
        params["Wa"], params["ba"], params["WoT"], params["bo"],
    ]
    in_specs = [_full_spec(a.shape) for a in in_arrays]

    logits_col = pl.pallas_call(
        fused_extsumm_kernel,
        out_shape=jax.ShapeDtypeStruct((BS, 1), jnp.float32),
        grid_spec=pl.GridSpec(
            grid=(1,),
            in_specs=in_specs,
            out_specs=_full_spec((BS, 1)),
        ),
        compiler_params=pltpu.CompilerParams(dimension_semantics=("arbitrary",)),
    )(*in_arrays)
    return logits_col.reshape(B, S)                          # == .squeeze(2) in torch


# ---------------- topic table -> block projection matrices (host preprocessing) ---
def build_topic_projections(topic_start_ends):
    pf = np.zeros((BS, BS), np.float32)
    pb = np.zeros((BS, BS), np.float32)
    for b, se in enumerate(topic_start_ends):
        se = np.asarray(se, np.int64)
        starts, ends = se[:, 0], se[:, 1]                    # 1-indexed inclusive
        T = se.shape[0]
        member = np.zeros((S, T), np.float32)
        sel_end = np.zeros((T, S), np.float32)
        sel_start_m1 = np.zeros((T, S), np.float32)
        sel_start = np.zeros((T, S), np.float32)
        sel_end_p1 = np.zeros((T, S), np.float32)
        for t in range(T):
            s0, e0 = int(starts[t]), int(ends[t])
            member[s0 - 1:e0, t] = 1.0
            sel_end[t, e0 - 1] = 1.0
            if s0 - 2 >= 0:                                  # zero-padded row at front
                sel_start_m1[t, s0 - 2] = 1.0
            sel_start[t, s0 - 1] = 1.0
            if e0 <= S - 1:                                  # zero-padded row at back
                sel_end_p1[t, e0] = 1.0
        # topics assumed non-overlapping (same assumption as the reference scatter)
        pf[b * S:(b + 1) * S, b * S:(b + 1) * S] = member @ (sel_end - sel_start_m1)
        pb[b * S:(b + 1) * S, b * S:(b + 1) * S] = member @ (sel_start - sel_end_p1)
    return jnp.asarray(pf), jnp.asarray(pb)


# ---------------- parameter init (torch-shape-equivalent, pre-fused layouts) ------
def init_params(key):
    ks = jax.random.split(key, 11)
    emb = jax.random.normal(ks[0], (VOCAB, E), jnp.float32) * 0.5
    wih = jax.random.normal(ks[1], (2, 3, H, E), jnp.float32) * 0.2   # torch (3H,E)/dir
    whh = jax.random.normal(ks[2], (2, 3, H, H), jnp.float32) * 0.2
    bih = jax.random.normal(ks[3], (2, 3, H), jnp.float32) * 0.1
    bhh = jax.random.normal(ks[4], (2, 3, H), jnp.float32) * 0.1
    W_attention = jax.random.normal(ks[5], (4 * H, 4 * H), jnp.float32) * 0.1
    v_attention = jax.random.normal(ks[6], (4 * H, 1), jnp.float32) * 0.1
    dense_attn_w = jax.random.normal(ks[7], (D, 4 * H), jnp.float32) * 0.1
    dense_attn_b = jax.random.normal(ks[8], (D,), jnp.float32) * 0.1
    dense_out_w = jax.random.normal(ks[9], (1, D), jnp.float32) * 0.1
    dense_out_b = jax.random.normal(ks[10], (1,), jnp.float32) * 0.1

    # fused input projection: columns [fwd r|z|n | bwd r|z|n], each H wide
    wih_cat = jnp.concatenate([wih[d, g].T for d in range(2) for g in range(3)], axis=1)
    bih_cat = jnp.concatenate([bih[d, g] for d in range(2) for g in range(3)], axis=0).reshape(1, G6)
    bhh_cat = jnp.concatenate([bhh[d, g] for d in range(2) for g in range(3)], axis=0).reshape(1, G6)
    # block-diagonal (over direction) recurrent weight: [h_fwd|h_bwd] @ whh_blk -> 6 gates
    whh_blk = jnp.zeros((2 * H, G6), jnp.float32)
    whh_blk = whh_blk.at[0:H, 0:G3].set(jnp.concatenate([whh[0, g].T for g in range(3)], axis=1))
    whh_blk = whh_blk.at[H:2 * H, G3:G6].set(jnp.concatenate([whh[1, g].T for g in range(3)], axis=1))

    return {
        "embedding": emb,
        "wih_cat": wih_cat.astype(jnp.bfloat16),       # (E, 6H)
        "whh_blk": whh_blk.astype(jnp.bfloat16),       # (2H, 6H)
        "bih_cat": bih_cat, "bhh_cat": bhh_cat,        # (1, 6H) f32
        "W_attention": W_attention.astype(jnp.bfloat16),  # (4H, 4H)
        "vT_attention": v_attention.T,                 # (1, 4H)
        "Wa": dense_attn_w.T.astype(jnp.bfloat16),     # (4H, D)
        "ba": dense_attn_b.reshape(1, D),
        "WoT": dense_out_w,                            # (1, D)
        "bo": dense_out_b.reshape(1, 1),
    }


if __name__ == "__main__":
    key = jax.random.PRNGKey(0)
    pkey, dkey = jax.random.split(key)
    params = init_params(pkey)

    # synthetic documents: B docs, doc_lengths[b] sentences, word_counts words each
    doc_lengths = np.array([8, 6], dtype=np.int32)
    word_counts = np.array([[3, 4, 5, 6, 2, 3, 4, 5],
                            [4, 3, 6, 2, 5, 4, 0, 0]], dtype=np.int32)
    word_idx = np.asarray(jax.random.randint(dkey, (B, S, WMAX), 0, VOCAB), dtype=np.int32)
    word_mask = (np.arange(WMAX)[None, None, :] < word_counts[:, :, None]).astype(np.float32)
    # topic_start_ends: list (batch) of [num_topics, 2] with 1-indexed [start, end]
    topic_start_ends = [np.array([[1, 3], [4, 6], [7, 8]], dtype=np.int32),
                        np.array([[1, 2], [3, 6]], dtype=np.int32)]
    topic_projs = build_topic_projections(topic_start_ends)

    logits = ext_summ_forward(
        params,
        jnp.asarray(word_idx),
        jnp.asarray(word_mask),
        jnp.asarray(doc_lengths),
        topic_projs,
    )
    logits = jax.block_until_ready(logits)
    assert logits.shape == (B, S), logits.shape
    assert bool(jnp.all(jnp.isfinite(logits)))
    print("KERNEL_OK")
</pallas_src>

<mosaic_0001>
module attributes {stable_mosaic.version = 11 : i64} {
  func.func @fused_extsumm_kernel(%arg0: i32, %arg1: memref<16x6x32xf32, #tpu.memory_space<vmem>>, %arg2: memref<16x6xf32, #tpu.memory_space<vmem>>, %arg3: memref<2x1xi32, #tpu.memory_space<vmem>>, %arg4: memref<16x16xf32, #tpu.memory_space<vmem>>, %arg5: memref<16x16xf32, #tpu.memory_space<vmem>>, %arg6: memref<32x192xbf16, #tpu.memory_space<vmem>>, %arg7: memref<64x192xbf16, #tpu.memory_space<vmem>>, %arg8: memref<1x192xf32, #tpu.memory_space<vmem>>, %arg9: memref<1x192xf32, #tpu.memory_space<vmem>>, %arg10: memref<128x128xbf16, #tpu.memory_space<vmem>>, %arg11: memref<1x128xf32, #tpu.memory_space<vmem>>, %arg12: memref<128x32xbf16, #tpu.memory_space<vmem>>, %arg13: memref<1x32xf32, #tpu.memory_space<vmem>>, %arg14: memref<1x32xf32, #tpu.memory_space<vmem>>, %arg15: memref<1x1xf32, #tpu.memory_space<vmem>>, %arg16: memref<16x1xf32, #tpu.memory_space<vmem>>) attributes {dimension_semantics = [#tpu.dimension_semantics<arbitrary>], iteration_bounds = array<i64: 1>, scalar_prefetch = 0 : i64, scratch_operands = 0 : i64, tpu.core_type = #tpu.core_type<tc>, window_params = [{pipeline_mode = #tpu.pipeline_mode<synchronous>, transform_indices = @transform_0, window_bounds = array<i64: 16, 6, 32>}, {pipeline_mode = #tpu.pipeline_mode<synchronous>, transform_indices = @transform_1, window_bounds = array<i64: 16, 6>}, {pipeline_mode = #tpu.pipeline_mode<synchronous>, transform_indices = @transform_2, window_bounds = array<i64: 2, 1>}, {pipeline_mode = #tpu.pipeline_mode<synchronous>, transform_indices = @transform_3, window_bounds = array<i64: 16, 16>}, {pipeline_mode = #tpu.pipeline_mode<synchronous>, transform_indices = @transform_4, window_bounds = array<i64: 16, 16>}, {pipeline_mode = #tpu.pipeline_mode<synchronous>, transform_indices = @transform_5, window_bounds = array<i64: 32, 192>}, {pipeline_mode = #tpu.pipeline_mode<synchronous>, transform_indices = @transform_6, window_bounds = array<i64: 64, 192>}, {pipeline_mode = #tpu.pipeline_mode<synchronous>, transform_indices = @transform_7, window_bounds = array<i64: 1, 192>}, {pipeline_mode = #tpu.pipeline_mode<synchronous>, transform_indices = @transform_8, window_bounds = array<i64: 1, 192>}, {pipeline_mode = #tpu.pipeline_mode<synchronous>, transform_indices = @transform_9, window_bounds = array<i64: 128, 128>}, {pipeline_mode = #tpu.pipeline_mode<synchronous>, transform_indices = @transform_10, window_bounds = array<i64: 1, 128>}, {pipeline_mode = #tpu.pipeline_mode<synchronous>, transform_indices = @transform_11, window_bounds = array<i64: 128, 32>}, {pipeline_mode = #tpu.pipeline_mode<synchronous>, transform_indices = @transform_12, window_bounds = array<i64: 1, 32>}, {pipeline_mode = #tpu.pipeline_mode<synchronous>, transform_indices = @transform_13, window_bounds = array<i64: 1, 32>}, {pipeline_mode = #tpu.pipeline_mode<synchronous>, transform_indices = @transform_14, window_bounds = array<i64: 1, 1>}, {pipeline_mode = #tpu.pipeline_mode<synchronous>, transform_indices = @transform_15, window_bounds = array<i64: 16, 1>}]} {
    %c0 = arith.constant 0 : index
    %c0_0 = arith.constant 0 : index
    %c0_1 = arith.constant 0 : index
    %0 = vector.load %arg1[%c0, %c0_0, %c0_1] : memref<16x6x32xf32, #tpu.memory_space<vmem>>, vector<16x6x32xf32>
    %c0_2 = arith.constant 0 : index
    %c0_3 = arith.constant 0 : index
    %1 = vector.load %arg2[%c0_2, %c0_3] : memref<16x6xf32, #tpu.memory_space<vmem>>, vector<16x6xf32>
    %2 = vector.shape_cast %1 : vector<16x6xf32> to vector<16x6x1xf32>
    %3 = vector.broadcast %2 : vector<16x6x1xf32> to vector<16x6x32xf32>
    %4 = arith.mulf %0, %3 : vector<16x6x32xf32>
    %cst = arith.constant dense<0.000000e+00> : vector<16x32xf32>
    %5 = vector.multi_reduction <add>, %4, %cst [1] : vector<16x6x32xf32> to vector<16x32xf32>
    %cst_4 = arith.constant dense<0.000000e+00> : vector<16xf32>
    %6 = vector.multi_reduction <add>, %1, %cst_4 [1] : vector<16x6xf32> to vector<16xf32>
    %7 = vector.shape_cast %6 : vector<16xf32> to vector<16x1xf32>
    %cst_5 = arith.constant 1.000000e+00 : f32
    %8 = vector.broadcast %cst_5 : f32 to vector<16x1xf32>
    %9 = arith.maximumf %7, %8 : vector<16x1xf32>
    %10 = tpu.reciprocal %9 {approx = true} : vector<16x1xf32> -> vector<16x1xf32>
    %11 = vector.broadcast %10 : vector<16x1xf32> to vector<16x32xf32>
    %12 = arith.mulf %5, %11 : vector<16x32xf32>
    %c0_6 = arith.constant 0 : index
    %c0_7 = arith.constant 0 : index
    %13 = vector.load %arg6[%c0_6, %c0_7] : memref<32x192xbf16, #tpu.memory_space<vmem>>, vector<32x192xbf16>
    %c0_8 = arith.constant 0 : index
    %c0_9 = arith.constant 0 : index
    %14 = vector.load %arg7[%c0_8, %c0_9] : memref<64x192xbf16, #tpu.memory_space<vmem>>, vector<64x192xbf16>
    %c0_10 = arith.constant 0 : index
    %c0_11 = arith.constant 0 : index
    %15 = vector.load %arg8[%c0_10, %c0_11] : memref<1x192xf32, #tpu.memory_space<vmem>>, vector<1x192xf32>
    %c0_12 = arith.constant 0 : index
    %c0_13 = arith.constant 0 : index
    %16 = vector.load %arg9[%c0_12, %c0_13] : memref<1x192xf32, #tpu.memory_space<vmem>>, vector<1x192xf32>
    %c0_14 = arith.constant 0 : index
    %c0_15 = arith.constant 0 : index
    %17 = vector.load %arg3[%c0_14, %c0_15] : memref<2x1xi32, #tpu.memory_space<vmem>>, vector<2x1xi32>
    %18 = arith.truncf %12 : vector<16x32xf32> to vector<16x32xbf16>
    %cst_16 = arith.constant dense<0.000000e+00> : vector<16x192xf32>
    %19 = tpu.matmul %18, %13, %cst_16 {dimension_numbers = #tpu.dot_dimension_numbers<[1], [0], [0], [1], [0, 0, 1, 1], [], []>} : vector<16x32xbf16>, vector<32x192xbf16>, vector<16x192xf32> -> vector<16x192xf32>
    %20 = vector.broadcast %15 : vector<1x192xf32> to vector<16x192xf32>
    %21 = arith.addf %19, %20 : vector<16x192xf32>
    %cst_17 = arith.constant 0.000000e+00 : f32
    %22 = vector.broadcast %cst_17 : f32 to vector<2x32xf32>
    %cst_18 = arith.constant 0.000000e+00 : f32
    %23 = vector.broadcast %cst_18 : f32 to vector<2x32xf32>
    %24 = tpu.concatenate %22, %23 in 1 : vector<2x32xf32>, vector<2x32xf32> -> vector<2x64xf32>
    %25 = arith.truncf %24 : vector<2x64xf32> to vector<2x64xbf16>
    %cst_19 = arith.constant dense<0.000000e+00> : vector<2x192xf32>
    %26 = tpu.matmul %25, %14, %cst_19 {dimension_numbers = #tpu.dot_dimension_numbers<[1], [0], [0], [1], [0, 0, 1, 1], [], []>} : vector<2x64xbf16>, vector<64x192xbf16>, vector<2x192xf32> -> vector<2x192xf32>
    %27 = vector.broadcast %16 : vector<1x192xf32> to vector<2x192xf32>
    %28 = arith.addf %26, %27 : vector<2x192xf32>
    %29 = vector.extract_strided_slice %21 {offsets = [0, 0], sizes = [1, 96], strides = [1, 1]} : vector<16x192xf32> to vector<1x96xf32>
    %30 = vector.extract_strided_slice %21 {offsets = [8, 0], sizes = [1, 96], strides = [1, 1]} : vector<16x192xf32> to vector<1x96xf32>
    %31 = tpu.concatenate %29, %30 in 0 : vector<1x96xf32>, vector<1x96xf32> -> vector<2x96xf32>
    %32 = vector.extract_strided_slice %31 {offsets = [0, 0], sizes = [2, 32], strides = [1, 1]} : vector<2x96xf32> to vector<2x32xf32>
    %33 = vector.extract_strided_slice %28 {offsets = [0, 0], sizes = [2, 32], strides = [1, 1]} : vector<2x192xf32> to vector<2x32xf32>
    %34 = arith.addf %32, %33 : vector<2x32xf32>
    %35 = arith.negf %34 : vector<2x32xf32>
    %36 = math.exp %35 : vector<2x32xf32>
    %cst_20 = arith.constant 1.000000e+00 : f32
    %37 = vector.broadcast %cst_20 : f32 to vector<2x32xf32>
    %38 = arith.addf %37, %36 : vector<2x32xf32>
    %39 = arith.divf %37, %38 : vector<2x32xf32>
    %40 = vector.extract_strided_slice %31 {offsets = [0, 32], sizes = [2, 32], strides = [1, 1]} : vector<2x96xf32> to vector<2x32xf32>
    %41 = vector.extract_strided_slice %28 {offsets = [0, 32], sizes = [2, 32], strides = [1, 1]} : vector<2x192xf32> to vector<2x32xf32>
    %42 = arith.addf %40, %41 : vector<2x32xf32>
    %43 = arith.negf %42 : vector<2x32xf32>
    %44 = math.exp %43 : vector<2x32xf32>
    %cst_21 = arith.constant 1.000000e+00 : f32
    %45 = vector.broadcast %cst_21 : f32 to vector<2x32xf32>
    %46 = arith.addf %45, %44 : vector<2x32xf32>
    %47 = arith.divf %45, %46 : vector<2x32xf32>
    %48 = vector.extract_strided_slice %31 {offsets = [0, 64], sizes = [2, 32], strides = [1, 1]} : vector<2x96xf32> to vector<2x32xf32>
    %49 = vector.extract_strided_slice %28 {offsets = [0, 64], sizes = [2, 32], strides = [1, 1]} : vector<2x192xf32> to vector<2x32xf32>
    %50 = arith.mulf %39, %49 : vector<2x32xf32>
    %51 = arith.addf %48, %50 : vector<2x32xf32>
    %52 = math.tanh %51 : vector<2x32xf32>
    %cst_22 = arith.constant 1.000000e+00 : f32
    %53 = vector.broadcast %cst_22 : f32 to vector<2x32xf32>
    %54 = arith.subf %53, %47 : vector<2x32xf32>
    %55 = arith.mulf %54, %52 : vector<2x32xf32>
    %56 = arith.mulf %47, %22 : vector<2x32xf32>
    %57 = arith.addf %55, %56 : vector<2x32xf32>
    %c0_i32 = arith.constant 0 : i32
    %58 = vector.broadcast %c0_i32 : i32 to vector<2x1xi32>
    %59 = arith.cmpi sgt, %17, %58 : vector<2x1xi32>
    %60 = vector.shape_cast %59 : vector<2x1xi1> to vector<2x1xi1>
    %61 = vector.broadcast %60 : vector<2x1xi1> to vector<2x32xi1>
    %62 = arith.select %61, %57, %22 : vector<2x32xi1>, vector<2x32xf32>
    %cst_23 = arith.constant 0.000000e+00 : f32
    %63 = vector.broadcast %cst_23 : f32 to vector<2x32xf32>
    %64 = vector.shape_cast %59 : vector<2x1xi1> to vector<2x1xi1>
    %65 = vector.broadcast %64 : vector<2x1xi1> to vector<2x32xi1>
    %66 = arith.select %65, %57, %63 : vector<2x32xi1>, vector<2x32xf32>
    %67 = vector.extract_strided_slice %21 {offsets = [7, 96], sizes = [1, 96], strides = [1, 1]} : vector<16x192xf32> to vector<1x96xf32>
    %68 = vector.extract_strided_slice %21 {offsets = [15, 96], sizes = [1, 96], strides = [1, 1]} : vector<16x192xf32> to vector<1x96xf32>
    %69 = tpu.concatenate %67, %68 in 0 : vector<1x96xf32>, vector<1x96xf32> -> vector<2x96xf32>
    %70 = vector.extract_strided_slice %69 {offsets = [0, 0], sizes = [2, 32], strides = [1, 1]} : vector<2x96xf32> to vector<2x32xf32>
    %71 = vector.extract_strided_slice %28 {offsets = [0, 96], sizes = [2, 32], strides = [1, 1]} : vector<2x192xf32> to vector<2x32xf32>
    %72 = arith.addf %70, %71 : vector<2x32xf32>
    %73 = arith.negf %72 : vector<2x32xf32>
    %74 = math.exp %73 : vector<2x32xf32>
    %cst_24 = arith.constant 1.000000e+00 : f32
    %75 = vector.broadcast %cst_24 : f32 to vector<2x32xf32>
    %76 = arith.addf %75, %74 : vector<2x32xf32>
    %77 = arith.divf %75, %76 : vector<2x32xf32>
    %78 = vector.extract_strided_slice %69 {offsets = [0, 32], sizes = [2, 32], strides = [1, 1]} : vector<2x96xf32> to vector<2x32xf32>
    %79 = vector.extract_strided_slice %28 {offsets = [0, 128], sizes = [2, 32], strides = [1, 1]} : vector<2x192xf32> to vector<2x32xf32>
    %80 = arith.addf %78, %79 : vector<2x32xf32>
    %81 = arith.negf %80 : vector<2x32xf32>
    %82 = math.exp %81 : vector<2x32xf32>
    %cst_25 = arith.constant 1.000000e+00 : f32
    %83 = vector.broadcast %cst_25 : f32 to vector<2x32xf32>
    %84 = arith.addf %83, %82 : vector<2x32xf32>
    %85 = arith.divf %83, %84 : vector<2x32xf32>
    %86 = vector.extract_strided_slice %69 {offsets = [0, 64], sizes = [2, 32], strides = [1, 1]} : vector<2x96xf32> to vector<2x32xf32>
    %87 = vector.extract_strided_slice %28 {offsets = [0, 160], sizes = [2, 32], strides = [1, 1]} : vector<2x192xf32> to vector<2x32xf32>
    %88 = arith.mulf %77, %87 : vector<2x32xf32>
    %89 = arith.addf %86, %88 : vector<2x32xf32>
    %90 = math.tanh %89 : vector<2x32xf32>
    %cst_26 = arith.constant 1.000000e+00 : f32
    %91 = vector.broadcast %cst_26 : f32 to vector<2x32xf32>
    %92 = arith.subf %91, %85 : vector<2x32xf32>
    %93 = arith.mulf %92, %90 : vector<2x32xf32>
    %94 = arith.mulf %85, %23 : vector<2x32xf32>
    %95 = arith.addf %93, %94 : vector<2x32xf32>
    %c7_i32 = arith.constant 7 : i32
    %96 = vector.broadcast %c7_i32 : i32 to vector<2x1xi32>
    %97 = arith.cmpi sgt, %17, %96 : vector<2x1xi32>
    %98 = vector.shape_cast %97 : vector<2x1xi1> to vector<2x1xi1>
    %99 = vector.broadcast %98 : vector<2x1xi1> to vector<2x32xi1>
    %100 = arith.select %99, %95, %23 : vector<2x32xi1>, vector<2x32xf32>
    %cst_27 = arith.constant 0.000000e+00 : f32
    %101 = vector.broadcast %cst_27 : f32 to vector<2x32xf32>
    %102 = vector.shape_cast %97 : vector<2x1xi1> to vector<2x1xi1>
    %103 = vector.broadcast %102 : vector<2x1xi1> to vector<2x32xi1>
    %104 = arith.select %103, %95, %101 : vector<2x32xi1>, vector<2x32xf32>
    %105 = tpu.concatenate %62, %100 in 1 : vector<2x32xf32>, vector<2x32xf32> -> vector<2x64xf32>
    %106 = arith.truncf %105 : vector<2x64xf32> to vector<2x64xbf16>
    %cst_28 = arith.constant dense<0.000000e+00> : vector<2x192xf32>
    %107 = tpu.matmul %106, %14, %cst_28 {dimension_numbers = #tpu.dot_dimension_numbers<[1], [0], [0], [1], [0, 0, 1, 1], [], []>} : vector<2x64xbf16>, vector<64x192xbf16>, vector<2x192xf32> -> vector<2x192xf32>
    %108 = vector.broadcast %16 : vector<1x192xf32> to vector<2x192xf32>
    %109 = arith.addf %107, %108 : vector<2x192xf32>
    %110 = vector.extract_strided_slice %21 {offsets = [1, 0], sizes = [1, 96], strides = [1, 1]} : vector<16x192xf32> to vector<1x96xf32>
    %111 = vector.extract_strided_slice %21 {offsets = [9, 0], sizes = [1, 96], strides = [1, 1]} : vector<16x192xf32> to vector<1x96xf32>
    %112 = tpu.concatenate %110, %111 in 0 : vector<1x96xf32>, vector<1x96xf32> -> vector<2x96xf32>
    %113 = vector.extract_strided_slice %112 {offsets = [0, 0], sizes = [2, 32], strides = [1, 1]} : vector<2x96xf32> to vector<2x32xf32>
    %114 = vector.extract_strided_slice %109 {offsets = [0, 0], sizes = [2, 32], strides = [1, 1]} : vector<2x192xf32> to vector<2x32xf32>
    %115 = arith.addf %113, %114 : vector<2x32xf32>
    %116 = arith.negf %115 : vector<2x32xf32>
    %117 = math.exp %116 : vector<2x32xf32>
    %cst_29 = arith.constant 1.000000e+00 : f32
    %118 = vector.broadcast %cst_29 : f32 to vector<2x32xf32>
    %119 = arith.addf %118, %117 : vector<2x32xf32>
    %120 = arith.divf %118, %119 : vector<2x32xf32>
    %121 = vector.extract_strided_slice %112 {offsets = [0, 32], sizes = [2, 32], strides = [1, 1]} : vector<2x96xf32> to vector<2x32xf32>
    %122 = vector.extract_strided_slice %109 {offsets = [0, 32], sizes = [2, 32], strides = [1, 1]} : vector<2x192xf32> to vector<2x32xf32>
    %123 = arith.addf %121, %122 : vector<2x32xf32>
    %124 = arith.negf %123 : vector<2x32xf32>
    %125 = math.exp %124 : vector<2x32xf32>
    %cst_30 = arith.constant 1.000000e+00 : f32
    %126 = vector.broadcast %cst_30 : f32 to vector<2x32xf32>
    %127 = arith.addf %126, %125 : vector<2x32xf32>
    %128 = arith.divf %126, %127 : vector<2x32xf32>
    %129 = vector.extract_strided_slice %112 {offsets = [0, 64], sizes = [2, 32], strides = [1, 1]} : vector<2x96xf32> to vector<2x32xf32>
    %130 = vector.extract_strided_slice %109 {offsets = [0, 64], sizes = [2, 32], strides = [1, 1]} : vector<2x192xf32> to vector<2x32xf32>
    %131 = arith.mulf %120, %130 : vector<2x32xf32>
    %132 = arith.addf %129, %131 : vector<2x32xf32>
    %133 = math.tanh %132 : vector<2x32xf32>
    %cst_31 = arith.constant 1.000000e+00 : f32
    %134 = vector.broadcast %cst_31 : f32 to vector<2x32xf32>
    %135 = arith.subf %134, %128 : vector<2x32xf32>
    %136 = arith.mulf %135, %133 : vector<2x32xf32>
    %137 = arith.mulf %128, %62 : vector<2x32xf32>
    %138 = arith.addf %136, %137 : vector<2x32xf32>
    %c1_i32 = arith.constant 1 : i32
    %139 = vector.broadcast %c1_i32 : i32 to vector<2x1xi32>
    %140 = arith.cmpi sgt, %17, %139 : vector<2x1xi32>
    %141 = vector.shape_cast %140 : vector<2x1xi1> to vector<2x1xi1>
    %142 = vector.broadcast %141 : vector<2x1xi1> to vector<2x32xi1>
    %143 = arith.select %142, %138, %62 : vector<2x32xi1>, vector<2x32xf32>
    %cst_32 = arith.constant 0.000000e+00 : f32
    %144 = vector.broadcast %cst_32 : f32 to vector<2x32xf32>
    %145 = vector.shape_cast %140 : vector<2x1xi1> to vector<2x1xi1>
    %146 = vector.broadcast %145 : vector<2x1xi1> to vector<2x32xi1>
    %147 = arith.select %146, %138, %144 : vector<2x32xi1>, vector<2x32xf32>
    %148 = vector.extract_strided_slice %21 {offsets = [6, 96], sizes = [1, 96], strides = [1, 1]} : vector<16x192xf32> to vector<1x96xf32>
    %149 = vector.extract_strided_slice %21 {offsets = [14, 96], sizes = [1, 96], strides = [1, 1]} : vector<16x192xf32> to vector<1x96xf32>
    %150 = tpu.concatenate %148, %149 in 0 : vector<1x96xf32>, vector<1x96xf32> -> vector<2x96xf32>
    %151 = vector.extract_strided_slice %150 {offsets = [0, 0], sizes = [2, 32], strides = [1, 1]} : vector<2x96xf32> to vector<2x32xf32>
    %152 = vector.extract_strided_slice %109 {offsets = [0, 96], sizes = [2, 32], strides = [1, 1]} : vector<2x192xf32> to vector<2x32xf32>
    %153 = arith.addf %151, %152 : vector<2x32xf32>
    %154 = arith.negf %153 : vector<2x32xf32>
    %155 = math.exp %154 : vector<2x32xf32>
    %cst_33 = arith.constant 1.000000e+00 : f32
    %156 = vector.broadcast %cst_33 : f32 to vector<2x32xf32>
    %157 = arith.addf %156, %155 : vector<2x32xf32>
    %158 = arith.divf %156, %157 : vector<2x32xf32>
    %159 = vector.extract_strided_slice %150 {offsets = [0, 32], sizes = [2, 32], strides = [1, 1]} : vector<2x96xf32> to vector<2x32xf32>
    %160 = vector.extract_strided_slice %109 {offsets = [0, 128], sizes = [2, 32], strides = [1, 1]} : vector<2x192xf32> to vector<2x32xf32>
    %161 = arith.addf %159, %160 : vector<2x32xf32>
    %162 = arith.negf %161 : vector<2x32xf32>
    %163 = math.exp %162 : vector<2x32xf32>
    %cst_34 = arith.constant 1.000000e+00 : f32
    %164 = vector.broadcast %cst_34 : f32 to vector<2x32xf32>
    %165 = arith.addf %164, %163 : vector<2x32xf32>
    %166 = arith.divf %164, %165 : vector<2x32xf32>
    %167 = vector.extract_strided_slice %150 {offsets = [0, 64], sizes = [2, 32], strides = [1, 1]} : vector<2x96xf32> to vector<2x32xf32>
    %168 = vector.extract_strided_slice %109 {offsets = [0, 160], sizes = [2, 32], strides = [1, 1]} : vector<2x192xf32> to vector<2x32xf32>
    %169 = arith.mulf %158, %168 : vector<2x32xf32>
    %170 = arith.addf %167, %169 : vector<2x32xf32>
    %171 = math.tanh %170 : vector<2x32xf32>
    %cst_35 = arith.constant 1.000000e+00 : f32
    %172 = vector.broadcast %cst_35 : f32 to vector<2x32xf32>
    %173 = arith.subf %172, %166 : vector<2x32xf32>
    %174 = arith.mulf %173, %171 : vector<2x32xf32>
    %175 = arith.mulf %166, %100 : vector<2x32xf32>
    %176 = arith.addf %174, %175 : vector<2x32xf32>
    %c6_i32 = arith.constant 6 : i32
    %177 = vector.broadcast %c6_i32 : i32 to vector<2x1xi32>
    %178 = arith.cmpi sgt, %17, %177 : vector<2x1xi32>
    %179 = vector.shape_cast %178 : vector<2x1xi1> to vector<2x1xi1>
    %180 = vector.broadcast %179 : vector<2x1xi1> to vector<2x32xi1>
    %181 = arith.select %180, %176, %100 : vector<2x32xi1>, vector<2x32xf32>
    %cst_36 = arith.constant 0.000000e+00 : f32
    %182 = vector.broadcast %cst_36 : f32 to vector<2x32xf32>
    %183 = vector.shape_cast %178 : vector<2x1xi1> to vector<2x1xi1>
    %184 = vector.broadcast %183 : vector<2x1xi1> to vector<2x32xi1>
    %185 = arith.select %184, %176, %182 : vector<2x32xi1>, vector<2x32xf32>
    %186 = tpu.concatenate %143, %181 in 1 : vector<2x32xf32>, vector<2x32xf32> -> vector<2x64xf32>
    %187 = arith.truncf %186 : vector<2x64xf32> to vector<2x64xbf16>
    %cst_37 = arith.constant dense<0.000000e+00> : vector<2x192xf32>
    %188 = tpu.matmul %187, %14, %cst_37 {dimension_numbers = #tpu.dot_dimension_numbers<[1], [0], [0], [1], [0, 0, 1, 1], [], []>} : vector<2x64xbf16>, vector<64x192xbf16>, vector<2x192xf32> -> vector<2x192xf32>
    %189 = vector.broadcast %16 : vector<1x192xf32> to vector<2x192xf32>
    %190 = arith.addf %188, %189 : vector<2x192xf32>
    %191 = vector.extract_strided_slice %21 {offsets = [2, 0], sizes = [1, 96], strides = [1, 1]} : vector<16x192xf32> to vector<1x96xf32>
    %192 = vector.extract_strided_slice %21 {offsets = [10, 0], sizes = [1, 96], strides = [1, 1]} : vector<16x192xf32> to vector<1x96xf32>
    %193 = tpu.concatenate %191, %192 in 0 : vector<1x96xf32>, vector<1x96xf32> -> vector<2x96xf32>
    %194 = vector.extract_strided_slice %193 {offsets = [0, 0], sizes = [2, 32], strides = [1, 1]} : vector<2x96xf32> to vector<2x32xf32>
    %195 = vector.extract_strided_slice %190 {offsets = [0, 0], sizes = [2, 32], strides = [1, 1]} : vector<2x192xf32> to vector<2x32xf32>
    %196 = arith.addf %194, %195 : vector<2x32xf32>
    %197 = arith.negf %196 : vector<2x32xf32>
    %198 = math.exp %197 : vector<2x32xf32>
    %cst_38 = arith.constant 1.000000e+00 : f32
    %199 = vector.broadcast %cst_38 : f32 to vector<2x32xf32>
    %200 = arith.addf %199, %198 : vector<2x32xf32>
    %201 = arith.divf %199, %200 : vector<2x32xf32>
    %202 = vector.extract_strided_slice %193 {offsets = [0, 32], sizes = [2, 32], strides = [1, 1]} : vector<2x96xf32> to vector<2x32xf32>
    %203 = vector.extract_strided_slice %190 {offsets = [0, 32], sizes = [2, 32], strides = [1, 1]} : vector<2x192xf32> to vector<2x32xf32>
    %204 = arith.addf %202, %203 : vector<2x32xf32>
    %205 = arith.negf %204 : vector<2x32xf32>
    %206 = math.exp %205 : vector<2x32xf32>
    %cst_39 = arith.constant 1.000000e+00 : f32
    %207 = vector.broadcast %cst_39 : f32 to vector<2x32xf32>
    %208 = arith.addf %207, %206 : vector<2x32xf32>
    %209 = arith.divf %207, %208 : vector<2x32xf32>
    %210 = vector.extract_strided_slice %193 {offsets = [0, 64], sizes = [2, 32], strides = [1, 1]} : vector<2x96xf32> to vector<2x32xf32>
    %211 = vector.extract_strided_slice %190 {offsets = [0, 64], sizes = [2, 32], strides = [1, 1]} : vector<2x192xf32> to vector<2x32xf32>
    %212 = arith.mulf %201, %211 : vector<2x32xf32>
    %213 = arith.addf %210, %212 : vector<2x32xf32>
    %214 = math.tanh %213 : vector<2x32xf32>
    %cst_40 = arith.constant 1.000000e+00 : f32
    %215 = vector.broadcast %cst_40 : f32 to vector<2x32xf32>
    %216 = arith.subf %215, %209 : vector<2x32xf32>
    %217 = arith.mulf %216, %214 : vector<2x32xf32>
    %218 = arith.mulf %209, %143 : vector<2x32xf32>
    %219 = arith.addf %217, %218 : vector<2x32xf32>
    %c2_i32 = arith.constant 2 : i32
    %220 = vector.broadcast %c2_i32 : i32 to vector<2x1xi32>
    %221 = arith.cmpi sgt, %17, %220 : vector<2x1xi32>
    %222 = vector.shape_cast %221 : vector<2x1xi1> to vector<2x1xi1>
    %223 = vector.broadcast %222 : vector<2x1xi1> to vector<2x32xi1>
    %224 = arith.select %223, %219, %143 : vector<2x32xi1>, vector<2x32xf32>
    %cst_41 = arith.constant 0.000000e+00 : f32
    %225 = vector.broadcast %cst_41 : f32 to vector<2x32xf32>
    %226 = vector.shape_cast %221 : vector<2x1xi1> to vector<2x1xi1>
    %227 = vector.broadcast %226 : vector<2x1xi1> to vector<2x32xi1>
    %228 = arith.select %227, %219, %225 : vector<2x32xi1>, vector<2x32xf32>
    %229 = vector.extract_strided_slice %21 {offsets = [5, 96], sizes = [1, 96], strides = [1, 1]} : vector<16x192xf32> to vector<1x96xf32>
    %230 = vector.extract_strided_slice %21 {offsets = [13, 96], sizes = [1, 96], strides = [1, 1]} : vector<16x192xf32> to vector<1x96xf32>
    %231 = tpu.concatenate %229, %230 in 0 : vector<1x96xf32>, vector<1x96xf32> -> vector<2x96xf32>
    %232 = vector.extract_strided_slice %231 {offsets = [0, 0], sizes = [2, 32], strides = [1, 1]} : vector<2x96xf32> to vector<2x32xf32>
    %233 = vector.extract_strided_slice %190 {offsets = [0, 96], sizes = [2, 32], strides = [1, 1]} : vector<2x192xf32> to vector<2x32xf32>
    %234 = arith.addf %232, %233 : vector<2x32xf32>
    %235 = arith.negf %234 : vector<2x32xf32>
    %236 = math.exp %235 : vector<2x32xf32>
    %cst_42 = arith.constant 1.000000e+00 : f32
    %237 = vector.broadcast %cst_42 : f32 to vector<2x32xf32>
    %238 = arith.addf %237, %236 : vector<2x32xf32>
    %239 = arith.divf %237, %238 : vector<2x32xf32>
    %240 = vector.extract_strided_slice %231 {offsets = [0, 32], sizes = [2, 32], strides = [1, 1]} : vector<2x96xf32> to vector<2x32xf32>
    %241 = vector.extract_strided_slice %190 {offsets = [0, 128], sizes = [2, 32], strides = [1, 1]} : vector<2x192xf32> to vector<2x32xf32>
    %242 = arith.addf %240, %241 : vector<2x32xf32>
    %243 = arith.negf %242 : vector<2x32xf32>
    %244 = math.exp %243 : vector<2x32xf32>
    %cst_43 = arith.constant 1.000000e+00 : f32
    %245 = vector.broadcast %cst_43 : f32 to vector<2x32xf32>
    %246 = arith.addf %245, %244 : vector<2x32xf32>
    %247 = arith.divf %245, %246 : vector<2x32xf32>
    %248 = vector.extract_strided_slice %231 {offsets = [0, 64], sizes = [2, 32], strides = [1, 1]} : vector<2x96xf32> to vector<2x32xf32>
    %249 = vector.extract_strided_slice %190 {offsets = [0, 160], sizes = [2, 32], strides = [1, 1]} : vector<2x192xf32> to vector<2x32xf32>
    %250 = arith.mulf %239, %249 : vector<2x32xf32>
    %251 = arith.addf %248, %250 : vector<2x32xf32>
    %252 = math.tanh %251 : vector<2x32xf32>
    %cst_44 = arith.constant 1.000000e+00 : f32
    %253 = vector.broadcast %cst_44 : f32 to vector<2x32xf32>
    %254 = arith.subf %253, %247 : vector<2x32xf32>
    %255 = arith.mulf %254, %252 : vector<2x32xf32>
    %256 = arith.mulf %247, %181 : vector<2x32xf32>
    %257 = arith.addf %255, %256 : vector<2x32xf32>
    %c5_i32 = arith.constant 5 : i32
    %258 = vector.broadcast %c5_i32 : i32 to vector<2x1xi32>
    %259 = arith.cmpi sgt, %17, %258 : vector<2x1xi32>
    %260 = vector.shape_cast %259 : vector<2x1xi1> to vector<2x1xi1>
    %261 = vector.broadcast %260 : vector<2x1xi1> to vector<2x32xi1>
    %262 = arith.select %261, %257, %181 : vector<2x32xi1>, vector<2x32xf32>
    %cst_45 = arith.constant 0.000000e+00 : f32
    %263 = vector.broadcast %cst_45 : f32 to vector<2x32xf32>
    %264 = vector.shape_cast %259 : vector<2x1xi1> to vector<2x1xi1>
    %265 = vector.broadcast %264 : vector<2x1xi1> to vector<2x32xi1>
    %266 = arith.select %265, %257, %263 : vector<2x32xi1>, vector<2x32xf32>
    %267 = tpu.concatenate %224, %262 in 1 : vector<2x32xf32>, vector<2x32xf32> -> vector<2x64xf32>
    %268 = arith.truncf %267 : vector<2x64xf32> to vector<2x64xbf16>
    %cst_46 = arith.constant dense<0.000000e+00> : vector<2x192xf32>
    %269 = tpu.matmul %268, %14, %cst_46 {dimension_numbers = #tpu.dot_dimension_numbers<[1], [0], [0], [1], [0, 0, 1, 1], [], []>} : vector<2x64xbf16>, vector<64x192xbf16>, vector<2x192xf32> -> vector<2x192xf32>
    %270 = vector.broadcast %16 : vector<1x192xf32> to vector<2x192xf32>
    %271 = arith.addf %269, %270 : vector<2x192xf32>
    %272 = vector.extract_strided_slice %21 {offsets = [3, 0], sizes = [1, 96], strides = [1, 1]} : vector<16x192xf32> to vector<1x96xf32>
    %273 = vector.extract_strided_slice %21 {offsets = [11, 0], sizes = [1, 96], strides = [1, 1]} : vector<16x192xf32> to vector<1x96xf32>
    %274 = tpu.concatenate %272, %273 in 0 : vector<1x96xf32>, vector<1x96xf32> -> vector<2x96xf32>
    %275 = vector.extract_strided_slice %274 {offsets = [0, 0], sizes = [2, 32], strides = [1, 1]} : vector<2x96xf32> to vector<2x32xf32>
    %276 = vector.extract_strided_slice %271 {offsets = [0, 0], sizes = [2, 32], strides = [1, 1]} : vector<2x192xf32> to vector<2x32xf32>
    %277 = arith.addf %275, %276 : vector<2x32xf32>
    %278 = arith.negf %277 : vector<2x32xf32>
    %279 = math.exp %278 : vector<2x32xf32>
    %cst_47 = arith.constant 1.000000e+00 : f32
    %280 = vector.broadcast %cst_47 : f32 to vector<2x32xf32>
    %281 = arith.addf %280, %279 : vector<2x32xf32>
    %282 = arith.divf %280, %281 : vector<2x32xf32>
    %283 = vector.extract_strided_slice %274 {offsets = [0, 32], sizes = [2, 32], strides = [1, 1]} : vector<2x96xf32> to vector<2x32xf32>
    %284 = vector.extract_strided_slice %271 {offsets = [0, 32], sizes = [2, 32], strides = [1, 1]} : vector<2x192xf32> to vector<2x32xf32>
    %285 = arith.addf %283, %284 : vector<2x32xf32>
    %286 = arith.negf %285 : vector<2x32xf32>
    %287 = math.exp %286 : vector<2x32xf32>
    %cst_48 = arith.constant 1.000000e+00 : f32
    %288 = vector.broadcast %cst_48 : f32 to vector<2x32xf32>
    %289 = arith.addf %288, %287 : vector<2x32xf32>
    %290 = arith.divf %288, %289 : vector<2x32xf32>
    %291 = vector.extract_strided_slice %274 {offsets = [0, 64], sizes = [2, 32], strides = [1, 1]} : vector<2x96xf32> to vector<2x32xf32>
    %292 = vector.extract_strided_slice %271 {offsets = [0, 64], sizes = [2, 32], strides = [1, 1]} : vector<2x192xf32> to vector<2x32xf32>
    %293 = arith.mulf %282, %292 : vector<2x32xf32>
    %294 = arith.addf %291, %293 : vector<2x32xf32>
    %295 = math.tanh %294 : vector<2x32xf32>
    %cst_49 = arith.constant 1.000000e+00 : f32
    %296 = vector.broadcast %cst_49 : f32 to vector<2x32xf32>
    %297 = arith.subf %296, %290 : vector<2x32xf32>
    %298 = arith.mulf %297, %295 : vector<2x32xf32>
    %299 = arith.mulf %290, %224 : vector<2x32xf32>
    %300 = arith.addf %298, %299 : vector<2x32xf32>
    %c3_i32 = arith.constant 3 : i32
    %301 = vector.broadcast %c3_i32 : i32 to vector<2x1xi32>
    %302 = arith.cmpi sgt, %17, %301 : vector<2x1xi32>
    %303 = vector.shape_cast %302 : vector<2x1xi1> to vector<2x1xi1>
    %304 = vector.broadcast %303 : vector<2x1xi1> to vector<2x32xi1>
    %305 = arith.select %304, %300, %224 : vector<2x32xi1>, vector<2x32xf32>
    %cst_50 = arith.constant 0.000000e+00 : f32
    %306 = vector.broadcast %cst_50 : f32 to vector<2x32xf32>
    %307 = vector.shape_cast %302 : vector<2x1xi1> to vector<2x1xi1>
    %308 = vector.broadcast %307 : vector<2x1xi1> to vector<2x32xi1>
    %309 = arith.select %308, %300, %306 : vector<2x32xi1>, vector<2x32xf32>
    %310 = vector.extract_strided_slice %21 {offsets = [4, 96], sizes = [1, 96], strides = [1, 1]} : vector<16x192xf32> to vector<1x96xf32>
    %311 = vector.extract_strided_slice %21 {offsets = [12, 96], sizes = [1, 96], strides = [1, 1]} : vector<16x192xf32> to vector<1x96xf32>
    %312 = tpu.concatenate %310, %311 in 0 : vector<1x96xf32>, vector<1x96xf32> -> vector<2x96xf32>
    %313 = vector.extract_strided_slice %312 {offsets = [0, 0], sizes = [2, 32], strides = [1, 1]} : vector<2x96xf32> to vector<2x32xf32>
    %314 = vector.extract_strided_slice %271 {offsets = [0, 96], sizes = [2, 32], strides = [1, 1]} : vector<2x192xf32> to vector<2x32xf32>
    %315 = arith.addf %313, %314 : vector<2x32xf32>
    %316 = arith.negf %315 : vector<2x32xf32>
    %317 = math.exp %316 : vector<2x32xf32>
    %cst_51 = arith.constant 1.000000e+00 : f32
    %318 = vector.broadcast %cst_51 : f32 to vector<2x32xf32>
    %319 = arith.addf %318, %317 : vector<2x32xf32>
    %320 = arith.divf %318, %319 : vector<2x32xf32>
    %321 = vector.extract_strided_slice %312 {offsets = [0, 32], sizes = [2, 32], strides = [1, 1]} : vector<2x96xf32> to vector<2x32xf32>
    %322 = vector.extract_strided_slice %271 {offsets = [0, 128], sizes = [2, 32], strides = [1, 1]} : vector<2x192xf32> to vector<2x32xf32>
    %323 = arith.addf %321, %322 : vector<2x32xf32>
    %324 = arith.negf %323 : vector<2x32xf32>
    %325 = math.exp %324 : vector<2x32xf32>
    %cst_52 = arith.constant 1.000000e+00 : f32
    %326 = vector.broadcast %cst_52 : f32 to vector<2x32xf32>
    %327 = arith.addf %326, %325 : vector<2x32xf32>
    %328 = arith.divf %326, %327 : vector<2x32xf32>
    %329 = vector.extract_strided_slice %312 {offsets = [0, 64], sizes = [2, 32], strides = [1, 1]} : vector<2x96xf32> to vector<2x32xf32>
    %330 = vector.extract_strided_slice %271 {offsets = [0, 160], sizes = [2, 32], strides = [1, 1]} : vector<2x192xf32> to vector<2x32xf32>
    %331 = arith.mulf %320, %330 : vector<2x32xf32>
    %332 = arith.addf %329, %331 : vector<2x32xf32>
    %333 = math.tanh %332 : vector<2x32xf32>
    %cst_53 = arith.constant 1.000000e+00 : f32
    %334 = vector.broadcast %cst_53 : f32 to vector<2x32xf32>
    %335 = arith.subf %334, %328 : vector<2x32xf32>
    %336 = arith.mulf %335, %333 : vector<2x32xf32>
    %337 = arith.mulf %328, %262 : vector<2x32xf32>
    %338 = arith.addf %336, %337 : vector<2x32xf32>
    %c4_i32 = arith.constant 4 : i32
    %339 = vector.broadcast %c4_i32 : i32 to vector<2x1xi32>
    %340 = arith.cmpi sgt, %17, %339 : vector<2x1xi32>
    %341 = vector.shape_cast %340 : vector<2x1xi1> to vector<2x1xi1>
    %342 = vector.broadcast %341 : vector<2x1xi1> to vector<2x32xi1>
    %343 = arith.select %342, %338, %262 : vector<2x32xi1>, vector<2x32xf32>
    %cst_54 = arith.constant 0.000000e+00 : f32
    %344 = vector.broadcast %cst_54 : f32 to vector<2x32xf32>
    %345 = vector.shape_cast %340 : vector<2x1xi1> to vector<2x1xi1>
    %346 = vector.broadcast %345 : vector<2x1xi1> to vector<2x32xi1>
    %347 = arith.select %346, %338, %344 : vector<2x32xi1>, vector<2x32xf32>
    %348 = tpu.concatenate %305, %343 in 1 : vector<2x32xf32>, vector<2x32xf32> -> vector<2x64xf32>
    %349 = arith.truncf %348 : vector<2x64xf32> to vector<2x64xbf16>
    %cst_55 = arith.constant dense<0.000000e+00> : vector<2x192xf32>
    %350 = tpu.matmul %349, %14, %cst_55 {dimension_numbers = #tpu.dot_dimension_numbers<[1], [0], [0], [1], [0, 0, 1, 1], [], []>} : vector<2x64xbf16>, vector<64x192xbf16>, vector<2x192xf32> -> vector<2x192xf32>
    %351 = vector.broadcast %16 : vector<1x192xf32> to vector<2x192xf32>
    %352 = arith.addf %350, %351 : vector<2x192xf32>
    %353 = vector.extract_strided_slice %21 {offsets = [4, 0], sizes = [1, 96], strides = [1, 1]} : vector<16x192xf32> to vector<1x96xf32>
    %354 = vector.extract_strided_slice %21 {offsets = [12, 0], sizes = [1, 96], strides = [1, 1]} : vector<16x192xf32> to vector<1x96xf32>
    %355 = tpu.concatenate %353, %354 in 0 : vector<1x96xf32>, vector<1x96xf32> -> vector<2x96xf32>
    %356 = vector.extract_strided_slice %355 {offsets = [0, 0], sizes = [2, 32], strides = [1, 1]} : vector<2x96xf32> to vector<2x32xf32>
    %357 = vector.extract_strided_slice %352 {offsets = [0, 0], sizes = [2, 32], strides = [1, 1]} : vector<2x192xf32> to vector<2x32xf32>
    %358 = arith.addf %356, %357 : vector<2x32xf32>
    %359 = arith.negf %358 : vector<2x32xf32>
    %360 = math.exp %359 : vector<2x32xf32>
    %cst_56 = arith.constant 1.000000e+00 : f32
    %361 = vector.broadcast %cst_56 : f32 to vector<2x32xf32>
    %362 = arith.addf %361, %360 : vector<2x32xf32>
    %363 = arith.divf %361, %362 : vector<2x32xf32>
    %364 = vector.extract_strided_slice %355 {offsets = [0, 32], sizes = [2, 32], strides = [1, 1]} : vector<2x96xf32> to vector<2x32xf32>
    %365 = vector.extract_strided_slice %352 {offsets = [0, 32], sizes = [2, 32], strides = [1, 1]} : vector<2x192xf32> to vector<2x32xf32>
    %366 = arith.addf %364, %365 : vector<2x32xf32>
    %367 = arith.negf %366 : vector<2x32xf32>
    %368 = math.exp %367 : vector<2x32xf32>
    %cst_57 = arith.constant 1.000000e+00 : f32
    %369 = vector.broadcast %cst_57 : f32 to vector<2x32xf32>
    %370 = arith.addf %369, %368 : vector<2x32xf32>
    %371 = arith.divf %369, %370 : vector<2x32xf32>
    %372 = vector.extract_strided_slice %355 {offsets = [0, 64], sizes = [2, 32], strides = [1, 1]} : vector<2x96xf32> to vector<2x32xf32>
    %373 = vector.extract_strided_slice %352 {offsets = [0, 64], sizes = [2, 32], strides = [1, 1]} : vector<2x192xf32> to vector<2x32xf32>
    %374 = arith.mulf %363, %373 : vector<2x32xf32>
    %375 = arith.addf %372, %374 : vector<2x32xf32>
    %376 = math.tanh %375 : vector<2x32xf32>
    %cst_58 = arith.constant 1.000000e+00 : f32
    %377 = vector.broadcast %cst_58 : f32 to vector<2x32xf32>
    %378 = arith.subf %377, %371 : vector<2x32xf32>
    %379 = arith.mulf %378, %376 : vector<2x32xf32>
    %380 = arith.mulf %371, %305 : vector<2x32xf32>
    %381 = arith.addf %379, %380 : vector<2x32xf32>
    %c4_i32_59 = arith.constant 4 : i32
    %382 = vector.broadcast %c4_i32_59 : i32 to vector<2x1xi32>
    %383 = arith.cmpi sgt, %17, %382 : vector<2x1xi32>
    %384 = vector.shape_cast %383 : vector<2x1xi1> to vector<2x1xi1>
    %385 = vector.broadcast %384 : vector<2x1xi1> to vector<2x32xi1>
    %386 = arith.select %385, %381, %305 : vector<2x32xi1>, vector<2x32xf32>
    %cst_60 = arith.constant 0.000000e+00 : f32
    %387 = vector.broadcast %cst_60 : f32 to vector<2x32xf32>
    %388 = vector.shape_cast %383 : vector<2x1xi1> to vector<2x1xi1>
    %389 = vector.broadcast %388 : vector<2x1xi1> to vector<2x32xi1>
    %390 = arith.select %389, %381, %387 : vector<2x32xi1>, vector<2x32xf32>
    %391 = vector.extract_strided_slice %21 {offsets = [3, 96], sizes = [1, 96], strides = [1, 1]} : vector<16x192xf32> to vector<1x96xf32>
    %392 = vector.extract_strided_slice %21 {offsets = [11, 96], sizes = [1, 96], strides = [1, 1]} : vector<16x192xf32> to vector<1x96xf32>
    %393 = tpu.concatenate %391, %392 in 0 : vector<1x96xf32>, vector<1x96xf32> -> vector<2x96xf32>
    %394 = vector.extract_strided_slice %393 {offsets = [0, 0], sizes = [2, 32], strides = [1, 1]} : vector<2x96xf32> to vector<2x32xf32>
    %395 = vector.extract_strided_slice %352 {offsets = [0, 96], sizes = [2, 32], strides = [1, 1]} : vector<2x192xf32> to vector<2x32xf32>
    %396 = arith.addf %394, %395 : vector<2x32xf32>
    %397 = arith.negf %396 : vector<2x32xf32>
    %398 = math.exp %397 : vector<2x32xf32>
    %cst_61 = arith.constant 1.000000e+00 : f32
    %399 = vector.broadcast %cst_61 : f32 to vector<2x32xf32>
    %400 = arith.addf %399, %398 : vector<2x32xf32>
    %401 = arith.divf %399, %400 : vector<2x32xf32>
    %402 = vector.extract_strided_slice %393 {offsets = [0, 32], sizes = [2, 32], strides = [1, 1]} : vector<2x96xf32> to vector<2x32xf32>
    %403 = vector.extract_strided_slice %352 {offsets = [0, 128], sizes = [2, 32], strides = [1, 1]} : vector<2x192xf32> to vector<2x32xf32>
    %404 = arith.addf %402, %403 : vector<2x32xf32>
    %405 = arith.negf %404 : vector<2x32xf32>
    %406 = math.exp %405 : vector<2x32xf32>
    %cst_62 = arith.constant 1.000000e+00 : f32
    %407 = vector.broadcast %cst_62 : f32 to vector<2x32xf32>
    %408 = arith.addf %407, %406 : vector<2x32xf32>
    %409 = arith.divf %407, %408 : vector<2x32xf32>
    %410 = vector.extract_strided_slice %393 {offsets = [0, 64], sizes = [2, 32], strides = [1, 1]} : vector<2x96xf32> to vector<2x32xf32>
    %411 = vector.extract_strided_slice %352 {offsets = [0, 160], sizes = [2, 32], strides = [1, 1]} : vector<2x192xf32> to vector<2x32xf32>
    %412 = arith.mulf %401, %411 : vector<2x32xf32>
    %413 = arith.addf %410, %412 : vector<2x32xf32>
    %414 = math.tanh %413 : vector<2x32xf32>
    %cst_63 = arith.constant 1.000000e+00 : f32
    %415 = vector.broadcast %cst_63 : f32 to vector<2x32xf32>
    %416 = arith.subf %415, %409 : vector<2x32xf32>
    %417 = arith.mulf %416, %414 : vector<2x32xf32>
    %418 = arith.mulf %409, %343 : vector<2x32xf32>
    %419 = arith.addf %417, %418 : vector<2x32xf32>
    %c3_i32_64 = arith.constant 3 : i32
    %420 = vector.broadcast %c3_i32_64 : i32 to vector<2x1xi32>
    %421 = arith.cmpi sgt, %17, %420 : vector<2x1xi32>
    %422 = vector.shape_cast %421 : vector<2x1xi1> to vector<2x1xi1>
    %423 = vector.broadcast %422 : vector<2x1xi1> to vector<2x32xi1>
    %424 = arith.select %423, %419, %343 : vector<2x32xi1>, vector<2x32xf32>
    %cst_65 = arith.constant 0.000000e+00 : f32
    %425 = vector.broadcast %cst_65 : f32 to vector<2x32xf32>
    %426 = vector.shape_cast %421 : vector<2x1xi1> to vector<2x1xi1>
    %427 = vector.broadcast %426 : vector<2x1xi1> to vector<2x32xi1>
    %428 = arith.select %427, %419, %425 : vector<2x32xi1>, vector<2x32xf32>
    %429 = tpu.concatenate %386, %424 in 1 : vector<2x32xf32>, vector<2x32xf32> -> vector<2x64xf32>
    %430 = arith.truncf %429 : vector<2x64xf32> to vector<2x64xbf16>
    %cst_66 = arith.constant dense<0.000000e+00> : vector<2x192xf32>
    %431 = tpu.matmul %430, %14, %cst_66 {dimension_numbers = #tpu.dot_dimension_numbers<[1], [0], [0], [1], [0, 0, 1, 1], [], []>} : vector<2x64xbf16>, vector<64x192xbf16>, vector<2x192xf32> -> vector<2x192xf32>
    %432 = vector.broadcast %16 : vector<1x192xf32> to vector<2x192xf32>
    %433 = arith.addf %431, %432 : vector<2x192xf32>
    %434 = vector.extract_strided_slice %21 {offsets = [5, 0], sizes = [1, 96], strides = [1, 1]} : vector<16x192xf32> to vector<1x96xf32>
    %435 = vector.extract_strided_slice %21 {offsets = [13, 0], sizes = [1, 96], strides = [1, 1]} : vector<16x192xf32> to vector<1x96xf32>
    %436 = tpu.concatenate %434, %435 in 0 : vector<1x96xf32>, vector<1x96xf32> -> vector<2x96xf32>
    %437 = vector.extract_strided_slice %436 {offsets = [0, 0], sizes = [2, 32], strides = [1, 1]} : vector<2x96xf32> to vector<2x32xf32>
    %438 = vector.extract_strided_slice %433 {offsets = [0, 0], sizes = [2, 32], strides = [1, 1]} : vector<2x192xf32> to vector<2x32xf32>
    %439 = arith.addf %437, %438 : vector<2x32xf32>
    %440 = arith.negf %439 : vector<2x32xf32>
    %441 = math.exp %440 : vector<2x32xf32>
    %cst_67 = arith.constant 1.000000e+00 : f32
    %442 = vector.broadcast %cst_67 : f32 to vector<2x32xf32>
    %443 = arith.addf %442, %441 : vector<2x32xf32>
    %444 = arith.divf %442, %443 : vector<2x32xf32>
    %445 = vector.extract_strided_slice %436 {offsets = [0, 32], sizes = [2, 32], strides = [1, 1]} : vector<2x96xf32> to vector<2x32xf32>
    %446 = vector.extract_strided_slice %433 {offsets = [0, 32], sizes = [2, 32], strides = [1, 1]} : vector<2x192xf32> to vector<2x32xf32>
    %447 = arith.addf %445, %446 : vector<2x32xf32>
    %448 = arith.negf %447 : vector<2x32xf32>
    %449 = math.exp %448 : vector<2x32xf32>
    %cst_68 = arith.constant 1.000000e+00 : f32
    %450 = vector.broadcast %cst_68 : f32 to vector<2x32xf32>
    %451 = arith.addf %450, %449 : vector<2x32xf32>
    %452 = arith.divf %450, %451 : vector<2x32xf32>
    %453 = vector.extract_strided_slice %436 {offsets = [0, 64], sizes = [2, 32], strides = [1, 1]} : vector<2x96xf32> to vector<2x32xf32>
    %454 = vector.extract_strided_slice %433 {offsets = [0, 64], sizes = [2, 32], strides = [1, 1]} : vector<2x192xf32> to vector<2x32xf32>
    %455 = arith.mulf %444, %454 : vector<2x32xf32>
    %456 = arith.addf %453, %455 : vector<2x32xf32>
    %457 = math.tanh %456 : vector<2x32xf32>
    %cst_69 = arith.constant 1.000000e+00 : f32
    %458 = vector.broadcast %cst_69 : f32 to vector<2x32xf32>
    %459 = arith.subf %458, %452 : vector<2x32xf32>
    %460 = arith.mulf %459, %457 : vector<2x32xf32>
    %461 = arith.mulf %452, %386 : vector<2x32xf32>
    %462 = arith.addf %460, %461 : vector<2x32xf32>
    %c5_i32_70 = arith.constant 5 : i32
    %463 = vector.broadcast %c5_i32_70 : i32 to vector<2x1xi32>
    %464 = arith.cmpi sgt, %17, %463 : vector<2x1xi32>
    %465 = vector.shape_cast %464 : vector<2x1xi1> to vector<2x1xi1>
    %466 = vector.broadcast %465 : vector<2x1xi1> to vector<2x32xi1>
    %467 = arith.select %466, %462, %386 : vector<2x32xi1>, vector<2x32xf32>
    %cst_71 = arith.constant 0.000000e+00 : f32
    %468 = vector.broadcast %cst_71 : f32 to vector<2x32xf32>
    %469 = vector.shape_cast %464 : vector<2x1xi1> to vector<2x1xi1>
    %470 = vector.broadcast %469 : vector<2x1xi1> to vector<2x32xi1>
    %471 = arith.select %470, %462, %468 : vector<2x32xi1>, vector<2x32xf32>
    %472 = vector.extract_strided_slice %21 {offsets = [2, 96], sizes = [1, 96], strides = [1, 1]} : vector<16x192xf32> to vector<1x96xf32>
    %473 = vector.extract_strided_slice %21 {offsets = [10, 96], sizes = [1, 96], strides = [1, 1]} : vector<16x192xf32> to vector<1x96xf32>
    %474 = tpu.concatenate %472, %473 in 0 : vector<1x96xf32>, vector<1x96xf32> -> vector<2x96xf32>
    %475 = vector.extract_strided_slice %474 {offsets = [0, 0], sizes = [2, 32], strides = [1, 1]} : vector<2x96xf32> to vector<2x32xf32>
    %476 = vector.extract_strided_slice %433 {offsets = [0, 96], sizes = [2, 32], strides = [1, 1]} : vector<2x192xf32> to vector<2x32xf32>
    %477 = arith.addf %475, %476 : vector<2x32xf32>
    %478 = arith.negf %477 : vector<2x32xf32>
    %479 = math.exp %478 : vector<2x32xf32>
    %cst_72 = arith.constant 1.000000e+00 : f32
    %480 = vector.broadcast %cst_72 : f32 to vector<2x32xf32>
    %481 = arith.addf %480, %479 : vector<2x32xf32>
    %482 = arith.divf %480, %481 : vector<2x32xf32>
    %483 = vector.extract_strided_slice %474 {offsets = [0, 32], sizes = [2, 32], strides = [1, 1]} : vector<2x96xf32> to vector<2x32xf32>
    %484 = vector.extract_strided_slice %433 {offsets = [0, 128], sizes = [2, 32], strides = [1, 1]} : vector<2x192xf32> to vector<2x32xf32>
    %485 = arith.addf %483, %484 : vector<2x32xf32>
    %486 = arith.negf %485 : vector<2x32xf32>
    %487 = math.exp %486 : vector<2x32xf32>
    %cst_73 = arith.constant 1.000000e+00 : f32
    %488 = vector.broadcast %cst_73 : f32 to vector<2x32xf32>
    %489 = arith.addf %488, %487 : vector<2x32xf32>
    %490 = arith.divf %488, %489 : vector<2x32xf32>
    %491 = vector.extract_strided_slice %474 {offsets = [0, 64], sizes = [2, 32], strides = [1, 1]} : vector<2x96xf32> to vector<2x32xf32>
    %492 = vector.extract_strided_slice %433 {offsets = [0, 160], sizes = [2, 32], strides = [1, 1]} : vector<2x192xf32> to vector<2x32xf32>
    %493 = arith.mulf %482, %492 : vector<2x32xf32>
    %494 = arith.addf %491, %493 : vector<2x32xf32>
    %495 = math.tanh %494 : vector<2x32xf32>
    %cst_74 = arith.constant 1.000000e+00 : f32
    %496 = vector.broadcast %cst_74 : f32 to vector<2x32xf32>
    %497 = arith.subf %496, %490 : vector<2x32xf32>
    %498 = arith.mulf %497, %495 : vector<2x32xf32>
    %499 = arith.mulf %490, %424 : vector<2x32xf32>
    %500 = arith.addf %498, %499 : vector<2x32xf32>
    %c2_i32_75 = arith.constant 2 : i32
    %501 = vector.broadcast %c2_i32_75 : i32 to vector<2x1xi32>
    %502 = arith.cmpi sgt, %17, %501 : vector<2x1xi32>
    %503 = vector.shape_cast %502 : vector<2x1xi1> to vector<2x1xi1>
    %504 = vector.broadcast %503 : vector<2x1xi1> to vector<2x32xi1>
    %505 = arith.select %504, %500, %424 : vector<2x32xi1>, vector<2x32xf32>
    %cst_76 = arith.constant 0.000000e+00 : f32
    %506 = vector.broadcast %cst_76 : f32 to vector<2x32xf32>
    %507 = vector.shape_cast %502 : vector<2x1xi1> to vector<2x1xi1>
    %508 = vector.broadcast %507 : vector<2x1xi1> to vector<2x32xi1>
    %509 = arith.select %508, %500, %506 : vector<2x32xi1>, vector<2x32xf32>
    %510 = tpu.concatenate %467, %505 in 1 : vector<2x32xf32>, vector<2x32xf32> -> vector<2x64xf32>
    %511 = arith.truncf %510 : vector<2x64xf32> to vector<2x64xbf16>
    %cst_77 = arith.constant dense<0.000000e+00> : vector<2x192xf32>
    %512 = tpu.matmul %511, %14, %cst_77 {dimension_numbers = #tpu.dot_dimension_numbers<[1], [0], [0], [1], [0, 0, 1, 1], [], []>} : vector<2x64xbf16>, vector<64x192xbf16>, vector<2x192xf32> -> vector<2x192xf32>
    %513 = vector.broadcast %16 : vector<1x192xf32> to vector<2x192xf32>
    %514 = arith.addf %512, %513 : vector<2x192xf32>
    %515 = vector.extract_strided_slice %21 {offsets = [6, 0], sizes = [1, 96], strides = [1, 1]} : vector<16x192xf32> to vector<1x96xf32>
    %516 = vector.extract_strided_slice %21 {offsets = [14, 0], sizes = [1, 96], strides = [1, 1]} : vector<16x192xf32> to vector<1x96xf32>
    %517 = tpu.concatenate %515, %516 in 0 : vector<1x96xf32>, vector<1x96xf32> -> vector<2x96xf32>
    %518 = vector.extract_strided_slice %517 {offsets = [0, 0], sizes = [2, 32], strides = [1, 1]} : vector<2x96xf32> to vector<2x32xf32>
    %519 = vector.extract_strided_slice %514 {offsets = [0, 0], sizes = [2, 32], strides = [1, 1]} : vector<2x192xf32> to vector<2x32xf32>
    %520 = arith.addf %518, %519 : vector<2x32xf32>
    %521 = arith.negf %520 : vector<2x32xf32>
    %522 = math.exp %521 : vector<2x32xf32>
    %cst_78 = arith.constant 1.000000e+00 : f32
    %523 = vector.broadcast %cst_78 : f32 to vector<2x32xf32>
    %524 = arith.addf %523, %522 : vector<2x32xf32>
    %525 = arith.divf %523, %524 : vector<2x32xf32>
    %526 = vector.extract_strided_slice %517 {offsets = [0, 32], sizes = [2, 32], strides = [1, 1]} : vector<2x96xf32> to vector<2x32xf32>
    %527 = vector.extract_strided_slice %514 {offsets = [0, 32], sizes = [2, 32], strides = [1, 1]} : vector<2x192xf32> to vector<2x32xf32>
    %528 = arith.addf %526, %527 : vector<2x32xf32>
    %529 = arith.negf %528 : vector<2x32xf32>
    %530 = math.exp %529 : vector<2x32xf32>
    %cst_79 = arith.constant 1.000000e+00 : f32
    %531 = vector.broadcast %cst_79 : f32 to vector<2x32xf32>
    %532 = arith.addf %531, %530 : vector<2x32xf32>
    %533 = arith.divf %531, %532 : vector<2x32xf32>
    %534 = vector.extract_strided_slice %517 {offsets = [0, 64], sizes = [2, 32], strides = [1, 1]} : vector<2x96xf32> to vector<2x32xf32>
    %535 = vector.extract_strided_slice %514 {offsets = [0, 64], sizes = [2, 32], strides = [1, 1]} : vector<2x192xf32> to vector<2x32xf32>
    %536 = arith.mulf %525, %535 : vector<2x32xf32>
    %537 = arith.addf %534, %536 : vector<2x32xf32>
    %538 = math.tanh %537 : vector<2x32xf32>
    %cst_80 = arith.constant 1.000000e+00 : f32
    %539 = vector.broadcast %cst_80 : f32 to vector<2x32xf32>
    %540 = arith.subf %539, %533 : vector<2x32xf32>
    %541 = arith.mulf %540, %538 : vector<2x32xf32>
    %542 = arith.mulf %533, %467 : vector<2x32xf32>
    %543 = arith.addf %541, %542 : vector<2x32xf32>
    %c6_i32_81 = arith.constant 6 : i32
    %544 = vector.broadcast %c6_i32_81 : i32 to vector<2x1xi32>
    %545 = arith.cmpi sgt, %17, %544 : vector<2x1xi32>
    %546 = vector.shape_cast %545 : vector<2x1xi1> to vector<2x1xi1>
    %547 = vector.broadcast %546 : vector<2x1xi1> to vector<2x32xi1>
    %548 = arith.select %547, %543, %467 : vector<2x32xi1>, vector<2x32xf32>
    %cst_82 = arith.constant 0.000000e+00 : f32
    %549 = vector.broadcast %cst_82 : f32 to vector<2x32xf32>
    %550 = vector.shape_cast %545 : vector<2x1xi1> to vector<2x1xi1>
    %551 = vector.broadcast %550 : vector<2x1xi1> to vector<2x32xi1>
    %552 = arith.select %551, %543, %549 : vector<2x32xi1>, vector<2x32xf32>
    %553 = vector.extract_strided_slice %21 {offsets = [1, 96], sizes = [1, 96], strides = [1, 1]} : vector<16x192xf32> to vector<1x96xf32>
    %554 = vector.extract_strided_slice %21 {offsets = [9, 96], sizes = [1, 96], strides = [1, 1]} : vector<16x192xf32> to vector<1x96xf32>
    %555 = tpu.concatenate %553, %554 in 0 : vector<1x96xf32>, vector<1x96xf32> -> vector<2x96xf32>
    %556 = vector.extract_strided_slice %555 {offsets = [0, 0], sizes = [2, 32], strides = [1, 1]} : vector<2x96xf32> to vector<2x32xf32>
    %557 = vector.extract_strided_slice %514 {offsets = [0, 96], sizes = [2, 32], strides = [1, 1]} : vector<2x192xf32> to vector<2x32xf32>
    %558 = arith.addf %556, %557 : vector<2x32xf32>
    %559 = arith.negf %558 : vector<2x32xf32>
    %560 = math.exp %559 : vector<2x32xf32>
    %cst_83 = arith.constant 1.000000e+00 : f32
    %561 = vector.broadcast %cst_83 : f32 to vector<2x32xf32>
    %562 = arith.addf %561, %560 : vector<2x32xf32>
    %563 = arith.divf %561, %562 : vector<2x32xf32>
    %564 = vector.extract_strided_slice %555 {offsets = [0, 32], sizes = [2, 32], strides = [1, 1]} : vector<2x96xf32> to vector<2x32xf32>
    %565 = vector.extract_strided_slice %514 {offsets = [0, 128], sizes = [2, 32], strides = [1, 1]} : vector<2x192xf32> to vector<2x32xf32>
    %566 = arith.addf %564, %565 : vector<2x32xf32>
    %567 = arith.negf %566 : vector<2x32xf32>
    %568 = math.exp %567 : vector<2x32xf32>
    %cst_84 = arith.constant 1.000000e+00 : f32
    %569 = vector.broadcast %cst_84 : f32 to vector<2x32xf32>
    %570 = arith.addf %569, %568 : vector<2x32xf32>
    %571 = arith.divf %569, %570 : vector<2x32xf32>
    %572 = vector.extract_strided_slice %555 {offsets = [0, 64], sizes = [2, 32], strides = [1, 1]} : vector<2x96xf32> to vector<2x32xf32>
    %573 = vector.extract_strided_slice %514 {offsets = [0, 160], sizes = [2, 32], strides = [1, 1]} : vector<2x192xf32> to vector<2x32xf32>
    %574 = arith.mulf %563, %573 : vector<2x32xf32>
    %575 = arith.addf %572, %574 : vector<2x32xf32>
    %576 = math.tanh %575 : vector<2x32xf32>
    %cst_85 = arith.constant 1.000000e+00 : f32
    %577 = vector.broadcast %cst_85 : f32 to vector<2x32xf32>
    %578 = arith.subf %577, %571 : vector<2x32xf32>
    %579 = arith.mulf %578, %576 : vector<2x32xf32>
    %580 = arith.mulf %571, %505 : vector<2x32xf32>
    %581 = arith.addf %579, %580 : vector<2x32xf32>
    %c1_i32_86 = arith.constant 1 : i32
    %582 = vector.broadcast %c1_i32_86 : i32 to vector<2x1xi32>
    %583 = arith.cmpi sgt, %17, %582 : vector<2x1xi32>
    %584 = vector.shape_cast %583 : vector<2x1xi1> to vector<2x1xi1>
    %585 = vector.broadcast %584 : vector<2x1xi1> to vector<2x32xi1>
    %586 = arith.select %585, %581, %505 : vector<2x32xi1>, vector<2x32xf32>
    %cst_87 = arith.constant 0.000000e+00 : f32
    %587 = vector.broadcast %cst_87 : f32 to vector<2x32xf32>
    %588 = vector.shape_cast %583 : vector<2x1xi1> to vector<2x1xi1>
    %589 = vector.broadcast %588 : vector<2x1xi1> to vector<2x32xi1>
    %590 = arith.select %589, %581, %587 : vector<2x32xi1>, vector<2x32xf32>
    %591 = tpu.concatenate %548, %586 in 1 : vector<2x32xf32>, vector<2x32xf32> -> vector<2x64xf32>
    %592 = arith.truncf %591 : vector<2x64xf32> to vector<2x64xbf16>
    %cst_88 = arith.constant dense<0.000000e+00> : vector<2x192xf32>
    %593 = tpu.matmul %592, %14, %cst_88 {dimension_numbers = #tpu.dot_dimension_numbers<[1], [0], [0], [1], [0, 0, 1, 1], [], []>} : vector<2x64xbf16>, vector<64x192xbf16>, vector<2x192xf32> -> vector<2x192xf32>
    %594 = vector.broadcast %16 : vector<1x192xf32> to vector<2x192xf32>
    %595 = arith.addf %593, %594 : vector<2x192xf32>
    %596 = vector.extract_strided_slice %21 {offsets = [7, 0], sizes = [1, 96], strides = [1, 1]} : vector<16x192xf32> to vector<1x96xf32>
    %597 = vector.extract_strided_slice %21 {offsets = [15, 0], sizes = [1, 96], strides = [1, 1]} : vector<16x192xf32> to vector<1x96xf32>
    %598 = tpu.concatenate %596, %597 in 0 : vector<1x96xf32>, vector<1x96xf32> -> vector<2x96xf32>
    %599 = vector.extract_strided_slice %598 {offsets = [0, 0], sizes = [2, 32], strides = [1, 1]} : vector<2x96xf32> to vector<2x32xf32>
    %600 = vector.extract_strided_slice %595 {offsets = [0, 0], sizes = [2, 32], strides = [1, 1]} : vector<2x192xf32> to vector<2x32xf32>
    %601 = arith.addf %599, %600 : vector<2x32xf32>
    %602 = arith.negf %601 : vector<2x32xf32>
    %603 = math.exp %602 : vector<2x32xf32>
    %cst_89 = arith.constant 1.000000e+00 : f32
    %604 = vector.broadcast %cst_89 : f32 to vector<2x32xf32>
    %605 = arith.addf %604, %603 : vector<2x32xf32>
    %606 = arith.divf %604, %605 : vector<2x32xf32>
    %607 = vector.extract_strided_slice %598 {offsets = [0, 32], sizes = [2, 32], strides = [1, 1]} : vector<2x96xf32> to vector<2x32xf32>
    %608 = vector.extract_strided_slice %595 {offsets = [0, 32], sizes = [2, 32], strides = [1, 1]} : vector<2x192xf32> to vector<2x32xf32>
    %609 = arith.addf %607, %608 : vector<2x32xf32>
    %610 = arith.negf %609 : vector<2x32xf32>
    %611 = math.exp %610 : vector<2x32xf32>
    %cst_90 = arith.constant 1.000000e+00 : f32
    %612 = vector.broadcast %cst_90 : f32 to vector<2x32xf32>
    %613 = arith.addf %612, %611 : vector<2x32xf32>
    %614 = arith.divf %612, %613 : vector<2x32xf32>
    %615 = vector.extract_strided_slice %598 {offsets = [0, 64], sizes = [2, 32], strides = [1, 1]} : vector<2x96xf32> to vector<2x32xf32>
    %616 = vector.extract_strided_slice %595 {offsets = [0, 64], sizes = [2, 32], strides = [1, 1]} : vector<2x192xf32> to vector<2x32xf32>
    %617 = arith.mulf %606, %616 : vector<2x32xf32>
    %618 = arith.addf %615, %617 : vector<2x32xf32>
    %619 = math.tanh %618 : vector<2x32xf32>
    %cst_91 = arith.constant 1.000000e+00 : f32
    %620 = vector.broadcast %cst_91 : f32 to vector<2x32xf32>
    %621 = arith.subf %620, %614 : vector<2x32xf32>
    %622 = arith.mulf %621, %619 : vector<2x32xf32>
    %623 = arith.mulf %614, %548 : vector<2x32xf32>
    %624 = arith.addf %622, %623 : vector<2x32xf32>
    %c7_i32_92 = arith.constant 7 : i32
    %625 = vector.broadcast %c7_i32_92 : i32 to vector<2x1xi32>
    %626 = arith.cmpi sgt, %17, %625 : vector<2x1xi32>
    %627 = vector.shape_cast %626 : vector<2x1xi1> to vector<2x1xi1>
    %628 = vector.broadcast %627 : vector<2x1xi1> to vector<2x32xi1>
    %629 = arith.select %628, %624, %548 : vector<2x32xi1>, vector<2x32xf32>
    %cst_93 = arith.constant 0.000000e+00 : f32
    %630 = vector.broadcast %cst_93 : f32 to vector<2x32xf32>
    %631 = vector.shape_cast %626 : vector<2x1xi1> to vector<2x1xi1>
    %632 = vector.broadcast %631 : vector<2x1xi1> to vector<2x32xi1>
    %633 = arith.select %632, %624, %630 : vector<2x32xi1>, vector<2x32xf32>
    %634 = vector.extract_strided_slice %21 {offsets = [0, 96], sizes = [1, 96], strides = [1, 1]} : vector<16x192xf32> to vector<1x96xf32>
    %635 = vector.extract_strided_slice %21 {offsets = [8, 96], sizes = [1, 96], strides = [1, 1]} : vector<16x192xf32> to vector<1x96xf32>
    %636 = tpu.concatenate %634, %635 in 0 : vector<1x96xf32>, vector<1x96xf32> -> vector<2x96xf32>
    %637 = vector.extract_strided_slice %636 {offsets = [0, 0], sizes = [2, 32], strides = [1, 1]} : vector<2x96xf32> to vector<2x32xf32>
    %638 = vector.extract_strided_slice %595 {offsets = [0, 96], sizes = [2, 32], strides = [1, 1]} : vector<2x192xf32> to vector<2x32xf32>
    %639 = arith.addf %637, %638 : vector<2x32xf32>
    %640 = arith.negf %639 : vector<2x32xf32>
    %641 = math.exp %640 : vector<2x32xf32>
    %cst_94 = arith.constant 1.000000e+00 : f32
    %642 = vector.broadcast %cst_94 : f32 to vector<2x32xf32>
    %643 = arith.addf %642, %641 : vector<2x32xf32>
    %644 = arith.divf %642, %643 : vector<2x32xf32>
    %645 = vector.extract_strided_slice %636 {offsets = [0, 32], sizes = [2, 32], strides = [1, 1]} : vector<2x96xf32> to vector<2x32xf32>
    %646 = vector.extract_strided_slice %595 {offsets = [0, 128], sizes = [2, 32], strides = [1, 1]} : vector<2x192xf32> to vector<2x32xf32>
    %647 = arith.addf %645, %646 : vector<2x32xf32>
    %648 = arith.negf %647 : vector<2x32xf32>
    %649 = math.exp %648 : vector<2x32xf32>
    %cst_95 = arith.constant 1.000000e+00 : f32
    %650 = vector.broadcast %cst_95 : f32 to vector<2x32xf32>
    %651 = arith.addf %650, %649 : vector<2x32xf32>
    %652 = arith.divf %650, %651 : vector<2x32xf32>
    %653 = vector.extract_strided_slice %636 {offsets = [0, 64], sizes = [2, 32], strides = [1, 1]} : vector<2x96xf32> to vector<2x32xf32>
    %654 = vector.extract_strided_slice %595 {offsets = [0, 160], sizes = [2, 32], strides = [1, 1]} : vector<2x192xf32> to vector<2x32xf32>
    %655 = arith.mulf %644, %654 : vector<2x32xf32>
    %656 = arith.addf %653, %655 : vector<2x32xf32>
    %657 = math.tanh %656 : vector<2x32xf32>
    %cst_96 = arith.constant 1.000000e+00 : f32
    %658 = vector.broadcast %cst_96 : f32 to vector<2x32xf32>
    %659 = arith.subf %658, %652 : vector<2x32xf32>
    %660 = arith.mulf %659, %657 : vector<2x32xf32>
    %661 = arith.mulf %652, %586 : vector<2x32xf32>
    %662 = arith.addf %660, %661 : vector<2x32xf32>
    %c0_i32_97 = arith.constant 0 : i32
    %663 = vector.broadcast %c0_i32_97 : i32 to vector<2x1xi32>
    %664 = arith.cmpi sgt, %17, %663 : vector<2x1xi32>
    %665 = vector.shape_cast %664 : vector<2x1xi1> to vector<2x1xi1>
    %666 = vector.broadcast %665 : vector<2x1xi1> to vector<2x32xi1>
    %667 = arith.select %666, %662, %586 : vector<2x32xi1>, vector<2x32xf32>
    %cst_98 = arith.constant 0.000000e+00 : f32
    %668 = vector.broadcast %cst_98 : f32 to vector<2x32xf32>
    %669 = vector.shape_cast %664 : vector<2x1xi1> to vector<2x1xi1>
    %670 = vector.broadcast %669 : vector<2x1xi1> to vector<2x32xi1>
    %671 = arith.select %670, %662, %668 : vector<2x32xi1>, vector<2x32xf32>
    %672 = vector.extract_strided_slice %66 {offsets = [0, 0], sizes = [1, 32], strides = [1, 1]} : vector<2x32xf32> to vector<1x32xf32>
    %673 = vector.extract_strided_slice %147 {offsets = [0, 0], sizes = [1, 32], strides = [1, 1]} : vector<2x32xf32> to vector<1x32xf32>
    %674 = vector.extract_strided_slice %228 {offsets = [0, 0], sizes = [1, 32], strides = [1, 1]} : vector<2x32xf32> to vector<1x32xf32>
    %675 = vector.extract_strided_slice %309 {offsets = [0, 0], sizes = [1, 32], strides = [1, 1]} : vector<2x32xf32> to vector<1x32xf32>
    %676 = vector.extract_strided_slice %390 {offsets = [0, 0], sizes = [1, 32], strides = [1, 1]} : vector<2x32xf32> to vector<1x32xf32>
    %677 = vector.extract_strided_slice %471 {offsets = [0, 0], sizes = [1, 32], strides = [1, 1]} : vector<2x32xf32> to vector<1x32xf32>
    %678 = vector.extract_strided_slice %552 {offsets = [0, 0], sizes = [1, 32], strides = [1, 1]} : vector<2x32xf32> to vector<1x32xf32>
    %679 = vector.extract_strided_slice %633 {offsets = [0, 0], sizes = [1, 32], strides = [1, 1]} : vector<2x32xf32> to vector<1x32xf32>
    %680 = tpu.concatenate %672, %673, %674, %675, %676, %677, %678, %679 in 0 : vector<1x32xf32>, vector<1x32xf32>, vector<1x32xf32>, vector<1x32xf32>, vector<1x32xf32>, vector<1x32xf32>, vector<1x32xf32>, vector<1x32xf32> -> vector<8x32xf32>
    %681 = vector.extract_strided_slice %66 {offsets = [1, 0], sizes = [1, 32], strides = [1, 1]} : vector<2x32xf32> to vector<1x32xf32>
    %682 = vector.extract_strided_slice %147 {offsets = [1, 0], sizes = [1, 32], strides = [1, 1]} : vector<2x32xf32> to vector<1x32xf32>
    %683 = vector.extract_strided_slice %228 {offsets = [1, 0], sizes = [1, 32], strides = [1, 1]} : vector<2x32xf32> to vector<1x32xf32>
    %684 = vector.extract_strided_slice %309 {offsets = [1, 0], sizes = [1, 32], strides = [1, 1]} : vector<2x32xf32> to vector<1x32xf32>
    %685 = vector.extract_strided_slice %390 {offsets = [1, 0], sizes = [1, 32], strides = [1, 1]} : vector<2x32xf32> to vector<1x32xf32>
    %686 = vector.extract_strided_slice %471 {offsets = [1, 0], sizes = [1, 32], strides = [1, 1]} : vector<2x32xf32> to vector<1x32xf32>
    %687 = vector.extract_strided_slice %552 {offsets = [1, 0], sizes = [1, 32], strides = [1, 1]} : vector<2x32xf32> to vector<1x32xf32>
    %688 = vector.extract_strided_slice %633 {offsets = [1, 0], sizes = [1, 32], strides = [1, 1]} : vector<2x32xf32> to vector<1x32xf32>
    %689 = tpu.concatenate %681, %682, %683, %684, %685, %686, %687, %688 in 0 : vector<1x32xf32>, vector<1x32xf32>, vector<1x32xf32>, vector<1x32xf32>, vector<1x32xf32>, vector<1x32xf32>, vector<1x32xf32>, vector<1x32xf32> -> vector<8x32xf32>
    %690 = tpu.concatenate %680, %689 in 0 : vector<8x32xf32>, vector<8x32xf32> -> vector<16x32xf32>
    %691 = vector.extract_strided_slice %671 {offsets = [0, 0], sizes = [1, 32], strides = [1, 1]} : vector<2x32xf32> to vector<1x32xf32>
    %692 = vector.extract_strided_slice %590 {offsets = [0, 0], sizes = [1, 32], strides = [1, 1]} : vector<2x32xf32> to vector<1x32xf32>
    %693 = vector.extract_strided_slice %509 {offsets = [0, 0], sizes = [1, 32], strides = [1, 1]} : vector<2x32xf32> to vector<1x32xf32>
    %694 = vector.extract_strided_slice %428 {offsets = [0, 0], sizes = [1, 32], strides = [1, 1]} : vector<2x32xf32> to vector<1x32xf32>
    %695 = vector.extract_strided_slice %347 {offsets = [0, 0], sizes = [1, 32], strides = [1, 1]} : vector<2x32xf32> to vector<1x32xf32>
    %696 = vector.extract_strided_slice %266 {offsets = [0, 0], sizes = [1, 32], strides = [1, 1]} : vector<2x32xf32> to vector<1x32xf32>
    %697 = vector.extract_strided_slice %185 {offsets = [0, 0], sizes = [1, 32], strides = [1, 1]} : vector<2x32xf32> to vector<1x32xf32>
    %698 = vector.extract_strided_slice %104 {offsets = [0, 0], sizes = [1, 32], strides = [1, 1]} : vector<2x32xf32> to vector<1x32xf32>
    %699 = tpu.concatenate %691, %692, %693, %694, %695, %696, %697, %698 in 0 : vector<1x32xf32>, vector<1x32xf32>, vector<1x32xf32>, vector<1x32xf32>, vector<1x32xf32>, vector<1x32xf32>, vector<1x32xf32>, vector<1x32xf32> -> vector<8x32xf32>
    %700 = vector.extract_strided_slice %671 {offsets = [1, 0], sizes = [1, 32], strides = [1, 1]} : vector<2x32xf32> to vector<1x32xf32>
    %701 = vector.extract_strided_slice %590 {offsets = [1, 0], sizes = [1, 32], strides = [1, 1]} : vector<2x32xf32> to vector<1x32xf32>
    %702 = vector.extract_strided_slice %509 {offsets = [1, 0], sizes = [1, 32], strides = [1, 1]} : vector<2x32xf32> to vector<1x32xf32>
    %703 = vector.extract_strided_slice %428 {offsets = [1, 0], sizes = [1, 32], strides = [1, 1]} : vector<2x32xf32> to vector<1x32xf32>
    %704 = vector.extract_strided_slice %347 {offsets = [1, 0], sizes = [1, 32], strides = [1, 1]} : vector<2x32xf32> to vector<1x32xf32>
    %705 = vector.extract_strided_slice %266 {offsets = [1, 0], sizes = [1, 32], strides = [1, 1]} : vector<2x32xf32> to vector<1x32xf32>
    %706 = vector.extract_strided_slice %185 {offsets = [1, 0], sizes = [1, 32], strides = [1, 1]} : vector<2x32xf32> to vector<1x32xf32>
    %707 = vector.extract_strided_slice %104 {offsets = [1, 0], sizes = [1, 32], strides = [1, 1]} : vector<2x32xf32> to vector<1x32xf32>
    %708 = tpu.concatenate %700, %701, %702, %703, %704, %705, %706, %707 in 0 : vector<1x32xf32>, vector<1x32xf32>, vector<1x32xf32>, vector<1x32xf32>, vector<1x32xf32>, vector<1x32xf32>, vector<1x32xf32>, vector<1x32xf32> -> vector<8x32xf32>
    %709 = tpu.concatenate %699, %708 in 0 : vector<8x32xf32>, vector<8x32xf32> -> vector<16x32xf32>
    %710 = vector.extract_strided_slice %629 {offsets = [0, 0], sizes = [1, 32], strides = [1, 1]} : vector<2x32xf32> to vector<1x32xf32>
    %711 = vector.extract_strided_slice %629 {offsets = [1, 0], sizes = [1, 32], strides = [1, 1]} : vector<2x32xf32> to vector<1x32xf32>
    %712 = tpu.concatenate %710, %711 in 1 : vector<1x32xf32>, vector<1x32xf32> -> vector<1x64xf32>
    %713 = vector.extract_strided_slice %667 {offsets = [0, 0], sizes = [1, 32], strides = [1, 1]} : vector<2x32xf32> to vector<1x32xf32>
    %714 = vector.extract_strided_slice %667 {offsets = [1, 0], sizes = [1, 32], strides = [1, 1]} : vector<2x32xf32> to vector<1x32xf32>
    %715 = tpu.concatenate %713, %714 in 1 : vector<1x32xf32>, vector<1x32xf32> -> vector<1x64xf32>
    %716 = tpu.concatenate %712, %715 in 0 : vector<1x64xf32>, vector<1x64xf32> -> vector<2x64xf32>
    %c0_99 = arith.constant 0 : index
    %c0_100 = arith.constant 0 : index
    %717 = vector.load %arg4[%c0_99, %c0_100] : memref<16x16xf32, #tpu.memory_space<vmem>>, vector<16x16xf32>
    %c0_101 = arith.constant 0 : index
    %c0_102 = arith.constant 0 : index
    %718 = vector.load %arg5[%c0_101, %c0_102] : memref<16x16xf32, #tpu.memory_space<vmem>>, vector<16x16xf32>
    %719 = arith.truncf %717 : vector<16x16xf32> to vector<16x16xbf16>
    %720 = arith.truncf %690 : vector<16x32xf32> to vector<16x32xbf16>
    %cst_103 = arith.constant dense<0.000000e+00> : vector<16x32xf32>
    %721 = tpu.matmul %719, %720, %cst_103 {dimension_numbers = #tpu.dot_dimension_numbers<[1], [0], [0], [1], [0, 0, 1, 1], [], []>} : vector<16x16xbf16>, vector<16x32xbf16>, vector<16x32xf32> -> vector<16x32xf32>
    %722 = arith.truncf %718 : vector<16x16xf32> to vector<16x16xbf16>
    %723 = arith.truncf %709 : vector<16x32xf32> to vector<16x32xbf16>
    %cst_104 = arith.constant dense<0.000000e+00> : vector<16x32xf32>
    %724 = tpu.matmul %722, %723, %cst_104 {dimension_numbers = #tpu.dot_dimension_numbers<[1], [0], [0], [1], [0, 0, 1, 1], [], []>} : vector<16x16xbf16>, vector<16x32xbf16>, vector<16x32xf32> -> vector<16x32xf32>
    %c0_105 = arith.constant 0 : index
    %c0_106 = arith.constant 0 : index
    %725 = vector.load %arg10[%c0_105, %c0_106] : memref<128x128xbf16, #tpu.memory_space<vmem>>, vector<128x128xbf16>
    %c0_107 = arith.constant 0 : index
    %c0_108 = arith.constant 0 : index
    %726 = vector.load %arg11[%c0_107, %c0_108] : memref<1x128xf32, #tpu.memory_space<vmem>>, vector<1x128xf32>
    %c0_109 = arith.constant 0 : index
    %c0_110 = arith.constant 0 : index
    %727 = vector.load %arg12[%c0_109, %c0_110] : memref<128x32xbf16, #tpu.memory_space<vmem>>, vector<128x32xbf16>
    %c0_111 = arith.constant 0 : index
    %c0_112 = arith.constant 0 : index
    %728 = vector.load %arg13[%c0_111, %c0_112] : memref<1x32xf32, #tpu.memory_space<vmem>>, vector<1x32xf32>
    %c0_113 = arith.constant 0 : index
    %c0_114 = arith.constant 0 : index
    %729 = vector.load %arg14[%c0_113, %c0_114] : memref<1x32xf32, #tpu.memory_space<vmem>>, vector<1x32xf32>
    %c0_115 = arith.constant 0 : index
    %c0_116 = arith.constant 0 : index
    %730 = vector.load %arg15[%c0_115, %c0_116] : memref<1x1xf32, #tpu.memory_space<vmem>>, vector<1x1xf32>
    %731 = arith.truncf %690 : vector<16x32xf32> to vector<16x32xbf16>
    %732 = vector.extract_strided_slice %725 {offsets = [64, 0], sizes = [32, 128], strides = [1, 1]} : vector<128x128xbf16> to vector<32x128xbf16>
    %cst_117 = arith.constant dense<0.000000e+00> : vector<16x128xf32>
    %733 = tpu.matmul %731, %732, %cst_117 {dimension_numbers = #tpu.dot_dimension_numbers<[1], [0], [0], [1], [0, 0, 1, 1], [], []>} : vector<16x32xbf16>, vector<32x128xbf16>, vector<16x128xf32> -> vector<16x128xf32>
    %734 = arith.truncf %709 : vector<16x32xf32> to vector<16x32xbf16>
    %735 = vector.extract_strided_slice %725 {offsets = [96, 0], sizes = [32, 128], strides = [1, 1]} : vector<128x128xbf16> to vector<32x128xbf16>
    %cst_118 = arith.constant dense<0.000000e+00> : vector<16x128xf32>
    %736 = tpu.matmul %734, %735, %cst_118 {dimension_numbers = #tpu.dot_dimension_numbers<[1], [0], [0], [1], [0, 0, 1, 1], [], []>} : vector<16x32xbf16>, vector<32x128xbf16>, vector<16x128xf32> -> vector<16x128xf32>
    %737 = arith.addf %733, %736 : vector<16x128xf32>
    %738 = arith.truncf %716 : vector<2x64xf32> to vector<2x64xbf16>
    %739 = vector.extract_strided_slice %725 {offsets = [0, 0], sizes = [64, 128], strides = [1, 1]} : vector<128x128xbf16> to vector<64x128xbf16>
    %cst_119 = arith.constant dense<0.000000e+00> : vector<2x128xf32>
    %740 = tpu.matmul %738, %739, %cst_119 {dimension_numbers = #tpu.dot_dimension_numbers<[1], [0], [0], [1], [0, 0, 1, 1], [], []>} : vector<2x64xbf16>, vector<64x128xbf16>, vector<2x128xf32> -> vector<2x128xf32>
    %741 = vector.extract_strided_slice %740 {offsets = [0, 0], sizes = [1, 128], strides = [1, 1]} : vector<2x128xf32> to vector<1x128xf32>
    %742 = vector.shape_cast %741 : vector<1x128xf32> to vector<1x128xf32>
    %743 = vector.broadcast %742 : vector<1x128xf32> to vector<8x128xf32>
    %744 = vector.extract_strided_slice %740 {offsets = [1, 0], sizes = [1, 128], strides = [1, 1]} : vector<2x128xf32> to vector<1x128xf32>
    %745 = vector.shape_cast %744 : vector<1x128xf32> to vector<1x128xf32>
    %746 = vector.broadcast %745 : vector<1x128xf32> to vector<8x128xf32>
    %747 = tpu.concatenate %743, %746 in 0 : vector<8x128xf32>, vector<8x128xf32> -> vector<16x128xf32>
    %748 = arith.truncf %721 : vector<16x32xf32> to vector<16x32xbf16>
    %749 = vector.extract_strided_slice %725 {offsets = [0, 0], sizes = [32, 128], strides = [1, 1]} : vector<128x128xbf16> to vector<32x128xbf16>
    %cst_120 = arith.constant dense<0.000000e+00> : vector<16x128xf32>
    %750 = tpu.matmul %748, %749, %cst_120 {dimension_numbers = #tpu.dot_dimension_numbers<[1], [0], [0], [1], [0, 0, 1, 1], [], []>} : vector<16x32xbf16>, vector<32x128xbf16>, vector<16x128xf32> -> vector<16x128xf32>
    %751 = arith.truncf %724 : vector<16x32xf32> to vector<16x32xbf16>
    %752 = vector.extract_strided_slice %725 {offsets = [32, 0], sizes = [32, 128], strides = [1, 1]} : vector<128x128xbf16> to vector<32x128xbf16>
    %cst_121 = arith.constant dense<0.000000e+00> : vector<16x128xf32>
    %753 = tpu.matmul %751, %752, %cst_121 {dimension_numbers = #tpu.dot_dimension_numbers<[1], [0], [0], [1], [0, 0, 1, 1], [], []>} : vector<16x32xbf16>, vector<32x128xbf16>, vector<16x128xf32> -> vector<16x128xf32>
    %754 = arith.addf %750, %753 : vector<16x128xf32>
    %755 = arith.addf %747, %737 : vector<16x128xf32>
    %756 = math.tanh %755 : vector<16x128xf32>
    %757 = vector.broadcast %726 : vector<1x128xf32> to vector<16x128xf32>
    %758 = arith.mulf %756, %757 : vector<16x128xf32>
    %cst_122 = arith.constant dense<0.000000e+00> : vector<16xf32>
    %759 = vector.multi_reduction <add>, %758, %cst_122 [1] : vector<16x128xf32> to vector<16xf32>
    %760 = vector.shape_cast %759 : vector<16xf32> to vector<16x1xf32>
    %761 = arith.addf %754, %737 : vector<16x128xf32>
    %762 = math.tanh %761 : vector<16x128xf32>
    %763 = vector.broadcast %726 : vector<1x128xf32> to vector<16x128xf32>
    %764 = arith.mulf %762, %763 : vector<16x128xf32>
    %cst_123 = arith.constant dense<0.000000e+00> : vector<16xf32>
    %765 = vector.multi_reduction <add>, %764, %cst_123 [1] : vector<16x128xf32> to vector<16xf32>
    %766 = vector.shape_cast %765 : vector<16xf32> to vector<16x1xf32>
    %767 = vector.extract_strided_slice %760 {offsets = [0, 0], sizes = [8, 1], strides = [1, 1]} : vector<16x1xf32> to vector<8x1xf32>
    %cst_124 = arith.constant dense<0xFF800000> : vector<1xf32>
    %768 = vector.multi_reduction <maximumf>, %767, %cst_124 [0] : vector<8x1xf32> to vector<1xf32>
    %769 = vector.shape_cast %768 : vector<1xf32> to vector<1x1xf32>
    %770 = vector.broadcast %769 : vector<1x1xf32> to vector<8x1xf32>
    %771 = arith.subf %767, %770 : vector<8x1xf32>
    %772 = math.exp %771 : vector<8x1xf32>
    %cst_125 = arith.constant dense<0.000000e+00> : vector<1xf32>
    %773 = vector.multi_reduction <add>, %772, %cst_125 [0] : vector<8x1xf32> to vector<1xf32>
    %774 = vector.shape_cast %773 : vector<1xf32> to vector<1x1xf32>
    %775 = tpu.reciprocal %774 {approx = true} : vector<1x1xf32> -> vector<1x1xf32>
    %776 = vector.broadcast %775 : vector<1x1xf32> to vector<8x1xf32>
    %777 = arith.mulf %772, %776 : vector<8x1xf32>
    %778 = vector.extract_strided_slice %760 {offsets = [8, 0], sizes = [8, 1], strides = [1, 1]} : vector<16x1xf32> to vector<8x1xf32>
    %cst_126 = arith.constant dense<0xFF800000> : vector<1xf32>
    %779 = vector.multi_reduction <maximumf>, %778, %cst_126 [0] : vector<8x1xf32> to vector<1xf32>
    %780 = vector.shape_cast %779 : vector<1xf32> to vector<1x1xf32>
    %781 = vector.broadcast %780 : vector<1x1xf32> to vector<8x1xf32>
    %782 = arith.subf %778, %781 : vector<8x1xf32>
    %783 = math.exp %782 : vector<8x1xf32>
    %cst_127 = arith.constant dense<0.000000e+00> : vector<1xf32>
    %784 = vector.multi_reduction <add>, %783, %cst_127 [0] : vector<8x1xf32> to vector<1xf32>
    %785 = vector.shape_cast %784 : vector<1xf32> to vector<1x1xf32>
    %786 = tpu.reciprocal %785 {approx = true} : vector<1x1xf32> -> vector<1x1xf32>
    %787 = vector.broadcast %786 : vector<1x1xf32> to vector<8x1xf32>
    %788 = arith.mulf %783, %787 : vector<8x1xf32>
    %789 = tpu.concatenate %777, %788 in 0 : vector<8x1xf32>, vector<8x1xf32> -> vector<16x1xf32>
    %790 = vector.extract_strided_slice %766 {offsets = [0, 0], sizes = [8, 1], strides = [1, 1]} : vector<16x1xf32> to vector<8x1xf32>
    %cst_128 = arith.constant dense<0xFF800000> : vector<1xf32>
    %791 = vector.multi_reduction <maximumf>, %790, %cst_128 [0] : vector<8x1xf32> to vector<1xf32>
    %792 = vector.shape_cast %791 : vector<1xf32> to vector<1x1xf32>
    %793 = vector.broadcast %792 : vector<1x1xf32> to vector<8x1xf32>
    %794 = arith.subf %790, %793 : vector<8x1xf32>
    %795 = math.exp %794 : vector<8x1xf32>
    %cst_129 = arith.constant dense<0.000000e+00> : vector<1xf32>
    %796 = vector.multi_reduction <add>, %795, %cst_129 [0] : vector<8x1xf32> to vector<1xf32>
    %797 = vector.shape_cast %796 : vector<1xf32> to vector<1x1xf32>
    %798 = tpu.reciprocal %797 {approx = true} : vector<1x1xf32> -> vector<1x1xf32>
    %799 = vector.broadcast %798 : vector<1x1xf32> to vector<8x1xf32>
    %800 = arith.mulf %795, %799 : vector<8x1xf32>
    %801 = vector.extract_strided_slice %766 {offsets = [8, 0], sizes = [8, 1], strides = [1, 1]} : vector<16x1xf32> to vector<8x1xf32>
    %cst_130 = arith.constant dense<0xFF800000> : vector<1xf32>
    %802 = vector.multi_reduction <maximumf>, %801, %cst_130 [0] : vector<8x1xf32> to vector<1xf32>
    %803 = vector.shape_cast %802 : vector<1xf32> to vector<1x1xf32>
    %804 = vector.broadcast %803 : vector<1x1xf32> to vector<8x1xf32>
    %805 = arith.subf %801, %804 : vector<8x1xf32>
    %806 = math.exp %805 : vector<8x1xf32>
    %cst_131 = arith.constant dense<0.000000e+00> : vector<1xf32>
    %807 = vector.multi_reduction <add>, %806, %cst_131 [0] : vector<8x1xf32> to vector<1xf32>
    %808 = vector.shape_cast %807 : vector<1xf32> to vector<1x1xf32>
    %809 = tpu.reciprocal %808 {approx = true} : vector<1x1xf32> -> vector<1x1xf32>
    %810 = vector.broadcast %809 : vector<1x1xf32> to vector<8x1xf32>
    %811 = arith.mulf %806, %810 : vector<8x1xf32>
    %812 = tpu.concatenate %800, %811 in 0 : vector<8x1xf32>, vector<8x1xf32> -> vector<16x1xf32>
    %813 = vector.extract_strided_slice %716 {offsets = [0, 0], sizes = [1, 32], strides = [1, 1]} : vector<2x64xf32> to vector<1x32xf32>
    %814 = vector.shape_cast %813 : vector<1x32xf32> to vector<1x32xf32>
    %815 = vector.broadcast %814 : vector<1x32xf32> to vector<8x32xf32>
    %816 = vector.extract_strided_slice %716 {offsets = [1, 0], sizes = [1, 32], strides = [1, 1]} : vector<2x64xf32> to vector<1x32xf32>
    %817 = vector.shape_cast %816 : vector<1x32xf32> to vector<1x32xf32>
    %818 = vector.broadcast %817 : vector<1x32xf32> to vector<8x32xf32>
    %819 = tpu.concatenate %815, %818 in 0 : vector<8x32xf32>, vector<8x32xf32> -> vector<16x32xf32>
    %820 = vector.extract_strided_slice %716 {offsets = [0, 32], sizes = [1, 32], strides = [1, 1]} : vector<2x64xf32> to vector<1x32xf32>
    %821 = vector.shape_cast %820 : vector<1x32xf32> to vector<1x32xf32>
    %822 = vector.broadcast %821 : vector<1x32xf32> to vector<8x32xf32>
    %823 = vector.extract_strided_slice %716 {offsets = [1, 32], sizes = [1, 32], strides = [1, 1]} : vector<2x64xf32> to vector<1x32xf32>
    %824 = vector.shape_cast %823 : vector<1x32xf32> to vector<1x32xf32>
    %825 = vector.broadcast %824 : vector<1x32xf32> to vector<8x32xf32>
    %826 = tpu.concatenate %822, %825 in 0 : vector<8x32xf32>, vector<8x32xf32> -> vector<16x32xf32>
    %827 = vector.broadcast %789 : vector<16x1xf32> to vector<16x32xf32>
    %828 = arith.mulf %827, %819 : vector<16x32xf32>
    %829 = vector.broadcast %812 : vector<16x1xf32> to vector<16x32xf32>
    %830 = arith.mulf %829, %721 : vector<16x32xf32>
    %831 = arith.addf %828, %830 : vector<16x32xf32>
    %832 = vector.broadcast %789 : vector<16x1xf32> to vector<16x32xf32>
    %833 = arith.mulf %832, %826 : vector<16x32xf32>
    %834 = vector.broadcast %812 : vector<16x1xf32> to vector<16x32xf32>
    %835 = arith.mulf %834, %724 : vector<16x32xf32>
    %836 = arith.addf %833, %835 : vector<16x32xf32>
    %837 = arith.truncf %690 : vector<16x32xf32> to vector<16x32xbf16>
    %838 = vector.extract_strided_slice %727 {offsets = [0, 0], sizes = [32, 32], strides = [1, 1]} : vector<128x32xbf16> to vector<32x32xbf16>
    %cst_132 = arith.constant dense<0.000000e+00> : vector<16x32xf32>
    %839 = tpu.matmul %837, %838, %cst_132 {dimension_numbers = #tpu.dot_dimension_numbers<[1], [0], [0], [1], [0, 0, 1, 1], [], []>} : vector<16x32xbf16>, vector<32x32xbf16>, vector<16x32xf32> -> vector<16x32xf32>
    %840 = arith.truncf %709 : vector<16x32xf32> to vector<16x32xbf16>
    %841 = vector.extract_strided_slice %727 {offsets = [32, 0], sizes = [32, 32], strides = [1, 1]} : vector<128x32xbf16> to vector<32x32xbf16>
    %cst_133 = arith.constant dense<0.000000e+00> : vector<16x32xf32>
    %842 = tpu.matmul %840, %841, %cst_133 {dimension_numbers = #tpu.dot_dimension_numbers<[1], [0], [0], [1], [0, 0, 1, 1], [], []>} : vector<16x32xbf16>, vector<32x32xbf16>, vector<16x32xf32> -> vector<16x32xf32>
    %843 = arith.addf %839, %842 : vector<16x32xf32>
    %844 = arith.truncf %831 : vector<16x32xf32> to vector<16x32xbf16>
    %845 = vector.extract_strided_slice %727 {offsets = [64, 0], sizes = [32, 32], strides = [1, 1]} : vector<128x32xbf16> to vector<32x32xbf16>
    %cst_134 = arith.constant dense<0.000000e+00> : vector<16x32xf32>
    %846 = tpu.matmul %844, %845, %cst_134 {dimension_numbers = #tpu.dot_dimension_numbers<[1], [0], [0], [1], [0, 0, 1, 1], [], []>} : vector<16x32xbf16>, vector<32x32xbf16>, vector<16x32xf32> -> vector<16x32xf32>
    %847 = arith.addf %843, %846 : vector<16x32xf32>
    %848 = arith.truncf %836 : vector<16x32xf32> to vector<16x32xbf16>
    %849 = vector.extract_strided_slice %727 {offsets = [96, 0], sizes = [32, 32], strides = [1, 1]} : vector<128x32xbf16> to vector<32x32xbf16>
    %cst_135 = arith.constant dense<0.000000e+00> : vector<16x32xf32>
    %850 = tpu.matmul %848, %849, %cst_135 {dimension_numbers = #tpu.dot_dimension_numbers<[1], [0], [0], [1], [0, 0, 1, 1], [], []>} : vector<16x32xbf16>, vector<32x32xbf16>, vector<16x32xf32> -> vector<16x32xf32>
    %851 = arith.addf %847, %850 : vector<16x32xf32>
    %852 = vector.broadcast %728 : vector<1x32xf32> to vector<16x32xf32>
    %853 = arith.addf %851, %852 : vector<16x32xf32>
    %cst_136 = arith.constant 0.000000e+00 : f32
    %854 = vector.broadcast %cst_136 : f32 to vector<16x32xf32>
    %855 = arith.maximumf %853, %854 : vector<16x32xf32>
    %856 = vector.broadcast %729 : vector<1x32xf32> to vector<16x32xf32>
    %857 = arith.mulf %855, %856 : vector<16x32xf32>
    %cst_137 = arith.constant dense<0.000000e+00> : vector<16xf32>
    %858 = vector.multi_reduction <add>, %857, %cst_137 [1] : vector<16x32xf32> to vector<16xf32>
    %859 = vector.shape_cast %858 : vector<16xf32> to vector<16x1xf32>
    %860 = vector.broadcast %730 : vector<1x1xf32> to vector<16x1xf32>
    %861 = arith.addf %859, %860 : vector<16x1xf32>
    %c0_138 = arith.constant 0 : index
    %c0_139 = arith.constant 0 : index
    %862 = vector.load %arg16[%c0_138, %c0_139] : memref<16x1xf32, #tpu.memory_space<vmem>>, vector<16x1xf32>
    tpu.vector_store %arg16[%c0_138, %c0_139], %861 {strides = array<i32>} : memref<16x1xf32, #tpu.memory_space<vmem>>, vector<16x1xf32>,
    return
  }
  func.func @transform_0(%arg0: i32) -> (i32, i32, i32) {
    %c0_i32 = arith.constant 0 : i32
    %c0_i32_0 = arith.constant 0 : i32
    %c0_i32_1 = arith.constant 0 : i32
    %c0_i32_2 = arith.constant 0 : i32
    return %c0_i32, %c0_i32_0, %c0_i32_1 : i32, i32, i32
  }
  func.func @transform_1(%arg0: i32) -> (i32, i32) {
    %c0_i32 = arith.constant 0 : i32
    %c0_i32_0 = arith.constant 0 : i32
    %c0_i32_1 = arith.constant 0 : i32
    return %c0_i32, %c0_i32_0 : i32, i32
  }
  func.func @transform_2(%arg0: i32) -> (i32, i32) {
    %c0_i32 = arith.constant 0 : i32
    %c0_i32_0 = arith.constant 0 : i32
    %c0_i32_1 = arith.constant 0 : i32
    return %c0_i32, %c0_i32_0 : i32, i32
  }
  func.func @transform_3(%arg0: i32) -> (i32, i32) {
    %c0_i32 = arith.constant 0 : i32
    %c0_i32_0 = arith.constant 0 : i32
    %c0_i32_1 = arith.constant 0 : i32
    return %c0_i32, %c0_i32_0 : i32, i32
  }
  func.func @transform_4(%arg0: i32) -> (i32, i32) {
    %c0_i32 = arith.constant 0 : i32
    %c0_i32_0 = arith.constant 0 : i32
    %c0_i32_1 = arith.constant 0 : i32
    return %c0_i32, %c0_i32_0 : i32, i32
  }
  func.func @transform_5(%arg0: i32) -> (i32, i32) {
    %c0_i32 = arith.constant 0 : i32
    %c0_i32_0 = arith.constant 0 : i32
    %c0_i32_1 = arith.constant 0 : i32
    return %c0_i32, %c0_i32_0 : i32, i32
  }
  func.func @transform_6(%arg0: i32) -> (i32, i32) {
    %c0_i32 = arith.constant 0 : i32
    %c0_i32_0 = arith.constant 0 : i32
    %c0_i32_1 = arith.constant 0 : i32
    return %c0_i32, %c0_i32_0 : i32, i32
  }
  func.func @transform_7(%arg0: i32) -> (i32, i32) {
    %c0_i32 = arith.constant 0 : i32
    %c0_i32_0 = arith.constant 0 : i32
    %c0_i32_1 = arith.constant 0 : i32
    return %c0_i32, %c0_i32_0 : i32, i32
  }
  func.func @transform_8(%arg0: i32) -> (i32, i32) {
    %c0_i32 = arith.constant 0 : i32
    %c0_i32_0 = arith.constant 0 : i32
    %c0_i32_1 = arith.constant 0 : i32
    return %c0_i32, %c0_i32_0 : i32, i32
  }
  func.func @transform_9(%arg0: i32) -> (i32, i32) {
    %c0_i32 = arith.constant 0 : i32
    %c0_i32_0 = arith.constant 0 : i32
    %c0_i32_1 = arith.constant 0 : i32
    return %c0_i32, %c0_i32_0 : i32, i32
  }
  func.func @transform_10(%arg0: i32) -> (i32, i32) {
    %c0_i32 = arith.constant 0 : i32
    %c0_i32_0 = arith.constant 0 : i32
    %c0_i32_1 = arith.constant 0 : i32
    return %c0_i32, %c0_i32_0 : i32, i32
  }
  func.func @transform_11(%arg0: i32) -> (i32, i32) {
    %c0_i32 = arith.constant 0 : i32
    %c0_i32_0 = arith.constant 0 : i32
    %c0_i32_1 = arith.constant 0 : i32
    return %c0_i32, %c0_i32_0 : i32, i32
  }
  func.func @transform_12(%arg0: i32) -> (i32, i32) {
    %c0_i32 = arith.constant 0 : i32
    %c0_i32_0 = arith.constant 0 : i32
    %c0_i32_1 = arith.constant 0 : i32
    return %c0_i32, %c0_i32_0 : i32, i32
  }
  func.func @transform_13(%arg0: i32) -> (i32, i32) {
    %c0_i32 = arith.constant 0 : i32
    %c0_i32_0 = arith.constant 0 : i32
    %c0_i32_1 = arith.constant 0 : i32
    return %c0_i32, %c0_i32_0 : i32, i32
  }
  func.func @transform_14(%arg0: i32) -> (i32, i32) {
    %c0_i32 = arith.constant 0 : i32
    %c0_i32_0 = arith.constant 0 : i32
    %c0_i32_1 = arith.constant 0 : i32
    return %c0_i32, %c0_i32_0 : i32, i32
  }
  func.func @transform_15(%arg0: i32) -> (i32, i32) {
    %c0_i32 = arith.constant 0 : i32
    %c0_i32_0 = arith.constant 0 : i32
    %c0_i32_1 = arith.constant 0 : i32
    return %c0_i32, %c0_i32_0 : i32, i32
  }
}

</mosaic_0001>

<llo_original>
// kernel: tpu_custom_call.1
$region0: #{tpu_custom_call.1}
  #allocation0 [shape = 'u32[]', space=smem, size = 0x4, offset = 0x4, fixed_abs, tag = 'smem constant byte address 0x4 - core index']
  #allocation1 [shape = 'u32[72,128]{1,0:T(1,128)}', space=vmem, size = 0x9000, scoped, tag = 'internal scratch']
  #allocation2 [shape = 'f32[1,1]{1,0:T(1,128)S(1)}', space=vmem, size = 0x200, scoped, tag = 'scoped memory for tpu_custom_call.1']
  %s0 = inlined_call_operand.vmem [shape: f32[16,6,32], index: 0, kind: input, shape index: {}]
  %s1 = inlined_call_operand.vmem [shape: f32[16,6], index: 1, kind: input, shape index: {}]
  %s2 = inlined_call_operand.vmem [shape: s32[2,1], index: 2, kind: input, shape index: {}]
  %s3 = inlined_call_operand.vmem [shape: f32[16,16], index: 3, kind: input, shape index: {}]
  %s4 = inlined_call_operand.vmem [shape: f32[16,16], index: 4, kind: input, shape index: {}]
  %s5 = inlined_call_operand.vmem [shape: bf16[32,192], index: 5, kind: input, shape index: {}]
  %s6 = inlined_call_operand.vmem [shape: bf16[64,192], index: 6, kind: input, shape index: {}]
  %s7 = inlined_call_operand.vmem [shape: f32[1,192], index: 7, kind: input, shape index: {}]
  %s8 = inlined_call_operand.vmem [shape: f32[1,192], index: 8, kind: input, shape index: {}]
  %s9 = inlined_call_operand.vmem [shape: bf16[128,128], index: 9, kind: input, shape index: {}]
  %s10 = inlined_call_operand.vmem [shape: f32[1,128], index: 10, kind: input, shape index: {}]
  %s11 = inlined_call_operand.vmem [shape: bf16[128,32], index: 11, kind: input, shape index: {}]
  %s12 = inlined_call_operand.vmem [shape: f32[1,32], index: 12, kind: input, shape index: {}]
  %s13 = inlined_call_operand.vmem [shape: f32[1,32], index: 13, kind: input, shape index: {}]
  %s14 = inlined_call_operand.<no memory space> [shape: f32[1,1], index: 14, kind: input, shape index: {}]
  %s15 = inlined_call_operand.vmem [shape: f32[16,1], index: 15, kind: output, shape index: {}]
  %s16 = sld [smem:[#allocation0]]
  $region70: #{tpu_custom_call.1} parent=0
    _
  %s18 = ssub.s32 1, %s16
  %s19 = scalar_select 0, %s18, %s16
  %v20 = vstv %s14
  %21 = vst [vmem:[#allocation2] sm:$0x1] %v20
  // Predicated region
  $region2: #{tpu_custom_call.1} parent=0 // pred_check
    _
  $region3: #{tpu_custom_call.1} parent=0 // pred_check_branch
    %23 = sbr.rel (0) target = $region5
  $region4: #{tpu_custom_call.1} parent=0 // pred_region
    _
  $region5: #{tpu_custom_call.1} parent=0 // pred_fallthru
    _
  // Predicated region
  $region6: #{tpu_custom_call.1} parent=0 // pred_check
    _
  $region7: #{tpu_custom_call.1} parent=0 // pred_check_branch
    %25 = sbr.rel (0) target = $region9
  $region8: #{tpu_custom_call.1} parent=0 // pred_region
    _
  $region9: #{tpu_custom_call.1} parent=0 // pred_fallthru
    _
  // Predicated region
  $region10: #{tpu_custom_call.1} parent=0 // pred_check
    _
  $region11: #{tpu_custom_call.1} parent=0 // pred_check_branch
    %27 = sbr.rel (0) target = $region13
  $region12: #{tpu_custom_call.1} parent=0 // pred_region
    _
  $region13: #{tpu_custom_call.1} parent=0 // pred_fallthru
    _
  // Predicated region
  $region14: #{tpu_custom_call.1} parent=0 // pred_check
    _
  $region15: #{tpu_custom_call.1} parent=0 // pred_check_branch
    %29 = sbr.rel (0) target = $region17
  $region16: #{tpu_custom_call.1} parent=0 // pred_region
    _
  $region17: #{tpu_custom_call.1} parent=0 // pred_fallthru
    _
  // Predicated region
  $region18: #{tpu_custom_call.1} parent=0 // pred_check
    _
  $region19: #{tpu_custom_call.1} parent=0 // pred_check_branch
    %31 = sbr.rel (0) target = $region21
  $region20: #{tpu_custom_call.1} parent=0 // pred_region
    _
  $region21: #{tpu_custom_call.1} parent=0 // pred_fallthru
    _
  // Predicated region
  $region22: #{tpu_custom_call.1} parent=0 // pred_check
    _
  $region23: #{tpu_custom_call.1} parent=0 // pred_check_branch
    %33 = sbr.rel (0) target = $region25
  $region24: #{tpu_custom_call.1} parent=0 // pred_region
    _
  $region25: #{tpu_custom_call.1} parent=0 // pred_fallthru
    _
  // Predicated region
  $region26: #{tpu_custom_call.1} parent=0 // pred_check
    _
  $region27: #{tpu_custom_call.1} parent=0 // pred_check_branch
    %35 = sbr.rel (0) target = $region29
  $region28: #{tpu_custom_call.1} parent=0 // pred_region
    _
  $region29: #{tpu_custom_call.1} parent=0 // pred_fallthru
    _
  // Predicated region
  $region30: #{tpu_custom_call.1} parent=0 // pred_check
    _
  $region31: #{tpu_custom_call.1} parent=0 // pred_check_branch
    %37 = sbr.rel (0) target = $region33
  $region32: #{tpu_custom_call.1} parent=0 // pred_region
    _
  $region33: #{tpu_custom_call.1} parent=0 // pred_fallthru
    _
  // Predicated region
  $region34: #{tpu_custom_call.1} parent=0 // pred_check
    _
  $region35: #{tpu_custom_call.1} parent=0 // pred_check_branch
    %39 = sbr.rel (0) target = $region37
  $region36: #{tpu_custom_call.1} parent=0 // pred_region
    _
  $region37: #{tpu_custom_call.1} parent=0 // pred_fallthru
    _
  // Predicated region
  $region38: #{tpu_custom_call.1} parent=0 // pred_check
    _
  $region39: #{tpu_custom_call.1} parent=0 // pred_check_branch
    %41 = sbr.rel (0) target = $region41
  $region40: #{tpu_custom_call.1} parent=0 // pred_region
    _
  $region41: #{tpu_custom_call.1} parent=0 // pred_fallthru
    _
  // Predicated region
  $region42: #{tpu_custom_call.1} parent=0 // pred_check
    _
  $region43: #{tpu_custom_call.1} parent=0 // pred_check_branch
    %43 = sbr.rel (0) target = $region45
  $region44: #{tpu_custom_call.1} parent=0 // pred_region
    _
  $region45: #{tpu_custom_call.1} parent=0 // pred_fallthru
    _
  // Predicated region
  $region46: #{tpu_custom_call.1} parent=0 // pred_check
    _
  $region47: #{tpu_custom_call.1} parent=0 // pred_check_branch
    %45 = sbr.rel (0) target = $region49
  $region48: #{tpu_custom_call.1} parent=0 // pred_region
    _
  $region49: #{tpu_custom_call.1} parent=0 // pred_fallthru
    _
  // Predicated region
  $region50: #{tpu_custom_call.1} parent=0 // pred_check
    _
  $region51: #{tpu_custom_call.1} parent=0 // pred_check_branch
    %47 = sbr.rel (0) target = $region53
  $region52: #{tpu_custom_call.1} parent=0 // pred_region
    _
  $region53: #{tpu_custom_call.1} parent=0 // pred_fallthru
    _
  // Predicated region
  $region54: #{tpu_custom_call.1} parent=0 // pred_check
    _
  $region55: #{tpu_custom_call.1} parent=0 // pred_check_branch
    %49 = sbr.rel (0) target = $region57
  $region56: #{tpu_custom_call.1} parent=0 // pred_region
    _
  $region57: #{tpu_custom_call.1} parent=0 // pred_fallthru
    _
  // Predicated region
  $region58: #{tpu_custom_call.1} parent=0 // pred_check
    _
  $region59: #{tpu_custom_call.1} parent=0 // pred_check_branch
    %51 = sbr.rel (0) target = $region61
  $region60: #{tpu_custom_call.1} parent=0 // pred_region
    _
  $region61: #{tpu_custom_call.1} parent=0 // pred_fallthru
    _
  %v53 = vld [vmem:[%s0] sm:$0x3f]
  %v54 = vld [vmem:[%s0 + $0x8] sm:$0x3f]
  %v55 = vld [vmem:[%s0 + $0x10] sm:$0x3f]
  %v56 = vld [vmem:[%s0 + $0x18] sm:$0x3f]
  %v57 = vld [vmem:[%s0 + $0x20] sm:$0x3f]
  %v58 = vld [vmem:[%s0 + $0x28] sm:$0x3f]
  %v59 = vld [vmem:[%s0 + $0x30] sm:$0x3f]
  %v60 = vld [vmem:[%s0 + $0x38] sm:$0x3f]
  %v61 = vld [vmem:[%s0 + $0x40] sm:$0x3f]
  %v62 = vld [vmem:[%s0 + $0x48] sm:$0x3f]
  %v63 = vld [vmem:[%s0 + $0x50] sm:$0x3f]
  %v64 = vld [vmem:[%s0 + $0x58] sm:$0x3f]
  %v65 = vld [vmem:[%s0 + $0x60] sm:$0x3f]
  %v66 = vld [vmem:[%s0 + $0x68] sm:$0x3f]
  %v67 = vld [vmem:[%s0 + $0x70] sm:$0x3f]
  %v68 = vld [vmem:[%s0 + $0x78] sm:$0x3f]
  %v69 = vld [vmem:[%s1] sm:$0xff]
  %v70 = vld [vmem:[%s1 + $0x8] sm:$0xff]
  %v71 = vperm.slane %v69, 0
  %v72 = vlaneseq
  %v73 = vshrl.u32 %v72, 7
  %75 = vset.pattern.permute.xlu0 %v73
  %76 = vperm.xlu0 %75, %v71
  %v77 = vpop.permute.xlu0 %76
  %v78 = vperm.slane %v69, 1
  %v79 = vlaneseq
  %v80 = vshrl.u32 %v79, 7
  %82 = vset.pattern.permute.xlu0 %v80
  %83 = vperm.xlu0 %82, %v78
  %v84 = vpop.permute.xlu0 %83
  %v85 = vperm.slane %v69, 2
  %v86 = vlaneseq
  %v87 = vshrl.u32 %v86, 7
  %89 = vset.pattern.permute.xlu0 %v87
  %90 = vperm.xlu0 %89, %v85
  %v91 = vpop.permute.xlu0 %90
  %v92 = vperm.slane %v69, 3
  %v93 = vlaneseq
  %v94 = vshrl.u32 %v93, 7
  %96 = vset.pattern.permute.xlu0 %v94
  %97 = vperm.xlu0 %96, %v92
  %v98 = vpop.permute.xlu0 %97
  %v99 = vperm.slane %v69, 4
  %v100 = vlaneseq
  %v101 = vshrl.u32 %v100, 7
  %103 = vset.pattern.permute.xlu0 %v101
  %104 = vperm.xlu0 %103, %v99
  %v105 = vpop.permute.xlu0 %104
  %v106 = vperm.slane %v69, 5
  %v107 = vlaneseq
  %v108 = vshrl.u32 %v107, 7
  %110 = vset.pattern.permute.xlu0 %v108
  %111 = vperm.xlu0 %110, %v106
  %v112 = vpop.permute.xlu0 %111
  %v113 = vperm.slane %v69, 6
  %v114 = vlaneseq
  %v115 = vshrl.u32 %v114, 7
  %117 = vset.pattern.permute.xlu0 %v115
  %118 = vperm.xlu0 %117, %v113
  %v119 = vpop.permute.xlu0 %118
  %v120 = vperm.slane %v69, 7
  %v121 = vlaneseq
  %v122 = vshrl.u32 %v121, 7
  %124 = vset.pattern.permute.xlu0 %v122
  %125 = vperm.xlu0 %124, %v120
  %v126 = vpop.permute.xlu0 %125
  %v127 = vperm.slane %v70, 0
  %v128 = vlaneseq
  %v129 = vshrl.u32 %v128, 7
  %131 = vset.pattern.permute.xlu0 %v129
  %132 = vperm.xlu0 %131, %v127
  %v133 = vpop.permute.xlu0 %132
  %v134 = vperm.slane %v70, 1
  %v135 = vlaneseq
  %v136 = vshrl.u32 %v135, 7
  %138 = vset.pattern.permute.xlu0 %v136
  %139 = vperm.xlu0 %138, %v134
  %v140 = vpop.permute.xlu0 %139
  %v141 = vperm.slane %v70, 2
  %v142 = vlaneseq
  %v143 = vshrl.u32 %v142, 7
  %145 = vset.pattern.permute.xlu0 %v143
  %146 = vperm.xlu0 %145, %v141
  %v147 = vpop.permute.xlu0 %146
  %v148 = vperm.slane %v70, 3
  %v149 = vlaneseq
  %v150 = vshrl.u32 %v149, 7
  %152 = vset.pattern.permute.xlu0 %v150
  %153 = vperm.xlu0 %152, %v148
  %v154 = vpop.permute.xlu0 %153
  %v155 = vperm.slane %v70, 4
  %v156 = vlaneseq
  %v157 = vshrl.u32 %v156, 7
  %159 = vset.pattern.permute.xlu0 %v157
  %160 = vperm.xlu0 %159, %v155
  %v161 = vpop.permute.xlu0 %160
  %v162 = vperm.slane %v70, 5
  %v163 = vlaneseq
  %v164 = vshrl.u32 %v163, 7
  %166 = vset.pattern.permute.xlu0 %v164
  %167 = vperm.xlu0 %166, %v162
  %v168 = vpop.permute.xlu0 %167
  %v169 = vperm.slane %v70, 6
  %v170 = vlaneseq
  %v171 = vshrl.u32 %v170, 7
  %173 = vset.pattern.permute.xlu0 %v171
  %174 = vperm.xlu0 %173, %v169
  %v175 = vpop.permute.xlu0 %174
  %v176 = vperm.slane %v70, 7
  %v177 = vlaneseq
  %v178 = vshrl.u32 %v177, 7
  %180 = vset.pattern.permute.xlu0 %v178
  %181 = vperm.xlu0 %180, %v176
  %v182 = vpop.permute.xlu0 %181
  %v183 = vmul.f32 %v53, %v77
  %v184 = vmul.f32 %v54, %v84
  %v185 = vmul.f32 %v55, %v91
  %v186 = vmul.f32 %v56, %v98
  %v187 = vmul.f32 %v57, %v105
  %v188 = vmul.f32 %v58, %v112
  %v189 = vmul.f32 %v59, %v119
  %v190 = vmul.f32 %v60, %v126
  %v191 = vmul.f32 %v61, %v133
  %v192 = vmul.f32 %v62, %v140
  %v193 = vmul.f32 %v63, %v147
  %v194 = vmul.f32 %v64, %v154
  %v195 = vmul.f32 %v65, %v161
  %v196 = vmul.f32 %v66, %v168
  %v197 = vmul.f32 %v67, %v175
  %v198 = vmul.f32 %v68, %v182
  %vm199 = vcmask 259072
  %v200 = vsel %vm199, %v183, 0.0
  %v201 = vrot.slane %v200, 4
  %v202 = vadd.f32 %v200, %v201
  %v203 = vrot.slane %v202, 2
  %v204 = vadd.f32 %v202, %v203
  %v205 = vrot.slane %v204, 1
  %v206 = vadd.f32 %v204, %v205
  %v207 = vsel %vm199, %v184, 0.0
  %v208 = vrot.slane %v207, 4
  %v209 = vadd.f32 %v207, %v208
  %v210 = vrot.slane %v209, 2
  %v211 = vadd.f32 %v209, %v210
  %v212 = vrot.slane %v211, 1
  %v213 = vadd.f32 %v211, %v212
  %v214 = vsel %vm199, %v185, 0.0
  %v215 = vrot.slane %v214, 4
  %v216 = vadd.f32 %v214, %v215
  %v217 = vrot.slane %v216, 2
  %v218 = vadd.f32 %v216, %v217
  %v219 = vrot.slane %v218, 1
  %v220 = vadd.f32 %v218, %v219
  %v221 = vsel %vm199, %v186, 0.0
  %v222 = vrot.slane %v221, 4
  %v223 = vadd.f32 %v221, %v222
  %v224 = vrot.slane %v223, 2
  %v225 = vadd.f32 %v223, %v224
  %v226 = vrot.slane %v225, 1
  %v227 = vadd.f32 %v225, %v226
  %v228 = vsel %vm199, %v187, 0.0
  %v229 = vrot.slane %v228, 4
  %v230 = vadd.f32 %v228, %v229
  %v231 = vrot.slane %v230, 2
  %v232 = vadd.f32 %v230, %v231
  %v233 = vrot.slane %v232, 1
  %v234 = vadd.f32 %v232, %v233
  %v235 = vsel %vm199, %v188, 0.0
  %v236 = vrot.slane %v235, 4
  %v237 = vadd.f32 %v235, %v236
  %v238 = vrot.slane %v237, 2
  %v239 = vadd.f32 %v237, %v238
  %v240 = vrot.slane %v239, 1
  %v241 = vadd.f32 %v239, %v240
  %v242 = vsel %vm199, %v189, 0.0
  %v243 = vrot.slane %v242, 4
  %v244 = vadd.f32 %v242, %v243
  %v245 = vrot.slane %v244, 2
  %v246 = vadd.f32 %v244, %v245
  %v247 = vrot.slane %v246, 1
  %v248 = vadd.f32 %v246, %v247
  %v249 = vsel %vm199, %v190, 0.0
  %v250 = vrot.slane %v249, 4
  %v251 = vadd.f32 %v249, %v250
  %v252 = vrot.slane %v251, 2
  %v253 = vadd.f32 %v251, %v252
  %v254 = vrot.slane %v253, 1
  %v255 = vadd.f32 %v253, %v254
  %v256 = vsel %vm199, %v191, 0.0
  %v257 = vrot.slane %v256, 4
  %v258 = vadd.f32 %v256, %v257
  %v259 = vrot.slane %v258, 2
  %v260 = vadd.f32 %v258, %v259
  %v261 = vrot.slane %v260, 1
  %v262 = vadd.f32 %v260, %v261
  %v263 = vsel %vm199, %v192, 0.0
  %v264 = vrot.slane %v263, 4
  %v265 = vadd.f32 %v263, %v264
  %v266 = vrot.slane %v265, 2
  %v267 = vadd.f32 %v265, %v266
  %v268 = vrot.slane %v267, 1
  %v269 = vadd.f32 %v267, %v268
  %v270 = vsel %vm199, %v193, 0.0
  %v271 = vrot.slane %v270, 4
  %v272 = vadd.f32 %v270, %v271
  %v273 = vrot.slane %v272, 2
  %v274 = vadd.f32 %v272, %v273
  %v275 = vrot.slane %v274, 1
  %v276 = vadd.f32 %v274, %v275
  %v277 = vsel %vm199, %v194, 0.0
  %v278 = vrot.slane %v277, 4
  %v279 = vadd.f32 %v277, %v278
  %v280 = vrot.slane %v279, 2
  %v281 = vadd.f32 %v279, %v280
  %v282 = vrot.slane %v281, 1
  %v283 = vadd.f32 %v281, %v282
  %v284 = vsel %vm199, %v195, 0.0
  %v285 = vrot.slane %v284, 4
  %v286 = vadd.f32 %v284, %v285
  %v287 = vrot.slane %v286, 2
  %v288 = vadd.f32 %v286, %v287
  %v289 = vrot.slane %v288, 1
  %v290 = vadd.f32 %v288, %v289
  %v291 = vsel %vm199, %v196, 0.0
  %v292 = vrot.slane %v291, 4
  %v293 = vadd.f32 %v291, %v292
  %v294 = vrot.slane %v293, 2
  %v295 = vadd.f32 %v293, %v294
  %v296 = vrot.slane %v295, 1
  %v297 = vadd.f32 %v295, %v296
  %v298 = vsel %vm199, %v197, 0.0
  %v299 = vrot.slane %v298, 4
  %v300 = vadd.f32 %v298, %v299
  %v301 = vrot.slane %v300, 2
  %v302 = vadd.f32 %v300, %v301
  %v303 = vrot.slane %v302, 1
  %v304 = vadd.f32 %v302, %v303
  %v305 = vsel %vm199, %v198, 0.0
  %v306 = vrot.slane %v305, 4
  %v307 = vadd.f32 %v305, %v306
  %v308 = vrot.slane %v307, 2
  %v309 = vadd.f32 %v307, %v308
  %v310 = vrot.slane %v309, 1
  %v311 = vadd.f32 %v309, %v310
  %vm312 = vcmask 48128
  %v313 = vsel %vm312, %v69, 0.0
  %314 = vadd.xlane.f32.xlu0 %v313
  %v315 = vpop.xlane.xlu0 %314
  %v316 = vsel %vm312, %v70, 0.0
  %317 = vadd.xlane.f32.xlu0 %v316
  %v318 = vpop.xlane.xlu0 %317
  %v319 = vmax.f32 %v315, 1.0
  %v320 = vmax.f32 %v318, 1.0
  %v321 = vrcp.pop %v319
  %v322 = vrcp.pop %v320
  %v325 = vrot.slane %v321, 1
  %v326 = vrot.slane %v321, 2
  %v327 = vrot.slane %v321, 3
  %v328 = vrot.slane %v321, 4
  %v329 = vrot.slane %v321, 5
  %v330 = vrot.slane %v321, 6
  %v331 = vrot.slane %v321, 7
  %v332 = vrot.slane %v322, 1
  %v333 = vrot.slane %v322, 2
  %v334 = vrot.slane %v322, 3
  %v335 = vrot.slane %v322, 4
  %v336 = vrot.slane %v322, 5
  %v337 = vrot.slane %v322, 6
  %v338 = vrot.slane %v322, 7
  %v355 = vmul.f32 %v206, %v321
  %v356 = vmul.f32 %v213, %v325
  %v357 = vmul.f32 %v220, %v326
  %v358 = vmul.f32 %v227, %v327
  %v359 = vmul.f32 %v234, %v328
  %v360 = vmul.f32 %v241, %v329
  %v361 = vmul.f32 %v248, %v330
  %v362 = vmul.f32 %v255, %v331
  %v363 = vmul.f32 %v262, %v322
  %v364 = vmul.f32 %v269, %v332
  %v365 = vmul.f32 %v276, %v333
  %v366 = vmul.f32 %v283, %v334
  %v367 = vmul.f32 %v290, %v335
  %v368 = vmul.f32 %v297, %v336
  %v369 = vmul.f32 %v304, %v337
  %v370 = vmul.f32 %v311, %v338
  %v371 = vld [vmem:[%s5] sm:$0xff]
  %v372 = vld [vmem:[%s5 + $0x8] sm:$0xff]
  %v373 = vld [vmem:[%s5 + $0x10] sm:$0xff]
  %v374 = vld [vmem:[%s5 + $0x18] sm:$0xff]
  %v375 = vld [vmem:[%s6] sm:$0xff]
  %v376 = vld [vmem:[%s6 + $0x8] sm:$0xff]
  %v377 = vld [vmem:[%s6 + $0x10] sm:$0xff]
  %v378 = vld [vmem:[%s6 + $0x18] sm:$0xff]
  %v379 = vld [vmem:[%s6 + $0x20] sm:$0xff]
  %v380 = vld [vmem:[%s6 + $0x28] sm:$0xff]
  %v381 = vld [vmem:[%s6 + $0x30] sm:$0xff]
  %v382 = vld [vmem:[%s6 + $0x38] sm:$0xff]
  %v383 = vld [vmem:[%s7] sm:$0x3]
  %v384 = vld [vmem:[%s8] sm:$0x3]
  %v385 = vld [vmem:[%s2] sm:$0x3]
  %v386 = vpack.c.bf16 %v355, %v355
  %v387 = vpack.c.bf16 %v356, %v356
  %v388 = vpack.c.bf16 %v357, %v357
  %v389 = vpack.c.bf16 %v358, %v358
  %v390 = vpack.c.bf16 %v359, %v359
  %v391 = vpack.c.bf16 %v360, %v360
  %v392 = vpack.c.bf16 %v361, %v361
  %v393 = vpack.c.bf16 %v362, %v362
  %v394 = vpack.c.bf16 %v363, %v363
  %v395 = vpack.c.bf16 %v364, %v364
  %v396 = vpack.c.bf16 %v365, %v365
  %v397 = vpack.c.bf16 %v366, %v366
  %v398 = vpack.c.bf16 %v367, %v367
  %v399 = vpack.c.bf16 %v368, %v368
  %v400 = vpack.c.bf16 %v369, %v369
  %v401 = vpack.c.bf16 %v370, %v370
  %v403 = vperm.slane %v383, 0
  %v404 = vperm.slane %v383, 1
  %v423 = vunpack.c.l.b16 %v386
  %v424 = vunpack.c.l.b16 %v387
  %v425 = vunpack.c.l.b16 %v388
  %v426 = vunpack.c.l.b16 %v389
  %v427 = vunpack.c.l.b16 %v390
  %v428 = vunpack.c.l.b16 %v391
  %v429 = vunpack.c.l.b16 %v392
  %v430 = vunpack.c.l.b16 %v393
  %v431 = vunpack.c.l.b16 %v394
  %v432 = vunpack.c.l.b16 %v395
  %v433 = vunpack.c.l.b16 %v396
  %v434 = vunpack.c.l.b16 %v397
  %v435 = vunpack.c.l.b16 %v398
  %v436 = vunpack.c.l.b16 %v399
  %v437 = vunpack.c.l.b16 %v400
  %v438 = vunpack.c.l.b16 %v401
  %v439 = vrot.slane %v424, 7
  %vm440 = vcmask 1041409
  %v441 = vsel %vm440, %v439, %v423
  %v442 = vrot.slane %v425, 6
  %vm443 = vcmask 1042434
  %v444 = vsel %vm443, %v442, %v441
  %v445 = vrot.slane %v426, 5
  %vm446 = vcmask 1043459
  %v447 = vsel %vm446, %v445, %v444
  %v448 = vrot.slane %v427, 4
  %vm449 = vcmask 1044484
  %v450 = vsel %vm449, %v448, %v447
  %v451 = vrot.slane %v428, 3
  %vm452 = vcmask 1045509
  %v453 = vsel %vm452, %v451, %v450
  %v454 = vrot.slane %v429, 2
  %vm455 = vcmask 1046534
  %v456 = vsel %vm455, %v454, %v453
  %v457 = vrot.slane %v430, 1
  %vm458 = vcmask 1047559
  %v459 = vsel %vm458, %v457, %v456
  %v460 = vrot.slane %v432, 7
  %v461 = vsel %vm440, %v460, %v431
  %v462 = vrot.slane %v433, 6
  %v463 = vsel %vm443, %v462, %v461
  %v464 = vrot.slane %v434, 5
  %v465 = vsel %vm446, %v464, %v463
  %v466 = vrot.slane %v435, 4
  %v467 = vsel %vm449, %v466, %v465
  %v468 = vrot.slane %v436, 3
  %v469 = vsel %vm452, %v468, %v467
  %v470 = vrot.slane %v437, 2
  %v471 = vsel %vm455, %v470, %v469
  %v472 = vrot.slane %v438, 1
  %v473 = vsel %vm458, %v472, %v471
  %v474 = vpack.c.b16 %v473, %v459
  %v479 = vunpack.c.l.b16 %v371
  %v480 = vunpack.c.h.b16 %v371
  %v481 = vunpack.c.l.b16 %v372
  %v482 = vunpack.c.h.b16 %v372
  %v483 = vunpack.c.l.b16 %v373
  %v484 = vunpack.c.h.b16 %v373
  %v485 = vunpack.c.l.b16 %v374
  %v486 = vunpack.c.h.b16 %v374
  %v487 = vpack.c.b16 %v481, %v479
  %v488 = vpack.c.b16 %v482, %v480
  %v489 = vpack.c.b16 %v485, %v483
  %v490 = vpack.c.b16 %v486, %v484
  %vm495 = vcmask 261120
  %v497 = vsel %vm495, %v474, 0
  %499 = vmatpush.bf16.msra.mxu0 0
  %500 = vmatpush.bf16.msra.mxu0 0
  %501 = vmatpush.bf16.msra.mxu0 0
  %502 = vmatpush.bf16.msra.mxu0 0
  %503 = vmatpush.bf16.msra.mxu0 0
  %504 = vmatpush.bf16.msra.mxu0 0
  %505 = vmatpush.bf16.msra.mxu0 %v489
  %506 = vmatpush.bf16.msra.mxu0 %v487
  %507 = vmatmul.bf16.gmra.mxu0 %v497
  %v508 = vpop.f32.mrf.mxu0
  %v509 = vadd.f32 %v403, %v508
  %v510 = vpop.f32.mrf.mxu0
  %v511 = vadd.f32 %v403, %v510
  %512 = vdwg.mxu0
  %513 = vmatpush.bf16.msra.mxu0 0
  %514 = vmatpush.bf16.msra.mxu0 0
  %515 = vmatpush.bf16.msra.mxu0 0
  %516 = vmatpush.bf16.msra.mxu0 0
  %517 = vmatpush.bf16.msra.mxu0 0
  %518 = vmatpush.bf16.msra.mxu0 0
  %519 = vmatpush.bf16.msra.mxu0 %v490
  %520 = vmatpush.bf16.msra.mxu0 %v488
  %521 = vmatmul.bf16.gmra.mxu0 %v497
  %v522 = vpop.f32.mrf.mxu0
  %v523 = vadd.f32 %v404, %v522
  %v524 = vpop.f32.mrf.mxu0
  %v525 = vadd.f32 %v404, %v524
  %526 = vdwg.mxu0
  %v527 = vpack.c.bf16 0.0, 0.0
  %v529 = vperm.slane %v384, 0
  %v530 = vperm.slane %v384, 1
  %v541 = vunpack.c.l.b16 %v375
  %v542 = vunpack.c.h.b16 %v375
  %v543 = vunpack.c.l.b16 %v376
  %v544 = vunpack.c.h.b16 %v376
  %v545 = vunpack.c.l.b16 %v377
  %v546 = vunpack.c.h.b16 %v377
  %v547 = vunpack.c.l.b16 %v378
  %v548 = vunpack.c.h.b16 %v378
  %v549 = vunpack.c.l.b16 %v379
  %v550 = vunpack.c.h.b16 %v379
  %v551 = vunpack.c.l.b16 %v380
  %v552 = vunpack.c.h.b16 %v380
  %v553 = vunpack.c.l.b16 %v381
  %v554 = vunpack.c.h.b16 %v381
  %v555 = vunpack.c.l.b16 %v382
  %v556 = vunpack.c.h.b16 %v382
  %v557 = vpack.c.b16 %v543, %v541
  %v558 = vpack.c.b16 %v544, %v542
  %v559 = vpack.c.b16 %v547, %v545
  %v560 = vpack.c.b16 %v548, %v546
  %v561 = vpack.c.b16 %v551, %v549
  %v562 = vpack.c.b16 %v552, %v550
  %v563 = vpack.c.b16 %v555, %v553
  %v564 = vpack.c.b16 %v556, %v554
  %vm573 = vcmask 523264
  %v575 = vsel %vm573, %v527, 0
  %577 = vmatpush.bf16.msra.mxu0 0
  %578 = vmatpush.bf16.msra.mxu0 0
  %579 = vmatpush.bf16.msra.mxu0 0
  %580 = vmatpush.bf16.msra.mxu0 0
  %581 = vmatpush.bf16.msra.mxu0 %v563
  %582 = vmatpush.bf16.msra.mxu0 %v561
  %583 = vmatpush.bf16.msra.mxu0 %v559
  %584 = vmatpush.bf16.msra.mxu0 %v557
  %585 = vmatmul.bf16.gmra.mxu0 %v575
  %v586 = vpop.f32.mrf.mxu0
  %v587 = vadd.f32 %v529, %v586
  %v588 = vpop.f32.mrf.mxu0
  %589 = vdwg.mxu0
  %590 = vmatpush.bf16.msra.mxu0 0
  %591 = vmatpush.bf16.msra.mxu0 0
  %592 = vmatpush.bf16.msra.mxu0 0
  %593 = vmatpush.bf16.msra.mxu0 0
  %594 = vmatpush.bf16.msra.mxu0 %v564
  %595 = vmatpush.bf16.msra.mxu0 %v562
  %596 = vmatpush.bf16.msra.mxu0 %v560
  %597 = vmatpush.bf16.msra.mxu0 %v558
  %598 = vmatmul.bf16.gmra.mxu0 %v575
  %v599 = vpop.f32.mrf.mxu0
  %v600 = vadd.f32 %v530, %v599
  %v601 = vpop.f32.mrf.mxu0
  %602 = vdwg.mxu0
  %v604 = vrot.slane %v511, 7
  %vm606 = vcmask 1040384
  %v607 = vsel %vm606, %v509, %v604
  %v608 = vadd.f32 %v607, %v587
  %v609 = vxor.u32 %v608, 2147483648
  %v610 = vmul.f32 %v609, 1.442695
  %v611 = vpow.pop %v610
  %v612 = vadd.f32 %v611, 1.0
  %v613 = vrcp.pop %v612
  %v614 = vmul.f32 %v612, %v613
  %v615 = vsub.f32 1.0, %v614
  %v616 = vmul.f32 %v613, %v615
  %v617 = vadd.f32 %v613, %v616
  %vm618 = vweird.f32 %v612
  %vm619 = vweird.f32 %v613
  %vm620 = vmor %vm618, %vm619
  %v621 = vsel %vm620, %v613, %v617
  %v622 = vand.u32 2147483647, %v612
  %vm623 = vcmp.eq.f32.partialorder %v622, 8.507059e+37
  %v624 = vand.u32 %v612, 2147483648
  %v625 = vor.u32 1.1754944e-38, %v624
  %v626 = vsel %vm623, %v625, %v621
  %v627 = vmul.f32 1.0, %v626
  %629 = vrot.lane.b32.xlu0 %v587, 64
  %v630 = vpop.permute.xlu0 %629
  %v632 = vmul.f32 %v627, %v630
  %634 = vrot.lane.b32.xlu0 %v632, 64
  %v635 = vpop.permute.xlu0 %634
  %v637 = vadd.f32 %v607, %v635
  %v638 = vtanh.pop %v637
  %v639 = vsub.f32 1.0, %v627
  %641 = vrot.lane.b32.xlu0 %v638, 96
  %v642 = vpop.permute.xlu0 %641
  %v644 = vmul.f32 %v639, %v642
  %v645 = vmul.f32 %v627, 0.0
  %v646 = vadd.f32 %v644, %v645
  %vm647 = vcmp.gt.s32.totalorder %v385, 0
  %v648 = vsel %vm647, 1, 0
  %649 = vset.pattern.permute.xlu0 0
  %650 = vperm.xlu0 %649, %v648
  %v651 = vpop.permute.xlu0 %650
  %vm652 = vcmp.eq.s32.totalorder %v651, 1
  %v653 = vsel %vm652, %v646, 0.0
  %v656 = vrot.slane %v509, 7
  %v657 = vrot.slane %v523, 7
  %v661 = vrot.slane %v511, 6
  %v662 = vrot.slane %v525, 6
  %v665 = vsel %vm606, %v656, %v661
  %v666 = vsel %vm606, %v657, %v662
  %v667 = vadd.f32 %v665, %v587
  %v668 = vxor.u32 %v667, 2147483648
  %v669 = vmul.f32 %v668, 1.442695
  %v670 = vpow.pop %v669
  %v671 = vadd.f32 %v670, 1.0
  %v672 = vrcp.pop %v671
  %v673 = vmul.f32 %v671, %v672
  %v674 = vsub.f32 1.0, %v673
  %v675 = vmul.f32 %v672, %v674
  %v676 = vadd.f32 %v672, %v675
  %vm677 = vweird.f32 %v671
  %vm678 = vweird.f32 %v672
  %vm679 = vmor %vm677, %vm678
  %v680 = vsel %vm679, %v672, %v676
  %v681 = vand.u32 2147483647, %v671
  %vm682 = vcmp.eq.f32.partialorder %v681, 8.507059e+37
  %v683 = vand.u32 %v671, 2147483648
  %v684 = vor.u32 1.1754944e-38, %v683
  %v685 = vsel %vm682, %v684, %v680
  %v686 = vmul.f32 1.0, %v685
  %v687 = vadd.f32 %v666, %v600
  %v688 = vxor.u32 %v687, 2147483648
  %v689 = vmul.f32 %v688, 1.442695
  %v690 = vpow.pop %v689
  %v691 = vadd.f32 %v690, 1.0
  %v692 = vrcp.pop %v691
  %v693 = vmul.f32 %v691, %v692
  %v694 = vsub.f32 1.0, %v693
  %v695 = vmul.f32 %v692, %v694
  %v696 = vadd.f32 %v692, %v695
  %vm697 = vweird.f32 %v691
  %vm698 = vweird.f32 %v692
  %vm699 = vmor %vm697, %vm698
  %v700 = vsel %vm699, %v692, %v696
  %v701 = vand.u32 2147483647, %v691
  %vm702 = vcmp.eq.f32.partialorder %v701, 8.507059e+37
  %v703 = vand.u32 %v691, 2147483648
  %v704 = vor.u32 1.1754944e-38, %v703
  %v705 = vsel %vm702, %v704, %v700
  %v706 = vmul.f32 1.0, %v705
  %708 = vrot.lane.b32.xlu0 %v600, 64
  %v709 = vpop.permute.xlu0 %708
  %v711 = vmul.f32 %v686, %v709
  %713 = vrot.lane.b32.xlu0 %v711, 64
  %v714 = vpop.permute.xlu0 %713
  %v716 = vadd.f32 %v666, %v714
  %v717 = vtanh.pop %v716
  %v718 = vsub.f32 1.0, %v706
  %720 = vrot.lane.b32.xlu0 %v717, 96
  %v721 = vpop.permute.xlu0 %720
  %v723 = vmul.f32 %v718, %v721
  %v724 = vmul.f32 %v706, 0.0
  %v725 = vadd.f32 %v723, %v724
  %vm726 = vcmp.gt.s32.totalorder %v385, 7
  %v727 = vsel %vm726, 1, 0
  %728 = vset.pattern.permute.xlu0 0
  %729 = vperm.xlu0 %728, %v727
  %v730 = vpop.permute.xlu0 %729
  %vm731 = vcmp.eq.s32.totalorder %v730, 1
  %v732 = vsel %vm731, %v725, 0.0
  %734 = vrot.lane.b32.xlu0 %v653, 96
  %v735 = vpop.permute.xlu0 %734
  %738 = vrot.lane.b32.xlu0 %v732, 32
  %v739 = vpop.permute.xlu0 %738
  %v741 = vsel %vm495, %v735, %v739
  %v742 = vpack.c.bf16 %v741, %v741
  %v744 = vsel %vm573, %v742, 0
  %746 = vmatpush.bf16.msra.mxu0 0
  %747 = vmatpush.bf16.msra.mxu0 0
  %748 = vmatpush.bf16.msra.mxu0 0
  %749 = vmatpush.bf16.msra.mxu0 0
  %750 = vmatpush.bf16.msra.mxu0 %v563
  %751 = vmatpush.bf16.msra.mxu0 %v561
  %752 = vmatpush.bf16.msra.mxu0 %v559
  %753 = vmatpush.bf16.msra.mxu0 %v557
  %754 = vmatmul.bf16.gmra.mxu0 %v744
  %v755 = vpop.f32.mrf.mxu0
  %v756 = vadd.f32 %v529, %v755
  %v757 = vpop.f32.mrf.mxu0
  %758 = vdwg.mxu0
  %759 = vmatpush.bf16.msra.mxu0 0
  %760 = vmatpush.bf16.msra.mxu0 0
  %761 = vmatpush.bf16.msra.mxu0 0
  %762 = vmatpush.bf16.msra.mxu0 0
  %763 = vmatpush.bf16.msra.mxu0 %v564
  %764 = vmatpush.bf16.msra.mxu0 %v562
  %765 = vmatpush.bf16.msra.mxu0 %v560
  %766 = vmatpush.bf16.msra.mxu0 %v558
  %767 = vmatmul.bf16.gmra.mxu0 %v744
  %v768 = vpop.f32.mrf.mxu0
  %v769 = vadd.f32 %v530, %v768
  %v770 = vpop.f32.mrf.mxu0
  %771 = vdwg.mxu0
  %v772 = vrot.slane %v509, 1
  %v774 = vsel %vm606, %v772, %v511
  %v775 = vadd.f32 %v774, %v756
  %v776 = vxor.u32 %v775, 2147483648
  %v777 = vmul.f32 %v776, 1.442695
  %v778 = vpow.pop %v777
  %v779 = vadd.f32 %v778, 1.0
  %v780 = vrcp.pop %v779
  %v781 = vmul.f32 %v779, %v780
  %v782 = vsub.f32 1.0, %v781
  %v783 = vmul.f32 %v780, %v782
  %v784 = vadd.f32 %v780, %v783
  %vm785 = vweird.f32 %v779
  %vm786 = vweird.f32 %v780
  %vm787 = vmor %vm785, %vm786
  %v788 = vsel %vm787, %v780, %v784
  %v789 = vand.u32 2147483647, %v779
  %vm790 = vcmp.eq.f32.partialorder %v789, 8.507059e+37
  %v791 = vand.u32 %v779, 2147483648
  %v792 = vor.u32 1.1754944e-38, %v791
  %v793 = vsel %vm790, %v792, %v788
  %v794 = vmul.f32 1.0, %v793
  %796 = vrot.lane.b32.xlu0 %v756, 64
  %v797 = vpop.permute.xlu0 %796
  %v799 = vmul.f32 %v794, %v797
  %801 = vrot.lane.b32.xlu0 %v799, 64
  %v802 = vpop.permute.xlu0 %801
  %v804 = vadd.f32 %v774, %v802
  %v805 = vtanh.pop %v804
  %v806 = vsub.f32 1.0, %v794
  %808 = vrot.lane.b32.xlu0 %v805, 96
  %v809 = vpop.permute.xlu0 %808
  %v811 = vmul.f32 %v806, %v809
  %v812 = vmul.f32 %v794, %v653
  %v813 = vadd.f32 %v811, %v812
  %vm814 = vcmp.gt.s32.totalorder %v385, 1
  %v815 = vsel %vm814, 1, 0
  %816 = vset.pattern.permute.xlu0 0
  %817 = vperm.xlu0 %816, %v815
  %v818 = vpop.permute.xlu0 %817
  %vm819 = vcmp.eq.s32.totalorder %v818, 1
  %v820 = vsel %vm819, %v813, %v653
  %v821 = vsel %vm819, %v813, 0.0
  %v822 = vrot.slane %v509, 6
  %v823 = vrot.slane %v523, 6
  %v826 = vrot.slane %v511, 5
  %v827 = vrot.slane %v525, 5
  %v830 = vsel %vm606, %v822, %v826
  %v831 = vsel %vm606, %v823, %v827
  %v832 = vadd.f32 %v830, %v756
  %v833 = vxor.u32 %v832, 2147483648
  %v834 = vmul.f32 %v833, 1.442695
  %v835 = vpow.pop %v834
  %v836 = vadd.f32 %v835, 1.0
  %v837 = vrcp.pop %v836
  %v838 = vmul.f32 %v836, %v837
  %v839 = vsub.f32 1.0, %v838
  %v840 = vmul.f32 %v837, %v839
  %v841 = vadd.f32 %v837, %v840
  %vm842 = vweird.f32 %v836
  %vm843 = vweird.f32 %v837
  %vm844 = vmor %vm842, %vm843
  %v845 = vsel %vm844, %v837, %v841
  %v846 = vand.u32 2147483647, %v836
  %vm847 = vcmp.eq.f32.partialorder %v846, 8.507059e+37
  %v848 = vand.u32 %v836, 2147483648
  %v849 = vor.u32 1.1754944e-38, %v848
  %v850 = vsel %vm847, %v849, %v845
  %v851 = vmul.f32 1.0, %v850
  %v852 = vadd.f32 %v831, %v769
  %v853 = vxor.u32 %v852, 2147483648
  %v854 = vmul.f32 %v853, 1.442695
  %v855 = vpow.pop %v854
  %v856 = vadd.f32 %v855, 1.0
  %v857 = vrcp.pop %v856
  %v858 = vmul.f32 %v856, %v857
  %v859 = vsub.f32 1.0, %v858
  %v860 = vmul.f32 %v857, %v859
  %v861 = vadd.f32 %v857, %v860
  %vm862 = vweird.f32 %v856
  %vm863 = vweird.f32 %v857
  %vm864 = vmor %vm862, %vm863
  %v865 = vsel %vm864, %v857, %v861
  %v866 = vand.u32 2147483647, %v856
  %vm867 = vcmp.eq.f32.partialorder %v866, 8.507059e+37
  %v868 = vand.u32 %v856, 2147483648
  %v869 = vor.u32 1.1754944e-38, %v868
  %v870 = vsel %vm867, %v869, %v865
  %v871 = vmul.f32 1.0, %v870
  %873 = vrot.lane.b32.xlu0 %v769, 64
  %v874 = vpop.permute.xlu0 %873
  %v876 = vmul.f32 %v851, %v874
  %878 = vrot.lane.b32.xlu0 %v876, 64
  %v879 = vpop.permute.xlu0 %878
  %v881 = vadd.f32 %v831, %v879
  %v882 = vtanh.pop %v881
  %v883 = vsub.f32 1.0, %v871
  %885 = vrot.lane.b32.xlu0 %v882, 96
  %v886 = vpop.permute.xlu0 %885
  %v888 = vmul.f32 %v883, %v886
  %v889 = vmul.f32 %v871, %v732
  %v890 = vadd.f32 %v888, %v889
  %vm891 = vcmp.gt.s32.totalorder %v385, 6
  %v892 = vsel %vm891, 1, 0
  %893 = vset.pattern.permute.xlu0 0
  %894 = vperm.xlu0 %893, %v892
  %v895 = vpop.permute.xlu0 %894
  %vm896 = vcmp.eq.s32.totalorder %v895, 1
  %v897 = vsel %vm896, %v890, %v732
  %v898 = vsel %vm896, %v890, 0.0
  %900 = vrot.lane.b32.xlu0 %v820, 96
  %v901 = vpop.permute.xlu0 %900
  %904 = vrot.lane.b32.xlu0 %v897, 32
  %v905 = vpop.permute.xlu0 %904
  %v907 = vsel %vm495, %v901, %v905
  %v908 = vpack.c.bf16 %v907, %v907
  %v910 = vsel %vm573, %v908, 0
  %912 = vmatpush.bf16.msra.mxu0 0
  %913 = vmatpush.bf16.msra.mxu0 0
  %914 = vmatpush.bf16.msra.mxu0 0
  %915 = vmatpush.bf16.msra.mxu0 0
  %916 = vmatpush.bf16.msra.mxu0 %v563
  %917 = vmatpush.bf16.msra.mxu0 %v561
  %918 = vmatpush.bf16.msra.mxu0 %v559
  %919 = vmatpush.bf16.msra.mxu0 %v557
  %920 = vmatmul.bf16.gmra.mxu0 %v910
  %v921 = vpop.f32.mrf.mxu0
  %v922 = vadd.f32 %v529, %v921
  %v923 = vpop.f32.mrf.mxu0
  %924 = vdwg.mxu0
  %925 = vmatpush.bf16.msra.mxu0 0
  %926 = vmatpush.bf16.msra.mxu0 0
  %927 = vmatpush.bf16.msra.mxu0 0
  %928 = vmatpush.bf16.msra.mxu0 0
  %929 = vmatpush.bf16.msra.mxu0 %v564
  %930 = vmatpush.bf16.msra.mxu0 %v562
  %931 = vmatpush.bf16.msra.mxu0 %v560
  %932 = vmatpush.bf16.msra.mxu0 %v558
  %933 = vmatmul.bf16.gmra.mxu0 %v910
  %v934 = vpop.f32.mrf.mxu0
  %v935 = vadd.f32 %v530, %v934
  %v936 = vpop.f32.mrf.mxu0
  %937 = vdwg.mxu0
  %v938 = vrot.slane %v509, 2
  %v940 = vrot.slane %v511, 1
  %v942 = vsel %vm606, %v938, %v940
  %v943 = vadd.f32 %v942, %v922
  %v944 = vxor.u32 %v943, 2147483648
  %v945 = vmul.f32 %v944, 1.442695
  %v946 = vpow.pop %v945
  %v947 = vadd.f32 %v946, 1.0
  %v948 = vrcp.pop %v947
  %v949 = vmul.f32 %v947, %v948
  %v950 = vsub.f32 1.0, %v949
  %v951 = vmul.f32 %v948, %v950
  %v952 = vadd.f32 %v948, %v951
  %vm953 = vweird.f32 %v947
  %vm954 = vweird.f32 %v948
  %vm955 = vmor %vm953, %vm954
  %v956 = vsel %vm955, %v948, %v952
  %v957 = vand.u32 2147483647, %v947
  %vm958 = vcmp.eq.f32.partialorder %v957, 8.507059e+37
  %v959 = vand.u32 %v947, 2147483648
  %v960 = vor.u32 1.1754944e-38, %v959
  %v961 = vsel %vm958, %v960, %v956
  %v962 = vmul.f32 1.0, %v961
  %964 = vrot.lane.b32.xlu0 %v922, 64
  %v965 = vpop.permute.xlu0 %964
  %v967 = vmul.f32 %v962, %v965
  %969 = vrot.lane.b32.xlu0 %v967, 64
  %v970 = vpop.permute.xlu0 %969
  %v972 = vadd.f32 %v942, %v970
  %v973 = vtanh.pop %v972
  %v974 = vsub.f32 1.0, %v962
  %976 = vrot.lane.b32.xlu0 %v973, 96
  %v977 = vpop.permute.xlu0 %976
  %v979 = vmul.f32 %v974, %v977
  %v980 = vmul.f32 %v962, %v820
  %v981 = vadd.f32 %v979, %v980
  %vm982 = vcmp.gt.s32.totalorder %v385, 2
  %v983 = vsel %vm982, 1, 0
  %984 = vset.pattern.permute.xlu0 0
  %985 = vperm.xlu0 %984, %v983
  %v986 = vpop.permute.xlu0 %985
  %vm987 = vcmp.eq.s32.totalorder %v986, 1
  %v988 = vsel %vm987, %v981, %v820
  %v989 = vsel %vm987, %v981, 0.0
  %v990 = vrot.slane %v509, 5
  %v991 = vrot.slane %v523, 5
  %v994 = vrot.slane %v511, 4
  %v995 = vrot.slane %v525, 4
  %v998 = vsel %vm606, %v990, %v994
  %v999 = vsel %vm606, %v991, %v995
  %v1000 = vadd.f32 %v998, %v922
  %v1001 = vxor.u32 %v1000, 2147483648
  %v1002 = vmul.f32 %v1001, 1.442695
  %v1003 = vpow.pop %v1002
  %v1004 = vadd.f32 %v1003, 1.0
  %v1005 = vrcp.pop %v1004
  %v1006 = vmul.f32 %v1004, %v1005
  %v1007 = vsub.f32 1.0, %v1006
  %v1008 = vmul.f32 %v1005, %v1007
  %v1009 = vadd.f32 %v1005, %v1008
  %vm1010 = vweird.f32 %v1004
  %vm1011 = vweird.f32 %v1005
  %vm1012 = vmor %vm1010, %vm1011
  %v1013 = vsel %vm1012, %v1005, %v1009
  %v1014 = vand.u32 2147483647, %v1004
  %vm1015 = vcmp.eq.f32.partialorder %v1014, 8.507059e+37
  %v1016 = vand.u32 %v1004, 2147483648
  %v1017 = vor.u32 1.1754944e-38, %v1016
  %v1018 = vsel %vm1015, %v1017, %v1013
  %v1019 = vmul.f32 1.0, %v1018
  %v1020 = vadd.f32 %v999, %v935
  %v1021 = vxor.u32 %v1020, 2147483648
  %v1022 = vmul.f32 %v1021, 1.442695
  %v1023 = vpow.pop %v1022
  %v1024 = vadd.f32 %v1023, 1.0
  %v1025 = vrcp.pop %v1024
  %v1026 = vmul.f32 %v1024, %v1025
  %v1027 = vsub.f32 1.0, %v1026
  %v1028 = vmul.f32 %v1025, %v1027
  %v1029 = vadd.f32 %v1025, %v1028
  %vm1030 = vweird.f32 %v1024
  %vm1031 = vweird.f32 %v1025
  %vm1032 = vmor %vm1030, %vm1031
  %v1033 = vsel %vm1032, %v1025, %v1029
  %v1034 = vand.u32 2147483647, %v1024
  %vm1035 = vcmp.eq.f32.partialorder %v1034, 8.507059e+37
  %v1036 = vand.u32 %v1024, 2147483648
  %v1037 = vor.u32 1.1754944e-38, %v1036
  %v1038 = vsel %vm1035, %v1037, %v1033
  %v1039 = vmul.f32 1.0, %v1038
  %1041 = vrot.lane.b32.xlu0 %v935, 64
  %v1042 = vpop.permute.xlu0 %1041
  %v1044 = vmul.f32 %v1019, %v1042
  %1046 = vrot.lane.b32.xlu0 %v1044, 64
  %v1047 = vpop.permute.xlu0 %1046
  %v1049 = vadd.f32 %v999, %v1047
  %v1050 = vtanh.pop %v1049
  %v1051 = vsub.f32 1.0, %v1039
  %1053 = vrot.lane.b32.xlu0 %v1050, 96
  %v1054 = vpop.permute.xlu0 %1053
  %v1056 = vmul.f32 %v1051, %v1054
  %v1057 = vmul.f32 %v1039, %v897
  %v1058 = vadd.f32 %v1056, %v1057
  %vm1059 = vcmp.gt.s32.totalorder %v385, 5
  %v1060 = vsel %vm1059, 1, 0
  %1061 = vset.pattern.permute.xlu0 0
  %1062 = vperm.xlu0 %1061, %v1060
  %v1063 = vpop.permute.xlu0 %1062
  %vm1064 = vcmp.eq.s32.totalorder %v1063, 1
  %v1065 = vsel %vm1064, %v1058, %v897
  %v1066 = vsel %vm1064, %v1058, 0.0
  %1068 = vrot.lane.b32.xlu0 %v988, 96
  %v1069 = vpop.permute.xlu0 %1068
  %1072 = vrot.lane.b32.xlu0 %v1065, 32
  %v1073 = vpop.permute.xlu0 %1072
  %v1075 = vsel %vm495, %v1069, %v1073
  %v1076 = vpack.c.bf16 %v1075, %v1075
  %v1078 = vsel %vm573, %v1076, 0
  %1080 = vmatpush.bf16.msra.mxu0 0
  %1081 = vmatpush.bf16.msra.mxu0 0
  %1082 = vmatpush.bf16.msra.mxu0 0
  %1083 = vmatpush.bf16.msra.mxu0 0
  %1084 = vmatpush.bf16.msra.mxu0 %v563
  %1085 = vmatpush.bf16.msra.mxu0 %v561
  %1086 = vmatpush.bf16.msra.mxu0 %v559
  %1087 = vmatpush.bf16.msra.mxu0 %v557
  %1088 = vmatmul.bf16.gmra.mxu0 %v1078
  %v1089 = vpop.f32.mrf.mxu0
  %v1090 = vadd.f32 %v529, %v1089
  %v1091 = vpop.f32.mrf.mxu0
  %1092 = vdwg.mxu0
  %1093 = vmatpush.bf16.msra.mxu0 0
  %1094 = vmatpush.bf16.msra.mxu0 0
  %1095 = vmatpush.bf16.msra.mxu0 0
  %1096 = vmatpush.bf16.msra.mxu0 0
  %1097 = vmatpush.bf16.msra.mxu0 %v564
  %1098 = vmatpush.bf16.msra.mxu0 %v562
  %1099 = vmatpush.bf16.msra.mxu0 %v560
  %1100 = vmatpush.bf16.msra.mxu0 %v558
  %1101 = vmatmul.bf16.gmra.mxu0 %v1078
  %v1102 = vpop.f32.mrf.mxu0
  %v1103 = vadd.f32 %v530, %v1102
  %v1104 = vpop.f32.mrf.mxu0
  %1105 = vdwg.mxu0
  %v1106 = vrot.slane %v509, 3
  %v1108 = vrot.slane %v511, 2
  %v1110 = vsel %vm606, %v1106, %v1108
  %v1111 = vadd.f32 %v1110, %v1090
  %v1112 = vxor.u32 %v1111, 2147483648
  %v1113 = vmul.f32 %v1112, 1.442695
  %v1114 = vpow.pop %v1113
  %v1115 = vadd.f32 %v1114, 1.0
  %v1116 = vrcp.pop %v1115
  %v1117 = vmul.f32 %v1115, %v1116
  %v1118 = vsub.f32 1.0, %v1117
  %v1119 = vmul.f32 %v1116, %v1118
  %v1120 = vadd.f32 %v1116, %v1119
  %vm1121 = vweird.f32 %v1115
  %vm1122 = vweird.f32 %v1116
  %vm1123 = vmor %vm1121, %vm1122
  %v1124 = vsel %vm1123, %v1116, %v1120
  %v1125 = vand.u32 2147483647, %v1115
  %vm1126 = vcmp.eq.f32.partialorder %v1125, 8.507059e+37
  %v1127 = vand.u32 %v1115, 2147483648
  %v1128 = vor.u32 1.1754944e-38, %v1127
  %v1129 = vsel %vm1126, %v1128, %v1124
  %v1130 = vmul.f32 1.0, %v1129
  %1132 = vrot.lane.b32.xlu0 %v1090, 64
  %v1133 = vpop.permute.xlu0 %1132
  %v1135 = vmul.f32 %v1130, %v1133
  %1137 = vrot.lane.b32.xlu0 %v1135, 64
  %v1138 = vpop.permute.xlu0 %1137
  %v1140 = vadd.f32 %v1110, %v1138
  %v1141 = vtanh.pop %v1140
  %v1142 = vsub.f32 1.0, %v1130
  %1144 = vrot.lane.b32.xlu0 %v1141, 96
  %v1145 = vpop.permute.xlu0 %1144
  %v1147 = vmul.f32 %v1142, %v1145
  %v1148 = vmul.f32 %v1130, %v988
  %v1149 = vadd.f32 %v1147, %v1148
  %vm1150 = vcmp.gt.s32.totalorder %v385, 3
  %v1151 = vsel %vm1150, 1, 0
  %1152 = vset.pattern.permute.xlu0 0
  %1153 = vperm.xlu0 %1152, %v1151
  %v1154 = vpop.permute.xlu0 %1153
  %vm1155 = vcmp.eq.s32.totalorder %v1154, 1
  %v1156 = vsel %vm1155, %v1149, %v988
  %v1157 = vsel %vm1155, %v1149, 0.0
  %v1158 = vrot.slane %v509, 4
  %v1159 = vrot.slane %v523, 4
  %v1162 = vrot.slane %v511, 3
  %v1163 = vrot.slane %v525, 3
  %v1166 = vsel %vm606, %v1158, %v1162
  %v1167 = vsel %vm606, %v1159, %v1163
  %v1168 = vadd.f32 %v1166, %v1090
  %v1169 = vxor.u32 %v1168, 2147483648
  %v1170 = vmul.f32 %v1169, 1.442695
  %v1171 = vpow.pop %v1170
  %v1172 = vadd.f32 %v1171, 1.0
  %v1173 = vrcp.pop %v1172
  %v1174 = vmul.f32 %v1172, %v1173
  %v1175 = vsub.f32 1.0, %v1174
  %v1176 = vmul.f32 %v1173, %v1175
  %v1177 = vadd.f32 %v1173, %v1176
  %vm1178 = vweird.f32 %v1172
  %vm1179 = vweird.f32 %v1173
  %vm1180 = vmor %vm1178, %vm1179
  %v1181 = vsel %vm1180, %v1173, %v1177
  %v1182 = vand.u32 2147483647, %v1172
  %vm1183 = vcmp.eq.f32.partialorder %v1182, 8.507059e+37
  %v1184 = vand.u32 %v1172, 2147483648
  %v1185 = vor.u32 1.1754944e-38, %v1184
  %v1186 = vsel %vm1183, %v1185, %v1181
  %v1187 = vmul.f32 1.0, %v1186
  %v1188 = vadd.f32 %v1167, %v1103
  %v1189 = vxor.u32 %v1188, 2147483648
  %v1190 = vmul.f32 %v1189, 1.442695
  %v1191 = vpow.pop %v1190
  %v1192 = vadd.f32 %v1191, 1.0
  %v1193 = vrcp.pop %v1192
  %v1194 = vmul.f32 %v1192, %v1193
  %v1195 = vsub.f32 1.0, %v1194
  %v1196 = vmul.f32 %v1193, %v1195
  %v1197 = vadd.f32 %v1193, %v1196
  %vm1198 = vweird.f32 %v1192
  %vm1199 = vweird.f32 %v1193
  %vm1200 = vmor %vm1198, %vm1199
  %v1201 = vsel %vm1200, %v1193, %v1197
  %v1202 = vand.u32 2147483647, %v1192
  %vm1203 = vcmp.eq.f32.partialorder %v1202, 8.507059e+37
  %v1204 = vand.u32 %v1192, 2147483648
  %v1205 = vor.u32 1.1754944e-38, %v1204
  %v1206 = vsel %vm1203, %v1205, %v1201
  %v1207 = vmul.f32 1.0, %v1206
  %1209 = vrot.lane.b32.xlu0 %v1103, 64
  %v1210 = vpop.permute.xlu0 %1209
  %v1212 = vmul.f32 %v1187, %v1210
  %1214 = vrot.lane.b32.xlu0 %v1212, 64
  %v1215 = vpop.permute.xlu0 %1214
  %v1217 = vadd.f32 %v1167, %v1215
  %v1218 = vtanh.pop %v1217
  %v1219 = vsub.f32 1.0, %v1207
  %1221 = vrot.lane.b32.xlu0 %v1218, 96
  %v1222 = vpop.permute.xlu0 %1221
  %v1224 = vmul.f32 %v1219, %v1222
  %v1225 = vmul.f32 %v1207, %v1065
  %v1226 = vadd.f32 %v1224, %v1225
  %vm1227 = vcmp.gt.s32.totalorder %v385, 4
  %v1228 = vsel %vm1227, 1, 0
  %1229 = vset.pattern.permute.xlu0 0
  %1230 = vperm.xlu0 %1229, %v1228
  %v1231 = vpop.permute.xlu0 %1230
  %vm1232 = vcmp.eq.s32.totalorder %v1231, 1
  %v1233 = vsel %vm1232, %v1226, %v1065
  %v1234 = vsel %vm1232, %v1226, 0.0
  %1236 = vrot.lane.b32.xlu0 %v1156, 96
  %v1237 = vpop.permute.xlu0 %1236
  %1240 = vrot.lane.b32.xlu0 %v1233, 32
  %v1241 = vpop.permute.xlu0 %1240
  %v1243 = vsel %vm495, %v1237, %v1241
  %v1244 = vpack.c.bf16 %v1243, %v1243
  %v1246 = vsel %vm573, %v1244, 0
  %1248 = vmatpush.bf16.msra.mxu0 0
  %1249 = vmatpush.bf16.msra.mxu0 0
  %1250 = vmatpush.bf16.msra.mxu0 0
  %1251 = vmatpush.bf16.msra.mxu0 0
  %1252 = vmatpush.bf16.msra.mxu0 %v563
  %1253 = vmatpush.bf16.msra.mxu0 %v561
  %1254 = vmatpush.bf16.msra.mxu0 %v559
  %1255 = vmatpush.bf16.msra.mxu0 %v557
  %1256 = vmatmul.bf16.gmra.mxu0 %v1246
  %v1257 = vpop.f32.mrf.mxu0
  %v1258 = vadd.f32 %v529, %v1257
  %v1259 = vpop.f32.mrf.mxu0
  %1260 = vdwg.mxu0
  %1261 = vmatpush.bf16.msra.mxu0 0
  %1262 = vmatpush.bf16.msra.mxu0 0
  %1263 = vmatpush.bf16.msra.mxu0 0
  %1264 = vmatpush.bf16.msra.mxu0 0
  %1265 = vmatpush.bf16.msra.mxu0 %v564
  %1266 = vmatpush.bf16.msra.mxu0 %v562
  %1267 = vmatpush.bf16.msra.mxu0 %v560
  %1268 = vmatpush.bf16.msra.mxu0 %v558
  %1269 = vmatmul.bf16.gmra.mxu0 %v1246
  %v1270 = vpop.f32.mrf.mxu0
  %v1271 = vadd.f32 %v530, %v1270
  %v1272 = vpop.f32.mrf.mxu0
  %1273 = vdwg.mxu0
  %v1274 = vadd.f32 %v1166, %v1258
  %v1275 = vxor.u32 %v1274, 2147483648
  %v1276 = vmul.f32 %v1275, 1.442695
  %v1277 = vpow.pop %v1276
  %v1278 = vadd.f32 %v1277, 1.0
  %v1279 = vrcp.pop %v1278
  %v1280 = vmul.f32 %v1278, %v1279
  %v1281 = vsub.f32 1.0, %v1280
  %v1282 = vmul.f32 %v1279, %v1281
  %v1283 = vadd.f32 %v1279, %v1282
  %vm1284 = vweird.f32 %v1278
  %vm1285 = vweird.f32 %v1279
  %vm1286 = vmor %vm1284, %vm1285
  %v1287 = vsel %vm1286, %v1279, %v1283
  %v1288 = vand.u32 2147483647, %v1278
  %vm1289 = vcmp.eq.f32.partialorder %v1288, 8.507059e+37
  %v1290 = vand.u32 %v1278, 2147483648
  %v1291 = vor.u32 1.1754944e-38, %v1290
  %v1292 = vsel %vm1289, %v1291, %v1287
  %v1293 = vmul.f32 1.0, %v1292
  %1295 = vrot.lane.b32.xlu0 %v1258, 64
  %v1296 = vpop.permute.xlu0 %1295
  %v1298 = vmul.f32 %v1293, %v1296
  %1300 = vrot.lane.b32.xlu0 %v1298, 64
  %v1301 = vpop.permute.xlu0 %1300
  %v1303 = vadd.f32 %v1166, %v1301
  %v1304 = vtanh.pop %v1303
  %v1305 = vsub.f32 1.0, %v1293
  %1307 = vrot.lane.b32.xlu0 %v1304, 96
  %v1308 = vpop.permute.xlu0 %1307
  %v1310 = vmul.f32 %v1305, %v1308
  %v1311 = vmul.f32 %v1293, %v1156
  %v1312 = vadd.f32 %v1310, %v1311
  %v1313 = vsel %vm1232, %v1312, %v1156
  %v1314 = vsel %vm1232, %v1312, 0.0
  %v1315 = vrot.slane %v523, 3
  %v1317 = vrot.slane %v525, 2
  %v1319 = vsel %vm606, %v1315, %v1317
  %v1320 = vadd.f32 %v1110, %v1258
  %v1321 = vxor.u32 %v1320, 2147483648
  %v1322 = vmul.f32 %v1321, 1.442695
  %v1323 = vpow.pop %v1322
  %v1324 = vadd.f32 %v1323, 1.0
  %v1325 = vrcp.pop %v1324
  %v1326 = vmul.f32 %v1324, %v1325
  %v1327 = vsub.f32 1.0, %v1326
  %v1328 = vmul.f32 %v1325, %v1327
  %v1329 = vadd.f32 %v1325, %v1328
  %vm1330 = vweird.f32 %v1324
  %vm1331 = vweird.f32 %v1325
  %vm1332 = vmor %vm1330, %vm1331
  %v1333 = vsel %vm1332, %v1325, %v1329
  %v1334 = vand.u32 2147483647, %v1324
  %vm1335 = vcmp.eq.f32.partialorder %v1334, 8.507059e+37
  %v1336 = vand.u32 %v1324, 2147483648
  %v1337 = vor.u32 1.1754944e-38, %v1336
  %v1338 = vsel %vm1335, %v1337, %v1333
  %v1339 = vmul.f32 1.0, %v1338
  %v1340 = vadd.f32 %v1319, %v1271
  %v1341 = vxor.u32 %v1340, 2147483648
  %v1342 = vmul.f32 %v1341, 1.442695
  %v1343 = vpow.pop %v1342
  %v1344 = vadd.f32 %v1343, 1.0
  %v1345 = vrcp.pop %v1344
  %v1346 = vmul.f32 %v1344, %v1345
  %v1347 = vsub.f32 1.0, %v1346
  %v1348 = vmul.f32 %v1345, %v1347
  %v1349 = vadd.f32 %v1345, %v1348
  %vm1350 = vweird.f32 %v1344
  %vm1351 = vweird.f32 %v1345
  %vm1352 = vmor %vm1350, %vm1351
  %v1353 = vsel %vm1352, %v1345, %v1349
  %v1354 = vand.u32 2147483647, %v1344
  %vm1355 = vcmp.eq.f32.partialorder %v1354, 8.507059e+37
  %v1356 = vand.u32 %v1344, 2147483648
  %v1357 = vor.u32 1.1754944e-38, %v1356
  %v1358 = vsel %vm1355, %v1357, %v1353
  %v1359 = vmul.f32 1.0, %v1358
  %1361 = vrot.lane.b32.xlu0 %v1271, 64
  %v1362 = vpop.permute.xlu0 %1361
  %v1364 = vmul.f32 %v1339, %v1362
  %1366 = vrot.lane.b32.xlu0 %v1364, 64
  %v1367 = vpop.permute.xlu0 %1366
  %v1369 = vadd.f32 %v1319, %v1367
  %v1370 = vtanh.pop %v1369
  %v1371 = vsub.f32 1.0, %v1359
  %1373 = vrot.lane.b32.xlu0 %v1370, 96
  %v1374 = vpop.permute.xlu0 %1373
  %v1376 = vmul.f32 %v1371, %v1374
  %v1377 = vmul.f32 %v1359, %v1233
  %v1378 = vadd.f32 %v1376, %v1377
  %v1379 = vsel %vm1155, %v1378, %v1233
  %v1380 = vsel %vm1155, %v1378, 0.0
  %1382 = vrot.lane.b32.xlu0 %v1313, 96
  %v1383 = vpop.permute.xlu0 %1382
  %1386 = vrot.lane.b32.xlu0 %v1379, 32
  %v1387 = vpop.permute.xlu0 %1386
  %v1389 = vsel %vm495, %v1383, %v1387
  %v1390 = vpack.c.bf16 %v1389, %v1389
  %v1392 = vsel %vm573, %v1390, 0
  %1394 = vmatpush.bf16.msra.mxu0 0
  %1395 = vmatpush.bf16.msra.mxu0 0
  %1396 = vmatpush.bf16.msra.mxu0 0
  %1397 = vmatpush.bf16.msra.mxu0 0
  %1398 = vmatpush.bf16.msra.mxu0 %v563
  %1399 = vmatpush.bf16.msra.mxu0 %v561
  %1400 = vmatpush.bf16.msra.mxu0 %v559
  %1401 = vmatpush.bf16.msra.mxu0 %v557
  %1402 = vmatmul.bf16.gmra.mxu0 %v1392
  %v1403 = vpop.f32.mrf.mxu0
  %v1404 = vadd.f32 %v529, %v1403
  %v1405 = vpop.f32.mrf.mxu0
  %1406 = vdwg.mxu0
  %1407 = vmatpush.bf16.msra.mxu0 0
  %1408 = vmatpush.bf16.msra.mxu0 0
  %1409 = vmatpush.bf16.msra.mxu0 0
  %1410 = vmatpush.bf16.msra.mxu0 0
  %1411 = vmatpush.bf16.msra.mxu0 %v564
  %1412 = vmatpush.bf16.msra.mxu0 %v562
  %1413 = vmatpush.bf16.msra.mxu0 %v560
  %1414 = vmatpush.bf16.msra.mxu0 %v558
  %1415 = vmatmul.bf16.gmra.mxu0 %v1392
  %v1416 = vpop.f32.mrf.mxu0
  %v1417 = vadd.f32 %v530, %v1416
  %v1418 = vpop.f32.mrf.mxu0
  %1419 = vdwg.mxu0
  %v1420 = vadd.f32 %v998, %v1404
  %v1421 = vxor.u32 %v1420, 2147483648
  %v1422 = vmul.f32 %v1421, 1.442695
  %v1423 = vpow.pop %v1422
  %v1424 = vadd.f32 %v1423, 1.0
  %v1425 = vrcp.pop %v1424
  %v1426 = vmul.f32 %v1424, %v1425
  %v1427 = vsub.f32 1.0, %v1426
  %v1428 = vmul.f32 %v1425, %v1427
  %v1429 = vadd.f32 %v1425, %v1428
  %vm1430 = vweird.f32 %v1424
  %vm1431 = vweird.f32 %v1425
  %vm1432 = vmor %vm1430, %vm1431
  %v1433 = vsel %vm1432, %v1425, %v1429
  %v1434 = vand.u32 2147483647, %v1424
  %vm1435 = vcmp.eq.f32.partialorder %v1434, 8.507059e+37
  %v1436 = vand.u32 %v1424, 2147483648
  %v1437 = vor.u32 1.1754944e-38, %v1436
  %v1438 = vsel %vm1435, %v1437, %v1433
  %v1439 = vmul.f32 1.0, %v1438
  %1441 = vrot.lane.b32.xlu0 %v1404, 64
  %v1442 = vpop.permute.xlu0 %1441
  %v1444 = vmul.f32 %v1439, %v1442
  %1446 = vrot.lane.b32.xlu0 %v1444, 64
  %v1447 = vpop.permute.xlu0 %1446
  %v1449 = vadd.f32 %v998, %v1447
  %v1450 = vtanh.pop %v1449
  %v1451 = vsub.f32 1.0, %v1439
  %1453 = vrot.lane.b32.xlu0 %v1450, 96
  %v1454 = vpop.permute.xlu0 %1453
  %v1456 = vmul.f32 %v1451, %v1454
  %v1457 = vmul.f32 %v1439, %v1313
  %v1458 = vadd.f32 %v1456, %v1457
  %v1459 = vsel %vm1064, %v1458, %v1313
  %v1460 = vsel %vm1064, %v1458, 0.0
  %v1461 = vrot.slane %v523, 2
  %v1463 = vrot.slane %v525, 1
  %v1465 = vsel %vm606, %v1461, %v1463
  %v1466 = vadd.f32 %v942, %v1404
  %v1467 = vxor.u32 %v1466, 2147483648
  %v1468 = vmul.f32 %v1467, 1.442695
  %v1469 = vpow.pop %v1468
  %v1470 = vadd.f32 %v1469, 1.0
  %v1471 = vrcp.pop %v1470
  %v1472 = vmul.f32 %v1470, %v1471
  %v1473 = vsub.f32 1.0, %v1472
  %v1474 = vmul.f32 %v1471, %v1473
  %v1475 = vadd.f32 %v1471, %v1474
  %vm1476 = vweird.f32 %v1470
  %vm1477 = vweird.f32 %v1471
  %vm1478 = vmor %vm1476, %vm1477
  %v1479 = vsel %vm1478, %v1471, %v1475
  %v1480 = vand.u32 2147483647, %v1470
  %vm1481 = vcmp.eq.f32.partialorder %v1480, 8.507059e+37
  %v1482 = vand.u32 %v1470, 2147483648
  %v1483 = vor.u32 1.1754944e-38, %v1482
  %v1484 = vsel %vm1481, %v1483, %v1479
  %v1485 = vmul.f32 1.0, %v1484
  %v1486 = vadd.f32 %v1465, %v1417
  %v1487 = vxor.u32 %v1486, 2147483648
  %v1488 = vmul.f32 %v1487, 1.442695
  %v1489 = vpow.pop %v1488
  %v1490 = vadd.f32 %v1489, 1.0
  %v1491 = vrcp.pop %v1490
  %v1492 = vmul.f32 %v1490, %v1491
  %v1493 = vsub.f32 1.0, %v1492
  %v1494 = vmul.f32 %v1491, %v1493
  %v1495 = vadd.f32 %v1491, %v1494
  %vm1496 = vweird.f32 %v1490
  %vm1497 = vweird.f32 %v1491
  %vm1498 = vmor %vm1496, %vm1497
  %v1499 = vsel %vm1498, %v1491, %v1495
  %v1500 = vand.u32 2147483647, %v1490
  %vm1501 = vcmp.eq.f32.partialorder %v1500, 8.507059e+37
  %v1502 = vand.u32 %v1490, 2147483648
  %v1503 = vor.u32 1.1754944e-38, %v1502
  %v1504 = vsel %vm1501, %v1503, %v1499
  %v1505 = vmul.f32 1.0, %v1504
  %1507 = vrot.lane.b32.xlu0 %v1417, 64
  %v1508 = vpop.permute.xlu0 %1507
  %v1510 = vmul.f32 %v1485, %v1508
  %1512 = vrot.lane.b32.xlu0 %v1510, 64
  %v1513 = vpop.permute.xlu0 %1512
  %v1515 = vadd.f32 %v1465, %v1513
  %v1516 = vtanh.pop %v1515
  %v1517 = vsub.f32 1.0, %v1505
  %1519 = vrot.lane.b32.xlu0 %v1516, 96
  %v1520 = vpop.permute.xlu0 %1519
  %v1522 = vmul.f32 %v1517, %v1520
  %v1523 = vmul.f32 %v1505, %v1379
  %v1524 = vadd.f32 %v1522, %v1523
  %v1525 = vsel %vm987, %v1524, %v1379
  %v1526 = vsel %vm987, %v1524, 0.0
  %1528 = vrot.lane.b32.xlu0 %v1459, 96
  %v1529 = vpop.permute.xlu0 %1528
  %1532 = vrot.lane.b32.xlu0 %v1525, 32
  %v1533 = vpop.permute.xlu0 %1532
  %v1535 = vsel %vm495, %v1529, %v1533
  %v1536 = vpack.c.bf16 %v1535, %v1535
  %v1538 = vsel %vm573, %v1536, 0
  %1540 = vmatpush.bf16.msra.mxu0 0
  %1541 = vmatpush.bf16.msra.mxu0 0
  %1542 = vmatpush.bf16.msra.mxu0 0
  %1543 = vmatpush.bf16.msra.mxu0 0
  %1544 = vmatpush.bf16.msra.mxu0 %v563
  %1545 = vmatpush.bf16.msra.mxu0 %v561
  %1546 = vmatpush.bf16.msra.mxu0 %v559
  %1547 = vmatpush.bf16.msra.mxu0 %v557
  %1548 = vmatmul.bf16.gmra.mxu0 %v1538
  %v1549 = vpop.f32.mrf.mxu0
  %v1550 = vadd.f32 %v529, %v1549
  %v1551 = vpop.f32.mrf.mxu0
  %1552 = vdwg.mxu0
  %1553 = vmatpush.bf16.msra.mxu0 0
  %1554 = vmatpush.bf16.msra.mxu0 0
  %1555 = vmatpush.bf16.msra.mxu0 0
  %1556 = vmatpush.bf16.msra.mxu0 0
  %1557 = vmatpush.bf16.msra.mxu0 %v564
  %1558 = vmatpush.bf16.msra.mxu0 %v562
  %1559 = vmatpush.bf16.msra.mxu0 %v560
  %1560 = vmatpush.bf16.msra.mxu0 %v558
  %1561 = vmatmul.bf16.gmra.mxu0 %v1538
  %v1562 = vpop.f32.mrf.mxu0
  %v1563 = vadd.f32 %v530, %v1562
  %v1564 = vpop.f32.mrf.mxu0
  %1565 = vdwg.mxu0
  %v1566 = vadd.f32 %v830, %v1550
  %v1567 = vxor.u32 %v1566, 2147483648
  %v1568 = vmul.f32 %v1567, 1.442695
  %v1569 = vpow.pop %v1568
  %v1570 = vadd.f32 %v1569, 1.0
  %v1571 = vrcp.pop %v1570
  %v1572 = vmul.f32 %v1570, %v1571
  %v1573 = vsub.f32 1.0, %v1572
  %v1574 = vmul.f32 %v1571, %v1573
  %v1575 = vadd.f32 %v1571, %v1574
  %vm1576 = vweird.f32 %v1570
  %vm1577 = vweird.f32 %v1571
  %vm1578 = vmor %vm1576, %vm1577
  %v1579 = vsel %vm1578, %v1571, %v1575
  %v1580 = vand.u32 2147483647, %v1570
  %vm1581 = vcmp.eq.f32.partialorder %v1580, 8.507059e+37
  %v1582 = vand.u32 %v1570, 2147483648
  %v1583 = vor.u32 1.1754944e-38, %v1582
  %v1584 = vsel %vm1581, %v1583, %v1579
  %v1585 = vmul.f32 1.0, %v1584
  %1587 = vrot.lane.b32.xlu0 %v1550, 64
  %v1588 = vpop.permute.xlu0 %1587
  %v1590 = vmul.f32 %v1585, %v1588
  %1592 = vrot.lane.b32.xlu0 %v1590, 64
  %v1593 = vpop.permute.xlu0 %1592
  %v1595 = vadd.f32 %v830, %v1593
  %v1596 = vtanh.pop %v1595
  %v1597 = vsub.f32 1.0, %v1585
  %1599 = vrot.lane.b32.xlu0 %v1596, 96
  %v1600 = vpop.permute.xlu0 %1599
  %v1602 = vmul.f32 %v1597, %v1600
  %v1603 = vmul.f32 %v1585, %v1459
  %v1604 = vadd.f32 %v1602, %v1603
  %v1605 = vsel %vm896, %v1604, %v1459
  %v1606 = vsel %vm896, %v1604, 0.0
  %v1607 = vrot.slane %v523, 1
  %v1609 = vsel %vm606, %v1607, %v525
  %v1610 = vadd.f32 %v774, %v1550
  %v1611 = vxor.u32 %v1610, 2147483648
  %v1612 = vmul.f32 %v1611, 1.442695
  %v1613 = vpow.pop %v1612
  %v1614 = vadd.f32 %v1613, 1.0
  %v1615 = vrcp.pop %v1614
  %v1616 = vmul.f32 %v1614, %v1615
  %v1617 = vsub.f32 1.0, %v1616
  %v1618 = vmul.f32 %v1615, %v1617
  %v1619 = vadd.f32 %v1615, %v1618
  %vm1620 = vweird.f32 %v1614
  %vm1621 = vweird.f32 %v1615
  %vm1622 = vmor %vm1620, %vm1621
  %v1623 = vsel %vm1622, %v1615, %v1619
  %v1624 = vand.u32 2147483647, %v1614
  %vm1625 = vcmp.eq.f32.partialorder %v1624, 8.507059e+37
  %v1626 = vand.u32 %v1614, 2147483648
  %v1627 = vor.u32 1.1754944e-38, %v1626
  %v1628 = vsel %vm1625, %v1627, %v1623
  %v1629 = vmul.f32 1.0, %v1628
  %v1630 = vadd.f32 %v1609, %v1563
  %v1631 = vxor.u32 %v1630, 2147483648
  %v1632 = vmul.f32 %v1631, 1.442695
  %v1633 = vpow.pop %v1632
  %v1634 = vadd.f32 %v1633, 1.0
  %v1635 = vrcp.pop %v1634
  %v1636 = vmul.f32 %v1634, %v1635
  %v1637 = vsub.f32 1.0, %v1636
  %v1638 = vmul.f32 %v1635, %v1637
  %v1639 = vadd.f32 %v1635, %v1638
  %vm1640 = vweird.f32 %v1634
  %vm1641 = vweird.f32 %v1635
  %vm1642 = vmor %vm1640, %vm1641
  %v1643 = vsel %vm1642, %v1635, %v1639
  %v1644 = vand.u32 2147483647, %v1634
  %vm1645 = vcmp.eq.f32.partialorder %v1644, 8.507059e+37
  %v1646 = vand.u32 %v1634, 2147483648
  %v1647 = vor.u32 1.1754944e-38, %v1646
  %v1648 = vsel %vm1645, %v1647, %v1643
  %v1649 = vmul.f32 1.0, %v1648
  %1651 = vrot.lane.b32.xlu0 %v1563, 64
  %v1652 = vpop.permute.xlu0 %1651
  %v1654 = vmul.f32 %v1629, %v1652
  %1656 = vrot.lane.b32.xlu0 %v1654, 64
  %v1657 = vpop.permute.xlu0 %1656
  %v1659 = vadd.f32 %v1609, %v1657
  %v1660 = vtanh.pop %v1659
  %v1661 = vsub.f32 1.0, %v1649
  %1663 = vrot.lane.b32.xlu0 %v1660, 96
  %v1664 = vpop.permute.xlu0 %1663
  %v1666 = vmul.f32 %v1661, %v1664
  %v1667 = vmul.f32 %v1649, %v1525
  %v1668 = vadd.f32 %v1666, %v1667
  %v1669 = vsel %vm819, %v1668, %v1525
  %v1670 = vsel %vm819, %v1668, 0.0
  %1672 = vrot.lane.b32.xlu0 %v1605, 96
  %v1673 = vpop.permute.xlu0 %1672
  %1676 = vrot.lane.b32.xlu0 %v1669, 32
  %v1677 = vpop.permute.xlu0 %1676
  %v1679 = vsel %vm495, %v1673, %v1677
  %v1680 = vpack.c.bf16 %v1679, %v1679
  %v1682 = vsel %vm573, %v1680, 0
  %1684 = vmatpush.bf16.msra.mxu0 0
  %1685 = vmatpush.bf16.msra.mxu0 0
  %1686 = vmatpush.bf16.msra.mxu0 0
  %1687 = vmatpush.bf16.msra.mxu0 0
  %1688 = vmatpush.bf16.msra.mxu0 %v563
  %1689 = vmatpush.bf16.msra.mxu0 %v561
  %1690 = vmatpush.bf16.msra.mxu0 %v559
  %1691 = vmatpush.bf16.msra.mxu0 %v557
  %1692 = vmatmul.bf16.gmra.mxu0 %v1682
  %v1693 = vpop.f32.mrf.mxu0
  %v1694 = vadd.f32 %v529, %v1693
  %v1695 = vpop.f32.mrf.mxu0
  %1696 = vdwg.mxu0
  %1697 = vmatpush.bf16.msra.mxu0 0
  %1698 = vmatpush.bf16.msra.mxu0 0
  %1699 = vmatpush.bf16.msra.mxu0 0
  %1700 = vmatpush.bf16.msra.mxu0 0
  %1701 = vmatpush.bf16.msra.mxu0 %v564
  %1702 = vmatpush.bf16.msra.mxu0 %v562
  %1703 = vmatpush.bf16.msra.mxu0 %v560
  %1704 = vmatpush.bf16.msra.mxu0 %v558
  %1705 = vmatmul.bf16.gmra.mxu0 %v1682
  %v1706 = vpop.f32.mrf.mxu0
  %v1707 = vadd.f32 %v530, %v1706
  %v1708 = vpop.f32.mrf.mxu0
  %1709 = vdwg.mxu0
  %v1710 = vadd.f32 %v665, %v1694
  %v1711 = vxor.u32 %v1710, 2147483648
  %v1712 = vmul.f32 %v1711, 1.442695
  %v1713 = vpow.pop %v1712
  %v1714 = vadd.f32 %v1713, 1.0
  %v1715 = vrcp.pop %v1714
  %v1716 = vmul.f32 %v1714, %v1715
  %v1717 = vsub.f32 1.0, %v1716
  %v1718 = vmul.f32 %v1715, %v1717
  %v1719 = vadd.f32 %v1715, %v1718
  %vm1720 = vweird.f32 %v1714
  %vm1721 = vweird.f32 %v1715
  %vm1722 = vmor %vm1720, %vm1721
  %v1723 = vsel %vm1722, %v1715, %v1719
  %v1724 = vand.u32 2147483647, %v1714
  %vm1725 = vcmp.eq.f32.partialorder %v1724, 8.507059e+37
  %v1726 = vand.u32 %v1714, 2147483648
  %v1727 = vor.u32 1.1754944e-38, %v1726
  %v1728 = vsel %vm1725, %v1727, %v1723
  %v1729 = vmul.f32 1.0, %v1728
  %1731 = vrot.lane.b32.xlu0 %v1694, 64
  %v1732 = vpop.permute.xlu0 %1731
  %v1734 = vmul.f32 %v1729, %v1732
  %1736 = vrot.lane.b32.xlu0 %v1734, 64
  %v1737 = vpop.permute.xlu0 %1736
  %v1739 = vadd.f32 %v665, %v1737
  %v1740 = vtanh.pop %v1739
  %v1741 = vsub.f32 1.0, %v1729
  %1743 = vrot.lane.b32.xlu0 %v1740, 96
  %v1744 = vpop.permute.xlu0 %1743
  %v1746 = vmul.f32 %v1741, %v1744
  %v1747 = vmul.f32 %v1729, %v1605
  %v1748 = vadd.f32 %v1746, %v1747
  %v1749 = vsel %vm731, %v1748, %v1605
  %v1750 = vsel %vm731, %v1748, 0.0
  %v1751 = vrot.slane %v525, 7
  %v1753 = vsel %vm606, %v523, %v1751
  %v1754 = vadd.f32 %v607, %v1694
  %v1755 = vxor.u32 %v1754, 2147483648
  %v1756 = vmul.f32 %v1755, 1.442695
  %v1757 = vpow.pop %v1756
  %v1758 = vadd.f32 %v1757, 1.0
  %v1759 = vrcp.pop %v1758
  %v1760 = vmul.f32 %v1758, %v1759
  %v1761 = vsub.f32 1.0, %v1760
  %v1762 = vmul.f32 %v1759, %v1761
  %v1763 = vadd.f32 %v1759, %v1762
  %vm1764 = vweird.f32 %v1758
  %vm1765 = vweird.f32 %v1759
  %vm1766 = vmor %vm1764, %vm1765
  %v1767 = vsel %vm1766, %v1759, %v1763
  %v1768 = vand.u32 2147483647, %v1758
  %vm1769 = vcmp.eq.f32.partialorder %v1768, 8.507059e+37
  %v1770 = vand.u32 %v1758, 2147483648
  %v1771 = vor.u32 1.1754944e-38, %v1770
  %v1772 = vsel %vm1769, %v1771, %v1767
  %v1773 = vmul.f32 1.0, %v1772
  %v1774 = vadd.f32 %v1753, %v1707
  %v1775 = vxor.u32 %v1774, 2147483648
  %v1776 = vmul.f32 %v1775, 1.442695
  %v1777 = vpow.pop %v1776
  %v1778 = vadd.f32 %v1777, 1.0
  %v1779 = vrcp.pop %v1778
  %v1780 = vmul.f32 %v1778, %v1779
  %v1781 = vsub.f32 1.0, %v1780
  %v1782 = vmul.f32 %v1779, %v1781
  %v1783 = vadd.f32 %v1779, %v1782
  %vm1784 = vweird.f32 %v1778
  %vm1785 = vweird.f32 %v1779
  %vm1786 = vmor %vm1784, %vm1785
  %v1787 = vsel %vm1786, %v1779, %v1783
  %v1788 = vand.u32 2147483647, %v1778
  %vm1789 = vcmp.eq.f32.partialorder %v1788, 8.507059e+37
  %v1790 = vand.u32 %v1778, 2147483648
  %v1791 = vor.u32 1.1754944e-38, %v1790
  %v1792 = vsel %vm1789, %v1791, %v1787
  %v1793 = vmul.f32 1.0, %v1792
  %1795 = vrot.lane.b32.xlu0 %v1707, 64
  %v1796 = vpop.permute.xlu0 %1795
  %v1798 = vmul.f32 %v1773, %v1796
  %1800 = vrot.lane.b32.xlu0 %v1798, 64
  %v1801 = vpop.permute.xlu0 %1800
  %v1803 = vadd.f32 %v1753, %v1801
  %v1804 = vtanh.pop %v1803
  %v1805 = vsub.f32 1.0, %v1793
  %1807 = vrot.lane.b32.xlu0 %v1804, 96
  %v1808 = vpop.permute.xlu0 %1807
  %v1810 = vmul.f32 %v1805, %v1808
  %v1811 = vmul.f32 %v1793, %v1669
  %v1812 = vadd.f32 %v1810, %v1811
  %v1813 = vsel %vm652, %v1812, %v1669
  %v1814 = vsel %vm652, %v1812, 0.0
  %v1816 = vrot.slane %v821, 7
  %v1819 = vrot.slane %v989, 6
  %v1822 = vrot.slane %v1157, 5
  %v1825 = vrot.slane %v1314, 4
  %v1828 = vrot.slane %v1460, 3
  %v1831 = vrot.slane %v1606, 2
  %v1834 = vrot.slane %v1750, 1
  %v1836 = vsel %vm606, %v653, %v1816
  %vm1837 = vcmask 1041408
  %v1838 = vsel %vm1837, %v1836, %v1819
  %vm1839 = vcmask 1042432
  %v1840 = vsel %vm1839, %v1838, %v1822
  %vm1841 = vcmask 1043456
  %v1842 = vsel %vm1841, %v1840, %v1825
  %vm1843 = vcmask 1044480
  %v1844 = vsel %vm1843, %v1842, %v1828
  %vm1845 = vcmask 1045504
  %v1846 = vsel %vm1845, %v1844, %v1831
  %vm1847 = vcmask 1046528
  %v1848 = vsel %vm1847, %v1846, %v1834
  %v1849 = vrot.slane %v653, 1
  %v1851 = vrot.slane %v989, 7
  %v1853 = vrot.slane %v1157, 6
  %v1855 = vrot.slane %v1314, 5
  %v1857 = vrot.slane %v1460, 4
  %v1859 = vrot.slane %v1606, 3
  %v1861 = vrot.slane %v1750, 2
  %v1863 = vsel %vm606, %v1849, %v821
  %v1864 = vsel %vm1837, %v1863, %v1851
  %v1865 = vsel %vm1839, %v1864, %v1853
  %v1866 = vsel %vm1841, %v1865, %v1855
  %v1867 = vsel %vm1843, %v1866, %v1857
  %v1868 = vsel %vm1845, %v1867, %v1859
  %v1869 = vsel %vm1847, %v1868, %v1861
  %v1871 = vrot.slane %v1670, 7
  %v1874 = vrot.slane %v1526, 6
  %v1877 = vrot.slane %v1380, 5
  %v1880 = vrot.slane %v1234, 4
  %v1883 = vrot.slane %v1066, 3
  %v1886 = vrot.slane %v898, 2
  %v1888 = vrot.slane %v732, 1
  %v1890 = vsel %vm606, %v1814, %v1871
  %v1891 = vsel %vm1837, %v1890, %v1874
  %v1892 = vsel %vm1839, %v1891, %v1877
  %v1893 = vsel %vm1841, %v1892, %v1880
  %v1894 = vsel %vm1843, %v1893, %v1883
  %v1895 = vsel %vm1845, %v1894, %v1886
  %v1896 = vsel %vm1847, %v1895, %v1888
  %v1898 = vrot.slane %v1814, 1
  %v1900 = vrot.slane %v1526, 7
  %v1902 = vrot.slane %v1380, 6
  %v1904 = vrot.slane %v1234, 5
  %v1906 = vrot.slane %v1066, 4
  %v1908 = vrot.slane %v898, 3
  %v1910 = vrot.slane %v732, 2
  %v1912 = vsel %vm606, %v1898, %v1670
  %v1913 = vsel %vm1837, %v1912, %v1900
  %v1914 = vsel %vm1839, %v1913, %v1902
  %v1915 = vsel %vm1841, %v1914, %v1904
  %v1916 = vsel %vm1843, %v1915, %v1906
  %v1917 = vsel %vm1845, %v1916, %v1908
  %v1918 = vsel %vm1847, %v1917, %v1910
  %1920 = vrot.lane.b32.xlu0 %v1749, 96
  %v1921 = vpop.permute.xlu0 %1920
  %v1923 = vrot.slane %v1749, 1
  %v1925 = vsel %vm495, %v1921, %v1923
  %v1927 = vrot.slane %v1813, 1
  %1928 = vrot.lane.b32.xlu0 %v1927, 32
  %v1929 = vpop.permute.xlu0 %1928
  %v1931 = vsel %vm495, %v1813, %v1929
  %v1933 = vrot.slane %v1931, 7
  %v1935 = vsel %vm606, %v1925, %v1933
  %v1936 = vld [vmem:[%s3] sm:$0xff]
  %v1937 = vld [vmem:[%s3 + $0x8] sm:$0xff]
  %v1938 = vld [vmem:[%s4] sm:$0xff]
  %v1939 = vld [vmem:[%s4 + $0x8] sm:$0xff]
  %v1940 = vpack.c.bf16 %v1937, %v1936
  %v1941 = vpack.c.bf16 %v1869, %v1848
  %1943 = vrot.lane.b32.xlu0 %v1941, 96
  %v1944 = vpop.permute.xlu0 %1943
  %vm1946 = vcmask 130048
  %v1948 = vsel %vm1946, %v1940, 0
  %1950 = vmatpush.bf16.msra.mxu0 0
  %1951 = vmatpush.bf16.msra.mxu0 0
  %1952 = vmatpush.bf16.msra.mxu0 0
  %1953 = vmatpush.bf16.msra.mxu0 0
  %1954 = vmatpush.bf16.msra.mxu0 0
  %1955 = vmatpush.bf16.msra.mxu0 0
  %1956 = vmatpush.bf16.msra.mxu0 0
  %1957 = vmatpush.bf16.msra.mxu0 %v1944
  %1958 = vmatmul.bf16.gmra.mxu0 %v1948
  %v1959 = vpop.f32.mrf.mxu0
  %v1960 = vadd.f32 0.0, %v1959
  %v1961 = vpop.f32.mrf.mxu0
  %v1962 = vadd.f32 0.0, %v1961
  %1963 = vdwg.mxu0
  %v1964 = vpack.c.bf16 %v1939, %v1938
  %v1965 = vpack.c.bf16 %v1918, %v1896
  %v1967 = vsel %vm1946, %v1964, 0
  %1969 = vmatpush.bf16.msra.mxu0 0
  %1970 = vmatpush.bf16.msra.mxu0 0
  %1971 = vmatpush.bf16.msra.mxu0 0
  %1972 = vmatpush.bf16.msra.mxu0 0
  %1973 = vmatpush.bf16.msra.mxu0 0
  %1974 = vmatpush.bf16.msra.mxu0 0
  %1975 = vmatpush.bf16.msra.mxu0 0
  %1976 = vmatpush.bf16.msra.mxu0 %v1965
  %1977 = vmatmul.bf16.gmra.mxu0 %v1967
  %v1978 = vpop.f32.mrf.mxu0
  %v1979 = vadd.f32 0.0, %v1978
  %v1980 = vpop.f32.mrf.mxu0
  %v1981 = vadd.f32 0.0, %v1980
  %1982 = vdwg.mxu0
  %v1983 = vld [vmem:[%s9] sm:$0xf]
  %v1984 = vld [vmem:[%s9 + $0x4] sm:$0xf]
  %v1985 = vld [vmem:[%s9 + $0x8] sm:$0xf]
  %v1986 = vld [vmem:[%s9 + $0xc] sm:$0xf]
  %v1987 = vld [vmem:[%s9 + $0x10] sm:$0xf]
  %v1988 = vld [vmem:[%s9 + $0x14] sm:$0xf]
  %v1989 = vld [vmem:[%s9 + $0x18] sm:$0xf]
  %v1990 = vld [vmem:[%s9 + $0x1c] sm:$0xf]
  %v1991 = vld [vmem:[%s9 + $0x20] sm:$0xf]
  %v1992 = vld [vmem:[%s9 + $0x24] sm:$0xf]
  %v1993 = vld [vmem:[%s9 + $0x28] sm:$0xf]
  %v1994 = vld [vmem:[%s9 + $0x2c] sm:$0xf]
  %v1995 = vld [vmem:[%s9 + $0x30] sm:$0xf]
  %v1996 = vld [vmem:[%s9 + $0x34] sm:$0xf]
  %v1997 = vld [vmem:[%s9 + $0x38] sm:$0xf]
  %v1998 = vld [vmem:[%s9 + $0x3c] sm:$0xf]
  %v1999 = vld [vmem:[%s10] sm:$0x1]
  %v2000 = vld [vmem:[%s11] sm:$0xf]
  %v2001 = vld [vmem:[%s11 + $0x4] sm:$0xf]
  %v2002 = vld [vmem:[%s11 + $0x8] sm:$0xf]
  %v2003 = vld [vmem:[%s11 + $0xc] sm:$0xf]
  %v2004 = vld [vmem:[%s11 + $0x10] sm:$0xf]
  %v2005 = vld [vmem:[%s11 + $0x14] sm:$0xf]
  %v2006 = vld [vmem:[%s11 + $0x18] sm:$0xf]
  %v2007 = vld [vmem:[%s11 + $0x1c] sm:$0xf]
  %v2008 = vld [vmem:[%s11 + $0x20] sm:$0xf]
  %v2009 = vld [vmem:[%s11 + $0x24] sm:$0xf]
  %v2010 = vld [vmem:[%s11 + $0x28] sm:$0xf]
  %v2011 = vld [vmem:[%s11 + $0x2c] sm:$0xf]
  %v2012 = vld [vmem:[%s11 + $0x30] sm:$0xf]
  %v2013 = vld [vmem:[%s11 + $0x34] sm:$0xf]
  %v2014 = vld [vmem:[%s11 + $0x38] sm:$0xf]
  %v2015 = vld [vmem:[%s11 + $0x3c] sm:$0xf]
  %v2016 = vld [vmem:[%s12] sm:$0x1]
  %v2017 = vld [vmem:[%s13] sm:$0x1]
  %v2018 = vld [vmem:[#allocation2] sm:$0x1]
  %v2023 = vunpack.c.l.b16 %v1995
  %v2024 = vunpack.c.l.b16 %v1996
  %v2025 = vunpack.c.l.b16 %v1997
  %v2026 = vunpack.c.l.b16 %v1998
  %v2027 = vpack.c.b16 %v2024, %v2023
  %v2028 = vpack.c.b16 %v2026, %v2025
  %v2032 = vsel %vm495, %v1965, 0
  %2034 = vmatpush.bf16.msra.mxu0 0
  %2035 = vmatpush.bf16.msra.mxu0 0
  %2036 = vmatpush.bf16.msra.mxu0 0
  %2037 = vmatpush.bf16.msra.mxu0 0
  %2038 = vmatpush.bf16.msra.mxu0 0
  %2039 = vmatpush.bf16.msra.mxu0 0
  %2040 = vmatpush.bf16.msra.mxu0 %v2028
  %2041 = vmatpush.bf16.msra.mxu0 %v2027
  %2042 = vmatmul.bf16.gmra.mxu0 %v2032
  %v2043 = vpop.f32.mrf.mxu0
  %v2044 = vadd.f32 0.0, %v2043
  %v2045 = vpop.f32.mrf.mxu0
  %v2046 = vadd.f32 0.0, %v2045
  %2047 = vdwg.mxu0
  %v2052 = vunpack.c.l.b16 %v1991
  %v2053 = vunpack.c.l.b16 %v1992
  %v2054 = vunpack.c.l.b16 %v1993
  %v2055 = vunpack.c.l.b16 %v1994
  %v2056 = vpack.c.b16 %v2053, %v2052
  %v2057 = vpack.c.b16 %v2055, %v2054
  %v2061 = vsel %vm495, %v1944, 0
  %2063 = vmatpush.bf16.msra.mxu0 0
  %2064 = vmatpush.bf16.msra.mxu0 0
  %2065 = vmatpush.bf16.msra.mxu0 0
  %2066 = vmatpush.bf16.msra.mxu0 0
  %2067 = vmatpush.bf16.msra.mxu0 0
  %2068 = vmatpush.bf16.msra.mxu0 0
  %2069 = vmatpush.bf16.msra.mxu0 %v2057
  %2070 = vmatpush.bf16.msra.mxu0 %v2056
  %2071 = vmatmul.bf16.gmra.mxu0 %v2061
  %v2072 = vpop.f32.mrf.mxu0
  %v2073 = vadd.f32 %v2044, %v2072
  %v2074 = vpop.f32.mrf.mxu0
  %v2075 = vadd.f32 %v2046, %v2074
  %2076 = vdwg.mxu0
  %v2077 = vpack.c.bf16 %v1935, %v1935
  %v2086 = vunpack.c.l.b16 %v1983
  %v2087 = vunpack.c.l.b16 %v1984
  %v2088 = vunpack.c.l.b16 %v1985
  %v2089 = vunpack.c.l.b16 %v1986
  %v2090 = vunpack.c.l.b16 %v1987
  %v2091 = vunpack.c.l.b16 %v1988
  %v2092 = vunpack.c.l.b16 %v1989
  %v2093 = vunpack.c.l.b16 %v1990
  %v2094 = vpack.c.b16 %v2087, %v2086
  %v2095 = vpack.c.b16 %v2089, %v2088
  %v2096 = vpack.c.b16 %v2091, %v2090
  %v2097 = vpack.c.b16 %v2093, %v2092
  %v2103 = vsel %vm573, %v2077, 0
  %2105 = vmatpush.bf16.msra.mxu0 0
  %2106 = vmatpush.bf16.msra.mxu0 0
  %2107 = vmatpush.bf16.msra.mxu0 0
  %2108 = vmatpush.bf16.msra.mxu0 0
  %2109 = vmatpush.bf16.msra.mxu0 %v2097
  %2110 = vmatpush.bf16.msra.mxu0 %v2096
  %2111 = vmatpush.bf16.msra.mxu0 %v2095
  %2112 = vmatpush.bf16.msra.mxu0 %v2094
  %2113 = vmatmul.bf16.gmra.mxu0 %v2103
  %v2114 = vpop.f32.mrf.mxu0
  %v2115 = vadd.f32 0.0, %v2114
  %v2116 = vpop.f32.mrf.mxu0
  %2117 = vdwg.mxu0
  %v2118 = vperm.slane %v2115, 0
  %v2119 = vperm.slane %v2115, 1
  %v2120 = vpack.c.bf16 %v1962, %v1960
  %v2121 = vpack.c.bf16 %v1981, %v1979
  %v2123 = vsel %vm495, %v2121, 0
  %2125 = vmatpush.bf16.msra.mxu0 0
  %2126 = vmatpush.bf16.msra.mxu0 0
  %2127 = vmatpush.bf16.msra.mxu0 0
  %2128 = vmatpush.bf16.msra.mxu0 0
  %2129 = vmatpush.bf16.msra.mxu0 0
  %2130 = vmatpush.bf16.msra.mxu0 0
  %2131 = vmatpush.bf16.msra.mxu0 %v2097
  %2132 = vmatpush.bf16.msra.mxu0 %v2096
  %2133 = vmatmul.bf16.gmra.mxu0 %v2123
  %v2134 = vpop.f32.mrf.mxu0
  %v2135 = vadd.f32 0.0, %v2134
  %v2136 = vpop.f32.mrf.mxu0
  %v2137 = vadd.f32 0.0, %v2136
  %2138 = vdwg.mxu0
  %v2140 = vsel %vm495, %v2120, 0
  %2142 = vmatpush.bf16.msra.mxu0 0
  %2143 = vmatpush.bf16.msra.mxu0 0
  %2144 = vmatpush.bf16.msra.mxu0 0
  %2145 = vmatpush.bf16.msra.mxu0 0
  %2146 = vmatpush.bf16.msra.mxu0 0
  %2147 = vmatpush.bf16.msra.mxu0 0
  %2148 = vmatpush.bf16.msra.mxu0 %v2095
  %2149 = vmatpush.bf16.msra.mxu0 %v2094
  %2150 = vmatmul.bf16.gmra.mxu0 %v2140
  %v2151 = vpop.f32.mrf.mxu0
  %v2152 = vadd.f32 %v2135, %v2151
  %v2153 = vpop.f32.mrf.mxu0
  %v2154 = vadd.f32 %v2137, %v2153
  %2155 = vdwg.mxu0
  %v2156 = vadd.f32 %v2118, %v2073
  %v2157 = vadd.f32 %v2119, %v2075
  %v2158 = vtanh.pop %v2156
  %v2159 = vtanh.pop %v2157
  %v2161 = vperm.slane %v1999, 0
  %v2163 = vmul.f32 %v2158, %v2161
  %v2164 = vmul.f32 %v2159, %v2161
  %2165 = vadd.xlane.f32.xlu0 %v2163
  %v2166 = vpop.xlane.xlu0 %2165
  %2167 = vadd.xlane.f32.xlu0 %v2164
  %v2168 = vpop.xlane.xlu0 %2167
  %v2169 = vadd.f32 %v2152, %v2073
  %v2170 = vadd.f32 %v2154, %v2075
  %v2171 = vtanh.pop %v2169
  %v2172 = vtanh.pop %v2170
  %v2173 = vmul.f32 %v2171, %v2161
  %v2174 = vmul.f32 %v2172, %v2161
  %2175 = vadd.xlane.f32.xlu0 %v2173
  %v2176 = vpop.xlane.xlu0 %2175
  %2177 = vadd.xlane.f32.xlu0 %v2174
  %v2178 = vpop.xlane.xlu0 %2177
  %v2179 = vrot.slane %v2166, 4
  %v2180 = vmax.f32 %v2166, %v2179
  %v2181 = vrot.slane %v2180, 2
  %v2182 = vmax.f32 %v2180, %v2181
  %v2183 = vrot.slane %v2182, 1
  %v2184 = vmax.f32 %v2182, %v2183
  %v2185 = vsub.f32 %v2166, %v2184
  %v2186 = vmul.f32 %v2185, 1.442695
  %v2187 = vpow.pop %v2186
  %v2188 = vrot.slane %v2187, 4
  %v2189 = vadd.f32 %v2187, %v2188
  %v2190 = vrot.slane %v2189, 2
  %v2191 = vadd.f32 %v2189, %v2190
  %v2192 = vrot.slane %v2191, 1
  %v2193 = vadd.f32 %v2191, %v2192
  %v2194 = vrcp.pop %v2193
  %v2195 = vmul.f32 %v2187, %v2194
  %v2196 = vrot.slane %v2168, 4
  %v2197 = vmax.f32 %v2168, %v2196
  %v2198 = vrot.slane %v2197, 2
  %v2199 = vmax.f32 %v2197, %v2198
  %v2200 = vrot.slane %v2199, 1
  %v2201 = vmax.f32 %v2199, %v2200
  %v2202 = vsub.f32 %v2168, %v2201
  %v2203 = vmul.f32 %v2202, 1.442695
  %v2204 = vpow.pop %v2203
  %v2205 = vrot.slane %v2204, 4
  %v2206 = vadd.f32 %v2204, %v2205
  %v2207 = vrot.slane %v2206, 2
  %v2208 = vadd.f32 %v2206, %v2207
  %v2209 = vrot.slane %v2208, 1
  %v2210 = vadd.f32 %v2208, %v2209
  %v2211 = vrcp.pop %v2210
  %v2212 = vmul.f32 %v2204, %v2211
  %v2213 = vrot.slane %v2176, 4
  %v2214 = vmax.f32 %v2176, %v2213
  %v2215 = vrot.slane %v2214, 2
  %v2216 = vmax.f32 %v2214, %v2215
  %v2217 = vrot.slane %v2216, 1
  %v2218 = vmax.f32 %v2216, %v2217
  %v2219 = vsub.f32 %v2176, %v2218
  %v2220 = vmul.f32 %v2219, 1.442695
  %v2221 = vpow.pop %v2220
  %v2222 = vrot.slane %v2221, 4
  %v2223 = vadd.f32 %v2221, %v2222
  %v2224 = vrot.slane %v2223, 2
  %v2225 = vadd.f32 %v2223, %v2224
  %v2226 = vrot.slane %v2225, 1
  %v2227 = vadd.f32 %v2225, %v2226
  %v2228 = vrcp.pop %v2227
  %v2229 = vmul.f32 %v2221, %v2228
  %v2230 = vrot.slane %v2178, 4
  %v2231 = vmax.f32 %v2178, %v2230
  %v2232 = vrot.slane %v2231, 2
  %v2233 = vmax.f32 %v2231, %v2232
  %v2234 = vrot.slane %v2233, 1
  %v2235 = vmax.f32 %v2233, %v2234
  %v2236 = vsub.f32 %v2178, %v2235
  %v2237 = vmul.f32 %v2236, 1.442695
  %v2238 = vpow.pop %v2237
  %v2239 = vrot.slane %v2238, 4
  %v2240 = vadd.f32 %v2238, %v2239
  %v2241 = vrot.slane %v2240, 2
  %v2242 = vadd.f32 %v2240, %v2241
  %v2243 = vrot.slane %v2242, 1
  %v2244 = vadd.f32 %v2242, %v2243
  %v2245 = vrcp.pop %v2244
  %v2246 = vmul.f32 %v2238, %v2245
  %v2247 = vperm.slane %v1935, 0
  %v2248 = vperm.slane %v1935, 1
  %2250 = vset.pattern.permute.xlu0 0
  %2251 = vperm.xlu0 %2250, %v2195
  %v2252 = vpop.permute.xlu0 %2251
  %2255 = vset.pattern.permute.xlu0 0
  %2256 = vperm.xlu0 %2255, %v2212
  %v2257 = vpop.permute.xlu0 %2256
  %v2259 = vmul.f32 %v2252, %v2247
  %v2260 = vmul.f32 %v2257, %v2248
  %2262 = vset.pattern.permute.xlu0 0
  %2263 = vperm.xlu0 %2262, %v2229
  %v2264 = vpop.permute.xlu0 %2263
  %2267 = vset.pattern.permute.xlu0 0
  %2268 = vperm.xlu0 %2267, %v2246
  %v2269 = vpop.permute.xlu0 %2268
  %v2271 = vmul.f32 %v2264, %v1960
  %v2272 = vmul.f32 %v2269, %v1962
  %v2273 = vadd.f32 %v2259, %v2271
  %v2274 = vadd.f32 %v2260, %v2272
  %v2275 = vmul.f32 %v2264, %v1979
  %v2276 = vmul.f32 %v2269, %v1981
  %2279 = vrot.lane.b32.xlu0 %v2275, 32
  %v2280 = vpop.permute.xlu0 %2279
  %2281 = vrot.lane.b32.xlu0 %v2276, 32
  %v2282 = vpop.permute.xlu0 %2281
  %v2285 = vadd.f32 %v2259, %v2280
  %v2286 = vadd.f32 %v2260, %v2282
  %v2291 = vunpack.c.l.b16 %v2004
  %v2292 = vunpack.c.l.b16 %v2005
  %v2293 = vunpack.c.l.b16 %v2006
  %v2294 = vunpack.c.l.b16 %v2007
  %v2295 = vpack.c.b16 %v2292, %v2291
  %v2296 = vpack.c.b16 %v2294, %v2293
  %2299 = vmatpush.bf16.msra.mxu0 0
  %2300 = vmatpush.bf16.msra.mxu0 0
  %2301 = vmatpush.bf16.msra.mxu0 0
  %2302 = vmatpush.bf16.msra.mxu0 0
  %2303 = vmatpush.bf16.msra.mxu0 0
  %2304 = vmatpush.bf16.msra.mxu0 0
  %2305 = vmatpush.bf16.msra.mxu0 %v2296
  %2306 = vmatpush.bf16.msra.mxu0 %v2295
  %2307 = vmatmul.bf16.gmra.mxu0 %v2032
  %v2308 = vpop.f32.mrf.mxu0
  %v2309 = vadd.f32 0.0, %v2308
  %v2310 = vpop.f32.mrf.mxu0
  %v2311 = vadd.f32 0.0, %v2310
  %2312 = vdwg.mxu0
  %v2317 = vunpack.c.l.b16 %v2000
  %v2318 = vunpack.c.l.b16 %v2001
  %v2319 = vunpack.c.l.b16 %v2002
  %v2320 = vunpack.c.l.b16 %v2003
  %v2321 = vpack.c.b16 %v2318, %v2317
  %v2322 = vpack.c.b16 %v2320, %v2319
  %2325 = vmatpush.bf16.msra.mxu0 0
  %2326 = vmatpush.bf16.msra.mxu0 0
  %2327 = vmatpush.bf16.msra.mxu0 0
  %2328 = vmatpush.bf16.msra.mxu0 0
  %2329 = vmatpush.bf16.msra.mxu0 0
  %2330 = vmatpush.bf16.msra.mxu0 0
  %2331 = vmatpush.bf16.msra.mxu0 %v2322
  %2332 = vmatpush.bf16.msra.mxu0 %v2321
  %2333 = vmatmul.bf16.gmra.mxu0 %v2061
  %v2334 = vpop.f32.mrf.mxu0
  %v2335 = vadd.f32 %v2309, %v2334
  %v2336 = vpop.f32.mrf.mxu0
  %v2337 = vadd.f32 %v2311, %v2336
  %2338 = vdwg.mxu0
  %v2339 = vpack.c.bf16 %v2274, %v2273
  %v2344 = vunpack.c.l.b16 %v2008
  %v2345 = vunpack.c.l.b16 %v2009
  %v2346 = vunpack.c.l.b16 %v2010
  %v2347 = vunpack.c.l.b16 %v2011
  %v2348 = vpack.c.b16 %v2345, %v2344
  %v2349 = vpack.c.b16 %v2347, %v2346
  %v2353 = vsel %vm495, %v2339, 0
  %2355 = vmatpush.bf16.msra.mxu0 0
  %2356 = vmatpush.bf16.msra.mxu0 0
  %2357 = vmatpush.bf16.msra.mxu0 0
  %2358 = vmatpush.bf16.msra.mxu0 0
  %2359 = vmatpush.bf16.msra.mxu0 0
  %2360 = vmatpush.bf16.msra.mxu0 0
  %2361 = vmatpush.bf16.msra.mxu0 %v2349
  %2362 = vmatpush.bf16.msra.mxu0 %v2348
  %2363 = vmatmul.bf16.gmra.mxu0 %v2353
  %v2364 = vpop.f32.mrf.mxu0
  %v2365 = vadd.f32 0.0, %v2364
  %v2366 = vpop.f32.mrf.mxu0
  %v2367 = vadd.f32 0.0, %v2366
  %2368 = vdwg.mxu0
  %v2369 = vadd.f32 %v2335, %v2365
  %v2370 = vadd.f32 %v2337, %v2367
  %v2371 = vpack.c.bf16 %v2286, %v2285
  %2373 = vrot.lane.b32.xlu0 %v2371, 96
  %v2374 = vpop.permute.xlu0 %2373
  %v2379 = vunpack.c.l.b16 %v2012
  %v2380 = vunpack.c.l.b16 %v2013
  %v2381 = vunpack.c.l.b16 %v2014
  %v2382 = vunpack.c.l.b16 %v2015
  %v2383 = vpack.c.b16 %v2380, %v2379
  %v2384 = vpack.c.b16 %v2382, %v2381
  %v2388 = vsel %vm495, %v2374, 0
  %2390 = vmatpush.bf16.msra.mxu0 0
  %2391 = vmatpush.bf16.msra.mxu0 0
  %2392 = vmatpush.bf16.msra.mxu0 0
  %2393 = vmatpush.bf16.msra.mxu0 0
  %2394 = vmatpush.bf16.msra.mxu0 0
  %2395 = vmatpush.bf16.msra.mxu0 0
  %2396 = vmatpush.bf16.msra.mxu0 %v2384
  %2397 = vmatpush.bf16.msra.mxu0 %v2383
  %2398 = vmatmul.bf16.gmra.mxu0 %v2388
  %v2399 = vpop.f32.mrf.mxu0
  %v2400 = vadd.f32 0.0, %v2399
  %v2401 = vpop.f32.mrf.mxu0
  %v2402 = vadd.f32 0.0, %v2401
  %2403 = vdwg.mxu0
  %v2404 = vadd.f32 %v2369, %v2400
  %v2405 = vadd.f32 %v2370, %v2402
  %v2407 = vperm.slane %v2016, 0
  %v2409 = vadd.f32 %v2404, %v2407
  %v2410 = vadd.f32 %v2405, %v2407
  %v2411 = vmax.f32 %v2409, 0.0
  %v2412 = vmax.f32 %v2410, 0.0
  %v2414 = vperm.slane %v2017, 0
  %v2416 = vmul.f32 %v2411, %v2414
  %v2417 = vmul.f32 %v2412, %v2414
  %v2418 = vsel %vm495, %v2416, 0.0
  %2419 = vadd.xlane.f32.xlu0 %v2418
  %v2420 = vpop.xlane.xlu0 %2419
  %v2421 = vsel %vm495, %v2417, 0.0
  %2422 = vadd.xlane.f32.xlu0 %v2421
  %v2423 = vpop.xlane.xlu0 %2422
  %v2425 = vperm.slane %v2018, 0
  %v2427 = vadd.f32 %v2420, %v2425
  %v2428 = vadd.f32 %v2423, %v2425
  %vm2429 = vcmask 7168
  %2430 = vst.msk [vmem:[%s15] sm:$0xff] %vm2429, %v2427
  %2431 = vst.msk [vmem:[%s15 + $0x8] sm:$0xff] %vm2429, %v2428
  // Predicated region
  $region62: #{tpu_custom_call.1} parent=0 // pred_check
    _
  $region63: #{tpu_custom_call.1} parent=0 // pred_check_branch
    %2433 = sbr.rel (0) target = $region65
  $region64: #{tpu_custom_call.1} parent=0 // pred_region
    _
  $region65: #{tpu_custom_call.1} parent=0 // pred_fallthru
    _
  // Predicated region
  $region66: #{tpu_custom_call.1} parent=0 // pred_check
    _
  $region67: #{tpu_custom_call.1} parent=0 // pred_check_branch
    %2435 = sbr.rel (0) target = $region69
  $region68: #{tpu_custom_call.1} parent=0 // pred_region
    _
  $region69: #{tpu_custom_call.1} parent=0 // pred_fallthru
    _

</llo_original>
